<compile_context>
chip_gen: v6e
topology: v6e:2x2x1
jax: 0.10.0
libtpu: 0.0.40
codegen_flags: <defaults>
</compile_context>

<pallas_src>
import functools

import jax
import jax.numpy as jnp
from jax.experimental import pallas as pl
from jax.experimental.pallas import tpu as pltpu


def _round_up(x, m):
    return ((x + m - 1) // m) * m


def _nbytes(shape, dtype):
    n = 1
    for s in shape:
        n *= s
    return n * jnp.dtype(dtype).itemsize


# ---------------------------------------------------------------------------
# Fused kernel: all LSTM layers + directions + FC head for one batch tile.
# ---------------------------------------------------------------------------
def _fused_lstm_fc_kernel(*refs, T, Bt, H, n_layers, n_dir):
    per_layer = 2 + n_dir                       # w_ih_cat, bias, w_hh per dir
    n_in = 1 + per_layer * n_layers + 2
    x_ref = refs[0]                             # (T*Bt, E)           bf16
    layer_refs = refs[1:1 + per_layer * n_layers]
    fcw_ref, fcb_ref = refs[n_in - 2], refs[n_in - 1]
    out_ref = refs[n_in]                        # (Bt, Op)            f32
    act_bufs = [refs[n_in + 1], refs[n_in + 2]]  # 2x (T*Bt, n_dir*H) bf16
    xg_ref = refs[n_in + 3]                     # (T*Bt, n_dir*4H)    f32

    H4 = 4 * H
    zeros = jnp.zeros((Bt, H), jnp.float32)

    def cell(gates, c_prev):
        # gates: (Bt, 4H) f32, bias already folded in.  PyTorch order [i,f,g,o].
        i_g = jax.nn.sigmoid(gates[:, 0 * H:1 * H])
        f_g = jax.nn.sigmoid(gates[:, 1 * H:2 * H])
        g_g = jnp.tanh(gates[:, 2 * H:3 * H])
        o_g = jax.nn.sigmoid(gates[:, 3 * H:4 * H])
        c_new = f_g * c_prev + i_g * g_g
        return o_g * jnp.tanh(c_new), c_new

    src = x_ref[...]                            # (T*Bt, Din) bf16
    final_ref = act_bufs[0]
    for layer in range(n_layers):
        base = per_layer * layer
        wih_ref = layer_refs[base]              # (Din, n_dir*4H) bf16
        b_ref = layer_refs[base + 1]            # (1,   n_dir*4H) f32
        whh_refs = layer_refs[base + 2:base + 2 + n_dir]
        dst_ref = act_bufs[layer % 2]

        # Hoisted input projection for the whole sequence and both directions:
        # one MXU matmul, bias broadcast exactly once (off the serial chain).
        xg_ref[...] = (
            jnp.dot(src, wih_ref[...], preferred_element_type=jnp.float32)
            + b_ref[...])

        if n_dir == 2:
            whh_f = whh_refs[0][...]
            whh_r = whh_refs[1][...]
            h_f = c_f = h_r = c_r = zeros
            # T is small & static -> full unroll keeps h/c in vregs.
            # TODO(synk): switch to lax.fori_loop(..., unroll=k) if T grows.
            for s in range(T):
                rf = s * Bt                     # forward step: time s
                rr = (T - 1 - s) * Bt           # reverse step: time T-1-s
                g_f = (xg_ref[pl.ds(rf, Bt), 0:H4]
                       + jnp.dot(h_f.astype(whh_f.dtype), whh_f,
                                 preferred_element_type=jnp.float32))
                g_r = (xg_ref[pl.ds(rr, Bt), H4:2 * H4]
                       + jnp.dot(h_r.astype(whh_r.dtype), whh_r,
                                 preferred_element_type=jnp.float32))
                h_f, c_f = cell(g_f, c_f)
                h_r, c_r = cell(g_r, c_r)
                # Merged per-layer output buffer: fwd -> [:, :H], rev -> [:, H:].
                dst_ref[pl.ds(rf, Bt), 0:H] = h_f.astype(dst_ref.dtype)
                dst_ref[pl.ds(rr, Bt), H:2 * H] = h_r.astype(dst_ref.dtype)
        else:
            whh = whh_refs[0][...]
            h = c = zeros
            for s in range(T):
                r = s * Bt
                g = (xg_ref[pl.ds(r, Bt), :]
                     + jnp.dot(h.astype(whh.dtype), whh,
                               preferred_element_type=jnp.float32))
                h, c = cell(g, c)
                dst_ref[pl.ds(r, Bt), :] = h.astype(dst_ref.dtype)

        final_ref = dst_ref
        if layer + 1 < n_layers:
            src = dst_ref[...]                  # bf16 LHS for the next layer
        # TODO(synk): inter-layer LSTM dropout / post-LSTM nn.Dropout are
        # identity in eval mode, so they are no-ops here.

    # fc(lstm_out)[:, -1, :] == fc(lstm_out[:, -1, :]): only the last timestep.
    last = final_ref[pl.ds((T - 1) * Bt, Bt), :]          # (Bt, n_dir*H) bf16
    out_ref[...] = (
        jnp.dot(last, fcw_ref[...], preferred_element_type=jnp.float32)
        + fcb_ref[...]).astype(out_ref.dtype)


# ---------------------------------------------------------------------------
# Full forward pass: embedding gather (XLA glue) + one fused pallas_call.
# ---------------------------------------------------------------------------
def review_sentiment_lstm_forward(text, params, *, hidden_dim, n_layers,
                                  n_direction, batch_tile=64):
    B, T = text.shape
    H = hidden_dim

    # Time-major bf16 embedding gather (no f32 stage, no extra transpose pass).
    emb_tbl = params["embedding"].astype(jnp.bfloat16)
    x = emb_tbl[text.T]                               # (T, B, E) bf16
    E = x.shape[-1]

    # Batch tiling: Bt rows per grid step, multiple of 16 so bf16 activations
    # stay sublane-tile aligned; grid axis is "parallel" (v7x dual TensorCore).
    batch_tile = _round_up(batch_tile, 16)
    Bt = min(_round_up(max(B, 1), 16), batch_tile)
    Bp = _round_up(B, Bt)
    n_tiles = Bp // Bt
    x = jnp.pad(x, ((0, 0), (0, Bp - B), (0, 0)))
    # Flatten to (tile, time, row-in-tile) so each batch tile is one contiguous
    # lane-dense (T*Bt, E) matmul LHS -> no in-kernel reshape needed.
    x = x.reshape(T, n_tiles, Bt, E).transpose(1, 0, 2, 3).reshape(
        n_tiles * T * Bt, E)

    inputs = [x]
    in_specs = [pl.BlockSpec((T * Bt, E), lambda i: (i, 0))]

    for layer in range(n_layers):
        w_ih_d, b_d, w_hh_d = [], [], []
        for d in range(n_direction):
            w_ih, w_hh, b = params["lstm"][layer][d]  # (Din,4H),(H,4H),(1,4H)
            w_ih_d.append(w_ih)
            b_d.append(b)
            w_hh_d.append(w_hh.astype(jnp.bfloat16))
        # Directions stacked along lanes only for the shared-x projection
        # (all of its outputs are used); W_hh stays per-direction.
        w_ih_cat = jnp.concatenate(w_ih_d, axis=1).astype(jnp.bfloat16)
        b_cat = jnp.concatenate(b_d, axis=1).astype(jnp.float32)
        inputs += [w_ih_cat, b_cat] + w_hh_d
        in_specs += [pl.BlockSpec(w_ih_cat.shape, lambda i: (0, 0)),
                     pl.BlockSpec(b_cat.shape, lambda i: (0, 0))]
        in_specs += [pl.BlockSpec(w.shape, lambda i: (0, 0)) for w in w_hh_d]

    # Lane-dense FC head: pad output width to a 128-multiple, bf16 weights.
    O = params["fc_w"].shape[1]
    Op = _round_up(max(O, 1), 128)
    fc_w = jnp.zeros((n_direction * H, Op), jnp.bfloat16)
    fc_w = fc_w.at[:, :O].set(params["fc_w"].astype(jnp.bfloat16))
    fc_b = jnp.zeros((1, Op), jnp.float32)
    fc_b = fc_b.at[:, :O].set(params["fc_b"].astype(jnp.float32))
    inputs += [fc_w, fc_b]
    in_specs += [pl.BlockSpec(fc_w.shape, lambda i: (0, 0)),
                 pl.BlockSpec(fc_b.shape, lambda i: (0, 0))]

    scratch_shapes = [
        pltpu.VMEM((T * Bt, n_direction * H), jnp.bfloat16),      # ping
        pltpu.VMEM((T * Bt, n_direction * H), jnp.bfloat16),      # pong
        pltpu.VMEM((T * Bt, n_direction * 4 * H), jnp.float32),   # x-proj gates
    ]

    # VMEM scaling guard: per-block footprint (double-buffered operands +
    # scratch) must fit v7x's 64 MiB VMEM; shrink batch_tile / T / H if not.
    vmem_limit = 64 * 1024 * 1024
    est = 2 * _nbytes((T * Bt, E), jnp.bfloat16)          # x block
    est += 2 * _nbytes((Bt, Op), jnp.float32)             # out block
    for a in inputs[1:]:                                  # weights / biases
        est += 2 * a.size * a.dtype.itemsize
    est += 2 * _nbytes((T * Bt, n_direction * H), jnp.bfloat16)
    est += _nbytes((T * Bt, n_direction * 4 * H), jnp.float32)
    assert est < vmem_limit, (
        f"per-block VMEM estimate {est} B exceeds {vmem_limit} B; "
        "reduce batch_tile / seq_len / hidden_dim")

    kernel = functools.partial(_fused_lstm_fc_kernel, T=T, Bt=Bt, H=H,
                               n_layers=n_layers, n_dir=n_direction)

    out = pl.pallas_call(
        kernel,
        out_shape=jax.ShapeDtypeStruct((Bp, Op), jnp.float32),
        grid_spec=pltpu.PrefetchScalarGridSpec(
            num_scalar_prefetch=0,
            grid=(n_tiles,),                              # batch tiles
            in_specs=in_specs,
            out_specs=pl.BlockSpec((Bt, Op), lambda i: (i, 0)),
            scratch_shapes=scratch_shapes,
        ),
        compiler_params=pltpu.CompilerParams(
            dimension_semantics=("parallel",),
            vmem_limit_bytes=vmem_limit,
        ),
    )(*inputs)
    return out[:B, :O]


# ---------------------------------------------------------------------------
# Pure-JAX reference (PyTorch-equivalent math) for a correctness cross-check.
# ---------------------------------------------------------------------------
def _reference_forward(text, params, *, hidden_dim, n_layers, n_direction):
    H = hidden_dim
    x = params["embedding"][text]                    # (B, T, E)
    B = x.shape[0]

    for layer in range(n_layers):
        outs = []
        for d in range(n_direction):
            w_ih, w_hh, b = params["lstm"][layer][d]
            xs = x if d == 0 else x[:, ::-1, :]

            def step(carry, x_t, w_ih=w_ih, w_hh=w_hh, b=b):
                h, c = carry
                g = x_t @ w_ih + h @ w_hh + b
                i_g = jax.nn.sigmoid(g[:, :H])
                f_g = jax.nn.sigmoid(g[:, H:2 * H])
                g_g = jnp.tanh(g[:, 2 * H:3 * H])
                o_g = jax.nn.sigmoid(g[:, 3 * H:])
                c = f_g * c + i_g * g_g
                h = o_g * jnp.tanh(c)
                return (h, c), h

            init = (jnp.zeros((B, H), jnp.float32), jnp.zeros((B, H), jnp.float32))
            _, hs = jax.lax.scan(step, init, jnp.transpose(xs, (1, 0, 2)))
            hs = jnp.transpose(hs, (1, 0, 2))        # (B, T, H)
            if d == 1:
                hs = hs[:, ::-1, :]
            outs.append(hs)
        x = jnp.concatenate(outs, axis=-1) if n_direction == 2 else outs[0]

    last = x[:, -1, :]
    return last @ params["fc_w"] + params["fc_b"]


# ---------------------------------------------------------------------------
# Deterministic parameter init (shapes from the module's __init__).
# ---------------------------------------------------------------------------
def init_params(key, vocab_size, embedding_dim, hidden_dim, output_dim,
                n_layers, n_direction):
    keys = iter(jax.random.split(key, 4 + 4 * n_layers * n_direction))
    scale = 0.1

    params = {
        "embedding": scale * jax.random.normal(
            next(keys), (vocab_size, embedding_dim), jnp.float32),
        "lstm": [],
        "fc_w": scale * jax.random.normal(
            next(keys), (hidden_dim * n_direction, output_dim), jnp.float32),
        "fc_b": scale * jax.random.normal(next(keys), (1, output_dim), jnp.float32),
    }

    for layer in range(n_layers):
        in_dim = embedding_dim if layer == 0 else hidden_dim * n_direction
        dirs = []
        for _ in range(n_direction):
            w_ih = scale * jax.random.normal(
                next(keys), (in_dim, 4 * hidden_dim), jnp.float32)
            w_hh = scale * jax.random.normal(
                next(keys), (hidden_dim, 4 * hidden_dim), jnp.float32)
            # PyTorch has separate b_ih and b_hh; their sum is what matters.
            b = scale * jax.random.normal(
                next(keys), (1, 4 * hidden_dim), jnp.float32)
            dirs.append((w_ih, w_hh, b))
        params["lstm"].append(dirs)
    return params


if __name__ == "__main__":
    vocab_size = 64
    embedding_dim = 16
    hidden_dim = 32
    output_dim = 4
    n_layers = 2
    n_direction = 2        # bidirectional
    batch = 2
    seq = 8

    key = jax.random.PRNGKey(0)
    k_text, k_params = jax.random.split(key)

    text = jax.random.randint(k_text, (batch, seq), 0, vocab_size, jnp.int32)
    params = init_params(k_params, vocab_size, embedding_dim, hidden_dim,
                         output_dim, n_layers, n_direction)

    fwd = jax.jit(functools.partial(
        review_sentiment_lstm_forward,
        hidden_dim=hidden_dim, n_layers=n_layers, n_direction=n_direction))

    out = fwd(text, params)
    jax.block_until_ready(out)

    ref = _reference_forward(text, params, hidden_dim=hidden_dim,
                             n_layers=n_layers, n_direction=n_direction)

    assert out.shape == (batch, output_dim)
    assert bool(jnp.all(jnp.isfinite(out)))
    # bf16 MXU operands / bf16 activation carries vs f32 reference:
    # accepted accuracy delta, hence the loose-but-meaningful tolerance.
    assert bool(jnp.allclose(out, ref, rtol=2e-2, atol=2e-2))
    print("KERNEL_OK")
</pallas_src>

<mosaic_0001>
module attributes {stable_mosaic.version = 11 : i64} {
  func.func @_fused_lstm_fc_kernel(%arg0: i32, %arg1: memref<128x16xbf16, #tpu.memory_space<vmem>>, %arg2: memref<16x256xbf16, #tpu.memory_space<vmem>>, %arg3: memref<1x256xf32, #tpu.memory_space<vmem>>, %arg4: memref<32x128xbf16, #tpu.memory_space<vmem>>, %arg5: memref<32x128xbf16, #tpu.memory_space<vmem>>, %arg6: memref<64x256xbf16, #tpu.memory_space<vmem>>, %arg7: memref<1x256xf32, #tpu.memory_space<vmem>>, %arg8: memref<32x128xbf16, #tpu.memory_space<vmem>>, %arg9: memref<32x128xbf16, #tpu.memory_space<vmem>>, %arg10: memref<64x128xbf16, #tpu.memory_space<vmem>>, %arg11: memref<1x128xf32, #tpu.memory_space<vmem>>, %arg12: memref<16x128xf32, #tpu.memory_space<vmem>>, %arg13: memref<128x64xbf16, #tpu.memory_space<vmem>>, %arg14: memref<128x64xbf16, #tpu.memory_space<vmem>>, %arg15: memref<128x256xf32, #tpu.memory_space<vmem>>) attributes {dimension_semantics = [#tpu.dimension_semantics<parallel>], iteration_bounds = array<i64: 1>, scalar_prefetch = 0 : i64, scratch_operands = 3 : i64, tpu.core_type = #tpu.core_type<tc>, window_params = [{transform_indices = @transform_0, window_bounds = array<i64: 128, 16>}, {pipeline_mode = #tpu.pipeline_mode<synchronous>, transform_indices = @transform_1, window_bounds = array<i64: 16, 256>}, {pipeline_mode = #tpu.pipeline_mode<synchronous>, transform_indices = @transform_2, window_bounds = array<i64: 1, 256>}, {pipeline_mode = #tpu.pipeline_mode<synchronous>, transform_indices = @transform_3, window_bounds = array<i64: 32, 128>}, {pipeline_mode = #tpu.pipeline_mode<synchronous>, transform_indices = @transform_4, window_bounds = array<i64: 32, 128>}, {pipeline_mode = #tpu.pipeline_mode<synchronous>, transform_indices = @transform_5, window_bounds = array<i64: 64, 256>}, {pipeline_mode = #tpu.pipeline_mode<synchronous>, transform_indices = @transform_6, window_bounds = array<i64: 1, 256>}, {pipeline_mode = #tpu.pipeline_mode<synchronous>, transform_indices = @transform_7, window_bounds = array<i64: 32, 128>}, {pipeline_mode = #tpu.pipeline_mode<synchronous>, transform_indices = @transform_8, window_bounds = array<i64: 32, 128>}, {pipeline_mode = #tpu.pipeline_mode<synchronous>, transform_indices = @transform_9, window_bounds = array<i64: 64, 128>}, {pipeline_mode = #tpu.pipeline_mode<synchronous>, transform_indices = @transform_10, window_bounds = array<i64: 1, 128>}, {transform_indices = @transform_11, window_bounds = array<i64: 16, 128>}]} {
    %cst = arith.constant 0.000000e+00 : f32
    %0 = vector.broadcast %cst : f32 to vector<16x32xf32>
    %c0 = arith.constant 0 : index
    %c0_0 = arith.constant 0 : index
    %1 = vector.load %arg1[%c0, %c0_0] : memref<128x16xbf16, #tpu.memory_space<vmem>>, vector<128x16xbf16>
    %c0_1 = arith.constant 0 : index
    %c0_2 = arith.constant 0 : index
    %2 = vector.load %arg2[%c0_1, %c0_2] : memref<16x256xbf16, #tpu.memory_space<vmem>>, vector<16x256xbf16>
    %cst_3 = arith.constant dense<0.000000e+00> : vector<128x256xf32>
    %3 = tpu.matmul %1, %2, %cst_3 {dimension_numbers = #tpu.dot_dimension_numbers<[1], [0], [0], [1], [0, 0, 1, 1], [], []>} : vector<128x16xbf16>, vector<16x256xbf16>, vector<128x256xf32> -> vector<128x256xf32>
    %c0_4 = arith.constant 0 : index
    %c0_5 = arith.constant 0 : index
    %4 = vector.load %arg3[%c0_4, %c0_5] : memref<1x256xf32, #tpu.memory_space<vmem>>, vector<1x256xf32>
    %5 = vector.broadcast %4 : vector<1x256xf32> to vector<128x256xf32>
    %6 = arith.addf %3, %5 : vector<128x256xf32>
    %c0_6 = arith.constant 0 : index
    %c0_7 = arith.constant 0 : index
    %7 = vector.load %arg15[%c0_6, %c0_7] : memref<128x256xf32, #tpu.memory_space<vmem>>, vector<128x256xf32>
    tpu.vector_store %arg15[%c0_6, %c0_7], %6 {strides = array<i32>} : memref<128x256xf32, #tpu.memory_space<vmem>>, vector<128x256xf32>,
    %c0_8 = arith.constant 0 : index
    %c0_9 = arith.constant 0 : index
    %8 = vector.load %arg4[%c0_8, %c0_9] : memref<32x128xbf16, #tpu.memory_space<vmem>>, vector<32x128xbf16>
    %c0_10 = arith.constant 0 : index
    %c0_11 = arith.constant 0 : index
    %9 = vector.load %arg5[%c0_10, %c0_11] : memref<32x128xbf16, #tpu.memory_space<vmem>>, vector<32x128xbf16>
    %c0_12 = arith.constant 0 : index
    %c0_13 = arith.constant 0 : index
    %10 = vector.load %arg15[%c0_12, %c0_13] : memref<128x256xf32, #tpu.memory_space<vmem>>, vector<16x128xf32>
    %11 = arith.truncf %0 : vector<16x32xf32> to vector<16x32xbf16>
    %cst_14 = arith.constant dense<0.000000e+00> : vector<16x128xf32>
    %12 = tpu.matmul %11, %8, %cst_14 {dimension_numbers = #tpu.dot_dimension_numbers<[1], [0], [0], [1], [0, 0, 1, 1], [], []>} : vector<16x32xbf16>, vector<32x128xbf16>, vector<16x128xf32> -> vector<16x128xf32>
    %13 = arith.addf %10, %12 : vector<16x128xf32>
    %c112 = arith.constant 112 : index
    %c128 = arith.constant 128 : index
    %14 = vector.load %arg15[%c112, %c128] : memref<128x256xf32, #tpu.memory_space<vmem>>, vector<16x128xf32>
    %15 = arith.truncf %0 : vector<16x32xf32> to vector<16x32xbf16>
    %cst_15 = arith.constant dense<0.000000e+00> : vector<16x128xf32>
    %16 = tpu.matmul %15, %9, %cst_15 {dimension_numbers = #tpu.dot_dimension_numbers<[1], [0], [0], [1], [0, 0, 1, 1], [], []>} : vector<16x32xbf16>, vector<32x128xbf16>, vector<16x128xf32> -> vector<16x128xf32>
    %17 = arith.addf %14, %16 : vector<16x128xf32>
    %18 = vector.extract_strided_slice %13 {offsets = [0, 0], sizes = [16, 32], strides = [1, 1]} : vector<16x128xf32> to vector<16x32xf32>
    %19 = arith.negf %18 : vector<16x32xf32>
    %20 = math.exp %19 : vector<16x32xf32>
    %cst_16 = arith.constant 1.000000e+00 : f32
    %21 = vector.broadcast %cst_16 : f32 to vector<16x32xf32>
    %22 = arith.addf %21, %20 : vector<16x32xf32>
    %23 = arith.divf %21, %22 : vector<16x32xf32>
    %24 = vector.extract_strided_slice %13 {offsets = [0, 32], sizes = [16, 32], strides = [1, 1]} : vector<16x128xf32> to vector<16x32xf32>
    %25 = arith.negf %24 : vector<16x32xf32>
    %26 = math.exp %25 : vector<16x32xf32>
    %cst_17 = arith.constant 1.000000e+00 : f32
    %27 = vector.broadcast %cst_17 : f32 to vector<16x32xf32>
    %28 = arith.addf %27, %26 : vector<16x32xf32>
    %29 = arith.divf %27, %28 : vector<16x32xf32>
    %30 = vector.extract_strided_slice %13 {offsets = [0, 64], sizes = [16, 32], strides = [1, 1]} : vector<16x128xf32> to vector<16x32xf32>
    %31 = math.tanh %30 : vector<16x32xf32>
    %32 = vector.extract_strided_slice %13 {offsets = [0, 96], sizes = [16, 32], strides = [1, 1]} : vector<16x128xf32> to vector<16x32xf32>
    %33 = arith.negf %32 : vector<16x32xf32>
    %34 = math.exp %33 : vector<16x32xf32>
    %cst_18 = arith.constant 1.000000e+00 : f32
    %35 = vector.broadcast %cst_18 : f32 to vector<16x32xf32>
    %36 = arith.addf %35, %34 : vector<16x32xf32>
    %37 = arith.divf %35, %36 : vector<16x32xf32>
    %38 = arith.mulf %29, %0 : vector<16x32xf32>
    %39 = arith.mulf %23, %31 : vector<16x32xf32>
    %40 = arith.addf %38, %39 : vector<16x32xf32>
    %41 = math.tanh %40 : vector<16x32xf32>
    %42 = arith.mulf %37, %41 : vector<16x32xf32>
    %43 = vector.extract_strided_slice %17 {offsets = [0, 0], sizes = [16, 32], strides = [1, 1]} : vector<16x128xf32> to vector<16x32xf32>
    %44 = arith.negf %43 : vector<16x32xf32>
    %45 = math.exp %44 : vector<16x32xf32>
    %cst_19 = arith.constant 1.000000e+00 : f32
    %46 = vector.broadcast %cst_19 : f32 to vector<16x32xf32>
    %47 = arith.addf %46, %45 : vector<16x32xf32>
    %48 = arith.divf %46, %47 : vector<16x32xf32>
    %49 = vector.extract_strided_slice %17 {offsets = [0, 32], sizes = [16, 32], strides = [1, 1]} : vector<16x128xf32> to vector<16x32xf32>
    %50 = arith.negf %49 : vector<16x32xf32>
    %51 = math.exp %50 : vector<16x32xf32>
    %cst_20 = arith.constant 1.000000e+00 : f32
    %52 = vector.broadcast %cst_20 : f32 to vector<16x32xf32>
    %53 = arith.addf %52, %51 : vector<16x32xf32>
    %54 = arith.divf %52, %53 : vector<16x32xf32>
    %55 = vector.extract_strided_slice %17 {offsets = [0, 64], sizes = [16, 32], strides = [1, 1]} : vector<16x128xf32> to vector<16x32xf32>
    %56 = math.tanh %55 : vector<16x32xf32>
    %57 = vector.extract_strided_slice %17 {offsets = [0, 96], sizes = [16, 32], strides = [1, 1]} : vector<16x128xf32> to vector<16x32xf32>
    %58 = arith.negf %57 : vector<16x32xf32>
    %59 = math.exp %58 : vector<16x32xf32>
    %cst_21 = arith.constant 1.000000e+00 : f32
    %60 = vector.broadcast %cst_21 : f32 to vector<16x32xf32>
    %61 = arith.addf %60, %59 : vector<16x32xf32>
    %62 = arith.divf %60, %61 : vector<16x32xf32>
    %63 = arith.mulf %54, %0 : vector<16x32xf32>
    %64 = arith.mulf %48, %56 : vector<16x32xf32>
    %65 = arith.addf %63, %64 : vector<16x32xf32>
    %66 = math.tanh %65 : vector<16x32xf32>
    %67 = arith.mulf %62, %66 : vector<16x32xf32>
    %68 = arith.truncf %42 : vector<16x32xf32> to vector<16x32xbf16>
    %c0_22 = arith.constant 0 : index
    %c0_23 = arith.constant 0 : index
    %69 = vector.load %arg13[%c0_22, %c0_23] : memref<128x64xbf16, #tpu.memory_space<vmem>>, vector<16x32xbf16>
    tpu.vector_store %arg13[%c0_22, %c0_23], %68 {strides = array<i32>} : memref<128x64xbf16, #tpu.memory_space<vmem>>, vector<16x32xbf16>,
    %70 = arith.truncf %67 : vector<16x32xf32> to vector<16x32xbf16>
    %c112_24 = arith.constant 112 : index
    %c32 = arith.constant 32 : index
    %71 = vector.load %arg13[%c112_24, %c32] : memref<128x64xbf16, #tpu.memory_space<vmem>>, vector<16x32xbf16>
    tpu.vector_store %arg13[%c112_24, %c32], %70 {strides = array<i32>} : memref<128x64xbf16, #tpu.memory_space<vmem>>, vector<16x32xbf16>,
    %c16 = arith.constant 16 : index
    %c0_25 = arith.constant 0 : index
    %72 = vector.load %arg15[%c16, %c0_25] : memref<128x256xf32, #tpu.memory_space<vmem>>, vector<16x128xf32>
    %73 = arith.truncf %42 : vector<16x32xf32> to vector<16x32xbf16>
    %cst_26 = arith.constant dense<0.000000e+00> : vector<16x128xf32>
    %74 = tpu.matmul %73, %8, %cst_26 {dimension_numbers = #tpu.dot_dimension_numbers<[1], [0], [0], [1], [0, 0, 1, 1], [], []>} : vector<16x32xbf16>, vector<32x128xbf16>, vector<16x128xf32> -> vector<16x128xf32>
    %75 = arith.addf %72, %74 : vector<16x128xf32>
    %c96 = arith.constant 96 : index
    %c128_27 = arith.constant 128 : index
    %76 = vector.load %arg15[%c96, %c128_27] : memref<128x256xf32, #tpu.memory_space<vmem>>, vector<16x128xf32>
    %77 = arith.truncf %67 : vector<16x32xf32> to vector<16x32xbf16>
    %cst_28 = arith.constant dense<0.000000e+00> : vector<16x128xf32>
    %78 = tpu.matmul %77, %9, %cst_28 {dimension_numbers = #tpu.dot_dimension_numbers<[1], [0], [0], [1], [0, 0, 1, 1], [], []>} : vector<16x32xbf16>, vector<32x128xbf16>, vector<16x128xf32> -> vector<16x128xf32>
    %79 = arith.addf %76, %78 : vector<16x128xf32>
    %80 = vector.extract_strided_slice %75 {offsets = [0, 0], sizes = [16, 32], strides = [1, 1]} : vector<16x128xf32> to vector<16x32xf32>
    %81 = arith.negf %80 : vector<16x32xf32>
    %82 = math.exp %81 : vector<16x32xf32>
    %cst_29 = arith.constant 1.000000e+00 : f32
    %83 = vector.broadcast %cst_29 : f32 to vector<16x32xf32>
    %84 = arith.addf %83, %82 : vector<16x32xf32>
    %85 = arith.divf %83, %84 : vector<16x32xf32>
    %86 = vector.extract_strided_slice %75 {offsets = [0, 32], sizes = [16, 32], strides = [1, 1]} : vector<16x128xf32> to vector<16x32xf32>
    %87 = arith.negf %86 : vector<16x32xf32>
    %88 = math.exp %87 : vector<16x32xf32>
    %cst_30 = arith.constant 1.000000e+00 : f32
    %89 = vector.broadcast %cst_30 : f32 to vector<16x32xf32>
    %90 = arith.addf %89, %88 : vector<16x32xf32>
    %91 = arith.divf %89, %90 : vector<16x32xf32>
    %92 = vector.extract_strided_slice %75 {offsets = [0, 64], sizes = [16, 32], strides = [1, 1]} : vector<16x128xf32> to vector<16x32xf32>
    %93 = math.tanh %92 : vector<16x32xf32>
    %94 = vector.extract_strided_slice %75 {offsets = [0, 96], sizes = [16, 32], strides = [1, 1]} : vector<16x128xf32> to vector<16x32xf32>
    %95 = arith.negf %94 : vector<16x32xf32>
    %96 = math.exp %95 : vector<16x32xf32>
    %cst_31 = arith.constant 1.000000e+00 : f32
    %97 = vector.broadcast %cst_31 : f32 to vector<16x32xf32>
    %98 = arith.addf %97, %96 : vector<16x32xf32>
    %99 = arith.divf %97, %98 : vector<16x32xf32>
    %100 = arith.mulf %91, %40 : vector<16x32xf32>
    %101 = arith.mulf %85, %93 : vector<16x32xf32>
    %102 = arith.addf %100, %101 : vector<16x32xf32>
    %103 = math.tanh %102 : vector<16x32xf32>
    %104 = arith.mulf %99, %103 : vector<16x32xf32>
    %105 = vector.extract_strided_slice %79 {offsets = [0, 0], sizes = [16, 32], strides = [1, 1]} : vector<16x128xf32> to vector<16x32xf32>
    %106 = arith.negf %105 : vector<16x32xf32>
    %107 = math.exp %106 : vector<16x32xf32>
    %cst_32 = arith.constant 1.000000e+00 : f32
    %108 = vector.broadcast %cst_32 : f32 to vector<16x32xf32>
    %109 = arith.addf %108, %107 : vector<16x32xf32>
    %110 = arith.divf %108, %109 : vector<16x32xf32>
    %111 = vector.extract_strided_slice %79 {offsets = [0, 32], sizes = [16, 32], strides = [1, 1]} : vector<16x128xf32> to vector<16x32xf32>
    %112 = arith.negf %111 : vector<16x32xf32>
    %113 = math.exp %112 : vector<16x32xf32>
    %cst_33 = arith.constant 1.000000e+00 : f32
    %114 = vector.broadcast %cst_33 : f32 to vector<16x32xf32>
    %115 = arith.addf %114, %113 : vector<16x32xf32>
    %116 = arith.divf %114, %115 : vector<16x32xf32>
    %117 = vector.extract_strided_slice %79 {offsets = [0, 64], sizes = [16, 32], strides = [1, 1]} : vector<16x128xf32> to vector<16x32xf32>
    %118 = math.tanh %117 : vector<16x32xf32>
    %119 = vector.extract_strided_slice %79 {offsets = [0, 96], sizes = [16, 32], strides = [1, 1]} : vector<16x128xf32> to vector<16x32xf32>
    %120 = arith.negf %119 : vector<16x32xf32>
    %121 = math.exp %120 : vector<16x32xf32>
    %cst_34 = arith.constant 1.000000e+00 : f32
    %122 = vector.broadcast %cst_34 : f32 to vector<16x32xf32>
    %123 = arith.addf %122, %121 : vector<16x32xf32>
    %124 = arith.divf %122, %123 : vector<16x32xf32>
    %125 = arith.mulf %116, %65 : vector<16x32xf32>
    %126 = arith.mulf %110, %118 : vector<16x32xf32>
    %127 = arith.addf %125, %126 : vector<16x32xf32>
    %128 = math.tanh %127 : vector<16x32xf32>
    %129 = arith.mulf %124, %128 : vector<16x32xf32>
    %130 = arith.truncf %104 : vector<16x32xf32> to vector<16x32xbf16>
    %c16_35 = arith.constant 16 : index
    %c0_36 = arith.constant 0 : index
    %131 = vector.load %arg13[%c16_35, %c0_36] : memref<128x64xbf16, #tpu.memory_space<vmem>>, vector<16x32xbf16>
    tpu.vector_store %arg13[%c16_35, %c0_36], %130 {strides = array<i32>} : memref<128x64xbf16, #tpu.memory_space<vmem>>, vector<16x32xbf16>,
    %132 = arith.truncf %129 : vector<16x32xf32> to vector<16x32xbf16>
    %c96_37 = arith.constant 96 : index
    %c32_38 = arith.constant 32 : index
    %133 = vector.load %arg13[%c96_37, %c32_38] : memref<128x64xbf16, #tpu.memory_space<vmem>>, vector<16x32xbf16>
    tpu.vector_store %arg13[%c96_37, %c32_38], %132 {strides = array<i32>} : memref<128x64xbf16, #tpu.memory_space<vmem>>, vector<16x32xbf16>,
    %c32_39 = arith.constant 32 : index
    %c0_40 = arith.constant 0 : index
    %134 = vector.load %arg15[%c32_39, %c0_40] : memref<128x256xf32, #tpu.memory_space<vmem>>, vector<16x128xf32>
    %135 = arith.truncf %104 : vector<16x32xf32> to vector<16x32xbf16>
    %cst_41 = arith.constant dense<0.000000e+00> : vector<16x128xf32>
    %136 = tpu.matmul %135, %8, %cst_41 {dimension_numbers = #tpu.dot_dimension_numbers<[1], [0], [0], [1], [0, 0, 1, 1], [], []>} : vector<16x32xbf16>, vector<32x128xbf16>, vector<16x128xf32> -> vector<16x128xf32>
    %137 = arith.addf %134, %136 : vector<16x128xf32>
    %c80 = arith.constant 80 : index
    %c128_42 = arith.constant 128 : index
    %138 = vector.load %arg15[%c80, %c128_42] : memref<128x256xf32, #tpu.memory_space<vmem>>, vector<16x128xf32>
    %139 = arith.truncf %129 : vector<16x32xf32> to vector<16x32xbf16>
    %cst_43 = arith.constant dense<0.000000e+00> : vector<16x128xf32>
    %140 = tpu.matmul %139, %9, %cst_43 {dimension_numbers = #tpu.dot_dimension_numbers<[1], [0], [0], [1], [0, 0, 1, 1], [], []>} : vector<16x32xbf16>, vector<32x128xbf16>, vector<16x128xf32> -> vector<16x128xf32>
    %141 = arith.addf %138, %140 : vector<16x128xf32>
    %142 = vector.extract_strided_slice %137 {offsets = [0, 0], sizes = [16, 32], strides = [1, 1]} : vector<16x128xf32> to vector<16x32xf32>
    %143 = arith.negf %142 : vector<16x32xf32>
    %144 = math.exp %143 : vector<16x32xf32>
    %cst_44 = arith.constant 1.000000e+00 : f32
    %145 = vector.broadcast %cst_44 : f32 to vector<16x32xf32>
    %146 = arith.addf %145, %144 : vector<16x32xf32>
    %147 = arith.divf %145, %146 : vector<16x32xf32>
    %148 = vector.extract_strided_slice %137 {offsets = [0, 32], sizes = [16, 32], strides = [1, 1]} : vector<16x128xf32> to vector<16x32xf32>
    %149 = arith.negf %148 : vector<16x32xf32>
    %150 = math.exp %149 : vector<16x32xf32>
    %cst_45 = arith.constant 1.000000e+00 : f32
    %151 = vector.broadcast %cst_45 : f32 to vector<16x32xf32>
    %152 = arith.addf %151, %150 : vector<16x32xf32>
    %153 = arith.divf %151, %152 : vector<16x32xf32>
    %154 = vector.extract_strided_slice %137 {offsets = [0, 64], sizes = [16, 32], strides = [1, 1]} : vector<16x128xf32> to vector<16x32xf32>
    %155 = math.tanh %154 : vector<16x32xf32>
    %156 = vector.extract_strided_slice %137 {offsets = [0, 96], sizes = [16, 32], strides = [1, 1]} : vector<16x128xf32> to vector<16x32xf32>
    %157 = arith.negf %156 : vector<16x32xf32>
    %158 = math.exp %157 : vector<16x32xf32>
    %cst_46 = arith.constant 1.000000e+00 : f32
    %159 = vector.broadcast %cst_46 : f32 to vector<16x32xf32>
    %160 = arith.addf %159, %158 : vector<16x32xf32>
    %161 = arith.divf %159, %160 : vector<16x32xf32>
    %162 = arith.mulf %153, %102 : vector<16x32xf32>
    %163 = arith.mulf %147, %155 : vector<16x32xf32>
    %164 = arith.addf %162, %163 : vector<16x32xf32>
    %165 = math.tanh %164 : vector<16x32xf32>
    %166 = arith.mulf %161, %165 : vector<16x32xf32>
    %167 = vector.extract_strided_slice %141 {offsets = [0, 0], sizes = [16, 32], strides = [1, 1]} : vector<16x128xf32> to vector<16x32xf32>
    %168 = arith.negf %167 : vector<16x32xf32>
    %169 = math.exp %168 : vector<16x32xf32>
    %cst_47 = arith.constant 1.000000e+00 : f32
    %170 = vector.broadcast %cst_47 : f32 to vector<16x32xf32>
    %171 = arith.addf %170, %169 : vector<16x32xf32>
    %172 = arith.divf %170, %171 : vector<16x32xf32>
    %173 = vector.extract_strided_slice %141 {offsets = [0, 32], sizes = [16, 32], strides = [1, 1]} : vector<16x128xf32> to vector<16x32xf32>
    %174 = arith.negf %173 : vector<16x32xf32>
    %175 = math.exp %174 : vector<16x32xf32>
    %cst_48 = arith.constant 1.000000e+00 : f32
    %176 = vector.broadcast %cst_48 : f32 to vector<16x32xf32>
    %177 = arith.addf %176, %175 : vector<16x32xf32>
    %178 = arith.divf %176, %177 : vector<16x32xf32>
    %179 = vector.extract_strided_slice %141 {offsets = [0, 64], sizes = [16, 32], strides = [1, 1]} : vector<16x128xf32> to vector<16x32xf32>
    %180 = math.tanh %179 : vector<16x32xf32>
    %181 = vector.extract_strided_slice %141 {offsets = [0, 96], sizes = [16, 32], strides = [1, 1]} : vector<16x128xf32> to vector<16x32xf32>
    %182 = arith.negf %181 : vector<16x32xf32>
    %183 = math.exp %182 : vector<16x32xf32>
    %cst_49 = arith.constant 1.000000e+00 : f32
    %184 = vector.broadcast %cst_49 : f32 to vector<16x32xf32>
    %185 = arith.addf %184, %183 : vector<16x32xf32>
    %186 = arith.divf %184, %185 : vector<16x32xf32>
    %187 = arith.mulf %178, %127 : vector<16x32xf32>
    %188 = arith.mulf %172, %180 : vector<16x32xf32>
    %189 = arith.addf %187, %188 : vector<16x32xf32>
    %190 = math.tanh %189 : vector<16x32xf32>
    %191 = arith.mulf %186, %190 : vector<16x32xf32>
    %192 = arith.truncf %166 : vector<16x32xf32> to vector<16x32xbf16>
    %c32_50 = arith.constant 32 : index
    %c0_51 = arith.constant 0 : index
    %193 = vector.load %arg13[%c32_50, %c0_51] : memref<128x64xbf16, #tpu.memory_space<vmem>>, vector<16x32xbf16>
    tpu.vector_store %arg13[%c32_50, %c0_51], %192 {strides = array<i32>} : memref<128x64xbf16, #tpu.memory_space<vmem>>, vector<16x32xbf16>,
    %194 = arith.truncf %191 : vector<16x32xf32> to vector<16x32xbf16>
    %c80_52 = arith.constant 80 : index
    %c32_53 = arith.constant 32 : index
    %195 = vector.load %arg13[%c80_52, %c32_53] : memref<128x64xbf16, #tpu.memory_space<vmem>>, vector<16x32xbf16>
    tpu.vector_store %arg13[%c80_52, %c32_53], %194 {strides = array<i32>} : memref<128x64xbf16, #tpu.memory_space<vmem>>, vector<16x32xbf16>,
    %c48 = arith.constant 48 : index
    %c0_54 = arith.constant 0 : index
    %196 = vector.load %arg15[%c48, %c0_54] : memref<128x256xf32, #tpu.memory_space<vmem>>, vector<16x128xf32>
    %197 = arith.truncf %166 : vector<16x32xf32> to vector<16x32xbf16>
    %cst_55 = arith.constant dense<0.000000e+00> : vector<16x128xf32>
    %198 = tpu.matmul %197, %8, %cst_55 {dimension_numbers = #tpu.dot_dimension_numbers<[1], [0], [0], [1], [0, 0, 1, 1], [], []>} : vector<16x32xbf16>, vector<32x128xbf16>, vector<16x128xf32> -> vector<16x128xf32>
    %199 = arith.addf %196, %198 : vector<16x128xf32>
    %c64 = arith.constant 64 : index
    %c128_56 = arith.constant 128 : index
    %200 = vector.load %arg15[%c64, %c128_56] : memref<128x256xf32, #tpu.memory_space<vmem>>, vector<16x128xf32>
    %201 = arith.truncf %191 : vector<16x32xf32> to vector<16x32xbf16>
    %cst_57 = arith.constant dense<0.000000e+00> : vector<16x128xf32>
    %202 = tpu.matmul %201, %9, %cst_57 {dimension_numbers = #tpu.dot_dimension_numbers<[1], [0], [0], [1], [0, 0, 1, 1], [], []>} : vector<16x32xbf16>, vector<32x128xbf16>, vector<16x128xf32> -> vector<16x128xf32>
    %203 = arith.addf %200, %202 : vector<16x128xf32>
    %204 = vector.extract_strided_slice %199 {offsets = [0, 0], sizes = [16, 32], strides = [1, 1]} : vector<16x128xf32> to vector<16x32xf32>
    %205 = arith.negf %204 : vector<16x32xf32>
    %206 = math.exp %205 : vector<16x32xf32>
    %cst_58 = arith.constant 1.000000e+00 : f32
    %207 = vector.broadcast %cst_58 : f32 to vector<16x32xf32>
    %208 = arith.addf %207, %206 : vector<16x32xf32>
    %209 = arith.divf %207, %208 : vector<16x32xf32>
    %210 = vector.extract_strided_slice %199 {offsets = [0, 32], sizes = [16, 32], strides = [1, 1]} : vector<16x128xf32> to vector<16x32xf32>
    %211 = arith.negf %210 : vector<16x32xf32>
    %212 = math.exp %211 : vector<16x32xf32>
    %cst_59 = arith.constant 1.000000e+00 : f32
    %213 = vector.broadcast %cst_59 : f32 to vector<16x32xf32>
    %214 = arith.addf %213, %212 : vector<16x32xf32>
    %215 = arith.divf %213, %214 : vector<16x32xf32>
    %216 = vector.extract_strided_slice %199 {offsets = [0, 64], sizes = [16, 32], strides = [1, 1]} : vector<16x128xf32> to vector<16x32xf32>
    %217 = math.tanh %216 : vector<16x32xf32>
    %218 = vector.extract_strided_slice %199 {offsets = [0, 96], sizes = [16, 32], strides = [1, 1]} : vector<16x128xf32> to vector<16x32xf32>
    %219 = arith.negf %218 : vector<16x32xf32>
    %220 = math.exp %219 : vector<16x32xf32>
    %cst_60 = arith.constant 1.000000e+00 : f32
    %221 = vector.broadcast %cst_60 : f32 to vector<16x32xf32>
    %222 = arith.addf %221, %220 : vector<16x32xf32>
    %223 = arith.divf %221, %222 : vector<16x32xf32>
    %224 = arith.mulf %215, %164 : vector<16x32xf32>
    %225 = arith.mulf %209, %217 : vector<16x32xf32>
    %226 = arith.addf %224, %225 : vector<16x32xf32>
    %227 = math.tanh %226 : vector<16x32xf32>
    %228 = arith.mulf %223, %227 : vector<16x32xf32>
    %229 = vector.extract_strided_slice %203 {offsets = [0, 0], sizes = [16, 32], strides = [1, 1]} : vector<16x128xf32> to vector<16x32xf32>
    %230 = arith.negf %229 : vector<16x32xf32>
    %231 = math.exp %230 : vector<16x32xf32>
    %cst_61 = arith.constant 1.000000e+00 : f32
    %232 = vector.broadcast %cst_61 : f32 to vector<16x32xf32>
    %233 = arith.addf %232, %231 : vector<16x32xf32>
    %234 = arith.divf %232, %233 : vector<16x32xf32>
    %235 = vector.extract_strided_slice %203 {offsets = [0, 32], sizes = [16, 32], strides = [1, 1]} : vector<16x128xf32> to vector<16x32xf32>
    %236 = arith.negf %235 : vector<16x32xf32>
    %237 = math.exp %236 : vector<16x32xf32>
    %cst_62 = arith.constant 1.000000e+00 : f32
    %238 = vector.broadcast %cst_62 : f32 to vector<16x32xf32>
    %239 = arith.addf %238, %237 : vector<16x32xf32>
    %240 = arith.divf %238, %239 : vector<16x32xf32>
    %241 = vector.extract_strided_slice %203 {offsets = [0, 64], sizes = [16, 32], strides = [1, 1]} : vector<16x128xf32> to vector<16x32xf32>
    %242 = math.tanh %241 : vector<16x32xf32>
    %243 = vector.extract_strided_slice %203 {offsets = [0, 96], sizes = [16, 32], strides = [1, 1]} : vector<16x128xf32> to vector<16x32xf32>
    %244 = arith.negf %243 : vector<16x32xf32>
    %245 = math.exp %244 : vector<16x32xf32>
    %cst_63 = arith.constant 1.000000e+00 : f32
    %246 = vector.broadcast %cst_63 : f32 to vector<16x32xf32>
    %247 = arith.addf %246, %245 : vector<16x32xf32>
    %248 = arith.divf %246, %247 : vector<16x32xf32>
    %249 = arith.mulf %240, %189 : vector<16x32xf32>
    %250 = arith.mulf %234, %242 : vector<16x32xf32>
    %251 = arith.addf %249, %250 : vector<16x32xf32>
    %252 = math.tanh %251 : vector<16x32xf32>
    %253 = arith.mulf %248, %252 : vector<16x32xf32>
    %254 = arith.truncf %228 : vector<16x32xf32> to vector<16x32xbf16>
    %c48_64 = arith.constant 48 : index
    %c0_65 = arith.constant 0 : index
    %255 = vector.load %arg13[%c48_64, %c0_65] : memref<128x64xbf16, #tpu.memory_space<vmem>>, vector<16x32xbf16>
    tpu.vector_store %arg13[%c48_64, %c0_65], %254 {strides = array<i32>} : memref<128x64xbf16, #tpu.memory_space<vmem>>, vector<16x32xbf16>,
    %256 = arith.truncf %253 : vector<16x32xf32> to vector<16x32xbf16>
    %c64_66 = arith.constant 64 : index
    %c32_67 = arith.constant 32 : index
    %257 = vector.load %arg13[%c64_66, %c32_67] : memref<128x64xbf16, #tpu.memory_space<vmem>>, vector<16x32xbf16>
    tpu.vector_store %arg13[%c64_66, %c32_67], %256 {strides = array<i32>} : memref<128x64xbf16, #tpu.memory_space<vmem>>, vector<16x32xbf16>,
    %c64_68 = arith.constant 64 : index
    %c0_69 = arith.constant 0 : index
    %258 = vector.load %arg15[%c64_68, %c0_69] : memref<128x256xf32, #tpu.memory_space<vmem>>, vector<16x128xf32>
    %259 = arith.truncf %228 : vector<16x32xf32> to vector<16x32xbf16>
    %cst_70 = arith.constant dense<0.000000e+00> : vector<16x128xf32>
    %260 = tpu.matmul %259, %8, %cst_70 {dimension_numbers = #tpu.dot_dimension_numbers<[1], [0], [0], [1], [0, 0, 1, 1], [], []>} : vector<16x32xbf16>, vector<32x128xbf16>, vector<16x128xf32> -> vector<16x128xf32>
    %261 = arith.addf %258, %260 : vector<16x128xf32>
    %c48_71 = arith.constant 48 : index
    %c128_72 = arith.constant 128 : index
    %262 = vector.load %arg15[%c48_71, %c128_72] : memref<128x256xf32, #tpu.memory_space<vmem>>, vector<16x128xf32>
    %263 = arith.truncf %253 : vector<16x32xf32> to vector<16x32xbf16>
    %cst_73 = arith.constant dense<0.000000e+00> : vector<16x128xf32>
    %264 = tpu.matmul %263, %9, %cst_73 {dimension_numbers = #tpu.dot_dimension_numbers<[1], [0], [0], [1], [0, 0, 1, 1], [], []>} : vector<16x32xbf16>, vector<32x128xbf16>, vector<16x128xf32> -> vector<16x128xf32>
    %265 = arith.addf %262, %264 : vector<16x128xf32>
    %266 = vector.extract_strided_slice %261 {offsets = [0, 0], sizes = [16, 32], strides = [1, 1]} : vector<16x128xf32> to vector<16x32xf32>
    %267 = arith.negf %266 : vector<16x32xf32>
    %268 = math.exp %267 : vector<16x32xf32>
    %cst_74 = arith.constant 1.000000e+00 : f32
    %269 = vector.broadcast %cst_74 : f32 to vector<16x32xf32>
    %270 = arith.addf %269, %268 : vector<16x32xf32>
    %271 = arith.divf %269, %270 : vector<16x32xf32>
    %272 = vector.extract_strided_slice %261 {offsets = [0, 32], sizes = [16, 32], strides = [1, 1]} : vector<16x128xf32> to vector<16x32xf32>
    %273 = arith.negf %272 : vector<16x32xf32>
    %274 = math.exp %273 : vector<16x32xf32>
    %cst_75 = arith.constant 1.000000e+00 : f32
    %275 = vector.broadcast %cst_75 : f32 to vector<16x32xf32>
    %276 = arith.addf %275, %274 : vector<16x32xf32>
    %277 = arith.divf %275, %276 : vector<16x32xf32>
    %278 = vector.extract_strided_slice %261 {offsets = [0, 64], sizes = [16, 32], strides = [1, 1]} : vector<16x128xf32> to vector<16x32xf32>
    %279 = math.tanh %278 : vector<16x32xf32>
    %280 = vector.extract_strided_slice %261 {offsets = [0, 96], sizes = [16, 32], strides = [1, 1]} : vector<16x128xf32> to vector<16x32xf32>
    %281 = arith.negf %280 : vector<16x32xf32>
    %282 = math.exp %281 : vector<16x32xf32>
    %cst_76 = arith.constant 1.000000e+00 : f32
    %283 = vector.broadcast %cst_76 : f32 to vector<16x32xf32>
    %284 = arith.addf %283, %282 : vector<16x32xf32>
    %285 = arith.divf %283, %284 : vector<16x32xf32>
    %286 = arith.mulf %277, %226 : vector<16x32xf32>
    %287 = arith.mulf %271, %279 : vector<16x32xf32>
    %288 = arith.addf %286, %287 : vector<16x32xf32>
    %289 = math.tanh %288 : vector<16x32xf32>
    %290 = arith.mulf %285, %289 : vector<16x32xf32>
    %291 = vector.extract_strided_slice %265 {offsets = [0, 0], sizes = [16, 32], strides = [1, 1]} : vector<16x128xf32> to vector<16x32xf32>
    %292 = arith.negf %291 : vector<16x32xf32>
    %293 = math.exp %292 : vector<16x32xf32>
    %cst_77 = arith.constant 1.000000e+00 : f32
    %294 = vector.broadcast %cst_77 : f32 to vector<16x32xf32>
    %295 = arith.addf %294, %293 : vector<16x32xf32>
    %296 = arith.divf %294, %295 : vector<16x32xf32>
    %297 = vector.extract_strided_slice %265 {offsets = [0, 32], sizes = [16, 32], strides = [1, 1]} : vector<16x128xf32> to vector<16x32xf32>
    %298 = arith.negf %297 : vector<16x32xf32>
    %299 = math.exp %298 : vector<16x32xf32>
    %cst_78 = arith.constant 1.000000e+00 : f32
    %300 = vector.broadcast %cst_78 : f32 to vector<16x32xf32>
    %301 = arith.addf %300, %299 : vector<16x32xf32>
    %302 = arith.divf %300, %301 : vector<16x32xf32>
    %303 = vector.extract_strided_slice %265 {offsets = [0, 64], sizes = [16, 32], strides = [1, 1]} : vector<16x128xf32> to vector<16x32xf32>
    %304 = math.tanh %303 : vector<16x32xf32>
    %305 = vector.extract_strided_slice %265 {offsets = [0, 96], sizes = [16, 32], strides = [1, 1]} : vector<16x128xf32> to vector<16x32xf32>
    %306 = arith.negf %305 : vector<16x32xf32>
    %307 = math.exp %306 : vector<16x32xf32>
    %cst_79 = arith.constant 1.000000e+00 : f32
    %308 = vector.broadcast %cst_79 : f32 to vector<16x32xf32>
    %309 = arith.addf %308, %307 : vector<16x32xf32>
    %310 = arith.divf %308, %309 : vector<16x32xf32>
    %311 = arith.mulf %302, %251 : vector<16x32xf32>
    %312 = arith.mulf %296, %304 : vector<16x32xf32>
    %313 = arith.addf %311, %312 : vector<16x32xf32>
    %314 = math.tanh %313 : vector<16x32xf32>
    %315 = arith.mulf %310, %314 : vector<16x32xf32>
    %316 = arith.truncf %290 : vector<16x32xf32> to vector<16x32xbf16>
    %c64_80 = arith.constant 64 : index
    %c0_81 = arith.constant 0 : index
    %317 = vector.load %arg13[%c64_80, %c0_81] : memref<128x64xbf16, #tpu.memory_space<vmem>>, vector<16x32xbf16>
    tpu.vector_store %arg13[%c64_80, %c0_81], %316 {strides = array<i32>} : memref<128x64xbf16, #tpu.memory_space<vmem>>, vector<16x32xbf16>,
    %318 = arith.truncf %315 : vector<16x32xf32> to vector<16x32xbf16>
    %c48_82 = arith.constant 48 : index
    %c32_83 = arith.constant 32 : index
    %319 = vector.load %arg13[%c48_82, %c32_83] : memref<128x64xbf16, #tpu.memory_space<vmem>>, vector<16x32xbf16>
    tpu.vector_store %arg13[%c48_82, %c32_83], %318 {strides = array<i32>} : memref<128x64xbf16, #tpu.memory_space<vmem>>, vector<16x32xbf16>,
    %c80_84 = arith.constant 80 : index
    %c0_85 = arith.constant 0 : index
    %320 = vector.load %arg15[%c80_84, %c0_85] : memref<128x256xf32, #tpu.memory_space<vmem>>, vector<16x128xf32>
    %321 = arith.truncf %290 : vector<16x32xf32> to vector<16x32xbf16>
    %cst_86 = arith.constant dense<0.000000e+00> : vector<16x128xf32>
    %322 = tpu.matmul %321, %8, %cst_86 {dimension_numbers = #tpu.dot_dimension_numbers<[1], [0], [0], [1], [0, 0, 1, 1], [], []>} : vector<16x32xbf16>, vector<32x128xbf16>, vector<16x128xf32> -> vector<16x128xf32>
    %323 = arith.addf %320, %322 : vector<16x128xf32>
    %c32_87 = arith.constant 32 : index
    %c128_88 = arith.constant 128 : index
    %324 = vector.load %arg15[%c32_87, %c128_88] : memref<128x256xf32, #tpu.memory_space<vmem>>, vector<16x128xf32>
    %325 = arith.truncf %315 : vector<16x32xf32> to vector<16x32xbf16>
    %cst_89 = arith.constant dense<0.000000e+00> : vector<16x128xf32>
    %326 = tpu.matmul %325, %9, %cst_89 {dimension_numbers = #tpu.dot_dimension_numbers<[1], [0], [0], [1], [0, 0, 1, 1], [], []>} : vector<16x32xbf16>, vector<32x128xbf16>, vector<16x128xf32> -> vector<16x128xf32>
    %327 = arith.addf %324, %326 : vector<16x128xf32>
    %328 = vector.extract_strided_slice %323 {offsets = [0, 0], sizes = [16, 32], strides = [1, 1]} : vector<16x128xf32> to vector<16x32xf32>
    %329 = arith.negf %328 : vector<16x32xf32>
    %330 = math.exp %329 : vector<16x32xf32>
    %cst_90 = arith.constant 1.000000e+00 : f32
    %331 = vector.broadcast %cst_90 : f32 to vector<16x32xf32>
    %332 = arith.addf %331, %330 : vector<16x32xf32>
    %333 = arith.divf %331, %332 : vector<16x32xf32>
    %334 = vector.extract_strided_slice %323 {offsets = [0, 32], sizes = [16, 32], strides = [1, 1]} : vector<16x128xf32> to vector<16x32xf32>
    %335 = arith.negf %334 : vector<16x32xf32>
    %336 = math.exp %335 : vector<16x32xf32>
    %cst_91 = arith.constant 1.000000e+00 : f32
    %337 = vector.broadcast %cst_91 : f32 to vector<16x32xf32>
    %338 = arith.addf %337, %336 : vector<16x32xf32>
    %339 = arith.divf %337, %338 : vector<16x32xf32>
    %340 = vector.extract_strided_slice %323 {offsets = [0, 64], sizes = [16, 32], strides = [1, 1]} : vector<16x128xf32> to vector<16x32xf32>
    %341 = math.tanh %340 : vector<16x32xf32>
    %342 = vector.extract_strided_slice %323 {offsets = [0, 96], sizes = [16, 32], strides = [1, 1]} : vector<16x128xf32> to vector<16x32xf32>
    %343 = arith.negf %342 : vector<16x32xf32>
    %344 = math.exp %343 : vector<16x32xf32>
    %cst_92 = arith.constant 1.000000e+00 : f32
    %345 = vector.broadcast %cst_92 : f32 to vector<16x32xf32>
    %346 = arith.addf %345, %344 : vector<16x32xf32>
    %347 = arith.divf %345, %346 : vector<16x32xf32>
    %348 = arith.mulf %339, %288 : vector<16x32xf32>
    %349 = arith.mulf %333, %341 : vector<16x32xf32>
    %350 = arith.addf %348, %349 : vector<16x32xf32>
    %351 = math.tanh %350 : vector<16x32xf32>
    %352 = arith.mulf %347, %351 : vector<16x32xf32>
    %353 = vector.extract_strided_slice %327 {offsets = [0, 0], sizes = [16, 32], strides = [1, 1]} : vector<16x128xf32> to vector<16x32xf32>
    %354 = arith.negf %353 : vector<16x32xf32>
    %355 = math.exp %354 : vector<16x32xf32>
    %cst_93 = arith.constant 1.000000e+00 : f32
    %356 = vector.broadcast %cst_93 : f32 to vector<16x32xf32>
    %357 = arith.addf %356, %355 : vector<16x32xf32>
    %358 = arith.divf %356, %357 : vector<16x32xf32>
    %359 = vector.extract_strided_slice %327 {offsets = [0, 32], sizes = [16, 32], strides = [1, 1]} : vector<16x128xf32> to vector<16x32xf32>
    %360 = arith.negf %359 : vector<16x32xf32>
    %361 = math.exp %360 : vector<16x32xf32>
    %cst_94 = arith.constant 1.000000e+00 : f32
    %362 = vector.broadcast %cst_94 : f32 to vector<16x32xf32>
    %363 = arith.addf %362, %361 : vector<16x32xf32>
    %364 = arith.divf %362, %363 : vector<16x32xf32>
    %365 = vector.extract_strided_slice %327 {offsets = [0, 64], sizes = [16, 32], strides = [1, 1]} : vector<16x128xf32> to vector<16x32xf32>
    %366 = math.tanh %365 : vector<16x32xf32>
    %367 = vector.extract_strided_slice %327 {offsets = [0, 96], sizes = [16, 32], strides = [1, 1]} : vector<16x128xf32> to vector<16x32xf32>
    %368 = arith.negf %367 : vector<16x32xf32>
    %369 = math.exp %368 : vector<16x32xf32>
    %cst_95 = arith.constant 1.000000e+00 : f32
    %370 = vector.broadcast %cst_95 : f32 to vector<16x32xf32>
    %371 = arith.addf %370, %369 : vector<16x32xf32>
    %372 = arith.divf %370, %371 : vector<16x32xf32>
    %373 = arith.mulf %364, %313 : vector<16x32xf32>
    %374 = arith.mulf %358, %366 : vector<16x32xf32>
    %375 = arith.addf %373, %374 : vector<16x32xf32>
    %376 = math.tanh %375 : vector<16x32xf32>
    %377 = arith.mulf %372, %376 : vector<16x32xf32>
    %378 = arith.truncf %352 : vector<16x32xf32> to vector<16x32xbf16>
    %c80_96 = arith.constant 80 : index
    %c0_97 = arith.constant 0 : index
    %379 = vector.load %arg13[%c80_96, %c0_97] : memref<128x64xbf16, #tpu.memory_space<vmem>>, vector<16x32xbf16>
    tpu.vector_store %arg13[%c80_96, %c0_97], %378 {strides = array<i32>} : memref<128x64xbf16, #tpu.memory_space<vmem>>, vector<16x32xbf16>,
    %380 = arith.truncf %377 : vector<16x32xf32> to vector<16x32xbf16>
    %c32_98 = arith.constant 32 : index
    %c32_99 = arith.constant 32 : index
    %381 = vector.load %arg13[%c32_98, %c32_99] : memref<128x64xbf16, #tpu.memory_space<vmem>>, vector<16x32xbf16>
    tpu.vector_store %arg13[%c32_98, %c32_99], %380 {strides = array<i32>} : memref<128x64xbf16, #tpu.memory_space<vmem>>, vector<16x32xbf16>,
    %c96_100 = arith.constant 96 : index
    %c0_101 = arith.constant 0 : index
    %382 = vector.load %arg15[%c96_100, %c0_101] : memref<128x256xf32, #tpu.memory_space<vmem>>, vector<16x128xf32>
    %383 = arith.truncf %352 : vector<16x32xf32> to vector<16x32xbf16>
    %cst_102 = arith.constant dense<0.000000e+00> : vector<16x128xf32>
    %384 = tpu.matmul %383, %8, %cst_102 {dimension_numbers = #tpu.dot_dimension_numbers<[1], [0], [0], [1], [0, 0, 1, 1], [], []>} : vector<16x32xbf16>, vector<32x128xbf16>, vector<16x128xf32> -> vector<16x128xf32>
    %385 = arith.addf %382, %384 : vector<16x128xf32>
    %c16_103 = arith.constant 16 : index
    %c128_104 = arith.constant 128 : index
    %386 = vector.load %arg15[%c16_103, %c128_104] : memref<128x256xf32, #tpu.memory_space<vmem>>, vector<16x128xf32>
    %387 = arith.truncf %377 : vector<16x32xf32> to vector<16x32xbf16>
    %cst_105 = arith.constant dense<0.000000e+00> : vector<16x128xf32>
    %388 = tpu.matmul %387, %9, %cst_105 {dimension_numbers = #tpu.dot_dimension_numbers<[1], [0], [0], [1], [0, 0, 1, 1], [], []>} : vector<16x32xbf16>, vector<32x128xbf16>, vector<16x128xf32> -> vector<16x128xf32>
    %389 = arith.addf %386, %388 : vector<16x128xf32>
    %390 = vector.extract_strided_slice %385 {offsets = [0, 0], sizes = [16, 32], strides = [1, 1]} : vector<16x128xf32> to vector<16x32xf32>
    %391 = arith.negf %390 : vector<16x32xf32>
    %392 = math.exp %391 : vector<16x32xf32>
    %cst_106 = arith.constant 1.000000e+00 : f32
    %393 = vector.broadcast %cst_106 : f32 to vector<16x32xf32>
    %394 = arith.addf %393, %392 : vector<16x32xf32>
    %395 = arith.divf %393, %394 : vector<16x32xf32>
    %396 = vector.extract_strided_slice %385 {offsets = [0, 32], sizes = [16, 32], strides = [1, 1]} : vector<16x128xf32> to vector<16x32xf32>
    %397 = arith.negf %396 : vector<16x32xf32>
    %398 = math.exp %397 : vector<16x32xf32>
    %cst_107 = arith.constant 1.000000e+00 : f32
    %399 = vector.broadcast %cst_107 : f32 to vector<16x32xf32>
    %400 = arith.addf %399, %398 : vector<16x32xf32>
    %401 = arith.divf %399, %400 : vector<16x32xf32>
    %402 = vector.extract_strided_slice %385 {offsets = [0, 64], sizes = [16, 32], strides = [1, 1]} : vector<16x128xf32> to vector<16x32xf32>
    %403 = math.tanh %402 : vector<16x32xf32>
    %404 = vector.extract_strided_slice %385 {offsets = [0, 96], sizes = [16, 32], strides = [1, 1]} : vector<16x128xf32> to vector<16x32xf32>
    %405 = arith.negf %404 : vector<16x32xf32>
    %406 = math.exp %405 : vector<16x32xf32>
    %cst_108 = arith.constant 1.000000e+00 : f32
    %407 = vector.broadcast %cst_108 : f32 to vector<16x32xf32>
    %408 = arith.addf %407, %406 : vector<16x32xf32>
    %409 = arith.divf %407, %408 : vector<16x32xf32>
    %410 = arith.mulf %401, %350 : vector<16x32xf32>
    %411 = arith.mulf %395, %403 : vector<16x32xf32>
    %412 = arith.addf %410, %411 : vector<16x32xf32>
    %413 = math.tanh %412 : vector<16x32xf32>
    %414 = arith.mulf %409, %413 : vector<16x32xf32>
    %415 = vector.extract_strided_slice %389 {offsets = [0, 0], sizes = [16, 32], strides = [1, 1]} : vector<16x128xf32> to vector<16x32xf32>
    %416 = arith.negf %415 : vector<16x32xf32>
    %417 = math.exp %416 : vector<16x32xf32>
    %cst_109 = arith.constant 1.000000e+00 : f32
    %418 = vector.broadcast %cst_109 : f32 to vector<16x32xf32>
    %419 = arith.addf %418, %417 : vector<16x32xf32>
    %420 = arith.divf %418, %419 : vector<16x32xf32>
    %421 = vector.extract_strided_slice %389 {offsets = [0, 32], sizes = [16, 32], strides = [1, 1]} : vector<16x128xf32> to vector<16x32xf32>
    %422 = arith.negf %421 : vector<16x32xf32>
    %423 = math.exp %422 : vector<16x32xf32>
    %cst_110 = arith.constant 1.000000e+00 : f32
    %424 = vector.broadcast %cst_110 : f32 to vector<16x32xf32>
    %425 = arith.addf %424, %423 : vector<16x32xf32>
    %426 = arith.divf %424, %425 : vector<16x32xf32>
    %427 = vector.extract_strided_slice %389 {offsets = [0, 64], sizes = [16, 32], strides = [1, 1]} : vector<16x128xf32> to vector<16x32xf32>
    %428 = math.tanh %427 : vector<16x32xf32>
    %429 = vector.extract_strided_slice %389 {offsets = [0, 96], sizes = [16, 32], strides = [1, 1]} : vector<16x128xf32> to vector<16x32xf32>
    %430 = arith.negf %429 : vector<16x32xf32>
    %431 = math.exp %430 : vector<16x32xf32>
    %cst_111 = arith.constant 1.000000e+00 : f32
    %432 = vector.broadcast %cst_111 : f32 to vector<16x32xf32>
    %433 = arith.addf %432, %431 : vector<16x32xf32>
    %434 = arith.divf %432, %433 : vector<16x32xf32>
    %435 = arith.mulf %426, %375 : vector<16x32xf32>
    %436 = arith.mulf %420, %428 : vector<16x32xf32>
    %437 = arith.addf %435, %436 : vector<16x32xf32>
    %438 = math.tanh %437 : vector<16x32xf32>
    %439 = arith.mulf %434, %438 : vector<16x32xf32>
    %440 = arith.truncf %414 : vector<16x32xf32> to vector<16x32xbf16>
    %c96_112 = arith.constant 96 : index
    %c0_113 = arith.constant 0 : index
    %441 = vector.load %arg13[%c96_112, %c0_113] : memref<128x64xbf16, #tpu.memory_space<vmem>>, vector<16x32xbf16>
    tpu.vector_store %arg13[%c96_112, %c0_113], %440 {strides = array<i32>} : memref<128x64xbf16, #tpu.memory_space<vmem>>, vector<16x32xbf16>,
    %442 = arith.truncf %439 : vector<16x32xf32> to vector<16x32xbf16>
    %c16_114 = arith.constant 16 : index
    %c32_115 = arith.constant 32 : index
    %443 = vector.load %arg13[%c16_114, %c32_115] : memref<128x64xbf16, #tpu.memory_space<vmem>>, vector<16x32xbf16>
    tpu.vector_store %arg13[%c16_114, %c32_115], %442 {strides = array<i32>} : memref<128x64xbf16, #tpu.memory_space<vmem>>, vector<16x32xbf16>,
    %c112_116 = arith.constant 112 : index
    %c0_117 = arith.constant 0 : index
    %444 = vector.load %arg15[%c112_116, %c0_117] : memref<128x256xf32, #tpu.memory_space<vmem>>, vector<16x128xf32>
    %445 = arith.truncf %414 : vector<16x32xf32> to vector<16x32xbf16>
    %cst_118 = arith.constant dense<0.000000e+00> : vector<16x128xf32>
    %446 = tpu.matmul %445, %8, %cst_118 {dimension_numbers = #tpu.dot_dimension_numbers<[1], [0], [0], [1], [0, 0, 1, 1], [], []>} : vector<16x32xbf16>, vector<32x128xbf16>, vector<16x128xf32> -> vector<16x128xf32>
    %447 = arith.addf %444, %446 : vector<16x128xf32>
    %c0_119 = arith.constant 0 : index
    %c128_120 = arith.constant 128 : index
    %448 = vector.load %arg15[%c0_119, %c128_120] : memref<128x256xf32, #tpu.memory_space<vmem>>, vector<16x128xf32>
    %449 = arith.truncf %439 : vector<16x32xf32> to vector<16x32xbf16>
    %cst_121 = arith.constant dense<0.000000e+00> : vector<16x128xf32>
    %450 = tpu.matmul %449, %9, %cst_121 {dimension_numbers = #tpu.dot_dimension_numbers<[1], [0], [0], [1], [0, 0, 1, 1], [], []>} : vector<16x32xbf16>, vector<32x128xbf16>, vector<16x128xf32> -> vector<16x128xf32>
    %451 = arith.addf %448, %450 : vector<16x128xf32>
    %452 = vector.extract_strided_slice %447 {offsets = [0, 0], sizes = [16, 32], strides = [1, 1]} : vector<16x128xf32> to vector<16x32xf32>
    %453 = arith.negf %452 : vector<16x32xf32>
    %454 = math.exp %453 : vector<16x32xf32>
    %cst_122 = arith.constant 1.000000e+00 : f32
    %455 = vector.broadcast %cst_122 : f32 to vector<16x32xf32>
    %456 = arith.addf %455, %454 : vector<16x32xf32>
    %457 = arith.divf %455, %456 : vector<16x32xf32>
    %458 = vector.extract_strided_slice %447 {offsets = [0, 32], sizes = [16, 32], strides = [1, 1]} : vector<16x128xf32> to vector<16x32xf32>
    %459 = arith.negf %458 : vector<16x32xf32>
    %460 = math.exp %459 : vector<16x32xf32>
    %cst_123 = arith.constant 1.000000e+00 : f32
    %461 = vector.broadcast %cst_123 : f32 to vector<16x32xf32>
    %462 = arith.addf %461, %460 : vector<16x32xf32>
    %463 = arith.divf %461, %462 : vector<16x32xf32>
    %464 = vector.extract_strided_slice %447 {offsets = [0, 64], sizes = [16, 32], strides = [1, 1]} : vector<16x128xf32> to vector<16x32xf32>
    %465 = math.tanh %464 : vector<16x32xf32>
    %466 = vector.extract_strided_slice %447 {offsets = [0, 96], sizes = [16, 32], strides = [1, 1]} : vector<16x128xf32> to vector<16x32xf32>
    %467 = arith.negf %466 : vector<16x32xf32>
    %468 = math.exp %467 : vector<16x32xf32>
    %cst_124 = arith.constant 1.000000e+00 : f32
    %469 = vector.broadcast %cst_124 : f32 to vector<16x32xf32>
    %470 = arith.addf %469, %468 : vector<16x32xf32>
    %471 = arith.divf %469, %470 : vector<16x32xf32>
    %472 = arith.mulf %463, %412 : vector<16x32xf32>
    %473 = arith.mulf %457, %465 : vector<16x32xf32>
    %474 = arith.addf %472, %473 : vector<16x32xf32>
    %475 = math.tanh %474 : vector<16x32xf32>
    %476 = arith.mulf %471, %475 : vector<16x32xf32>
    %477 = vector.extract_strided_slice %451 {offsets = [0, 0], sizes = [16, 32], strides = [1, 1]} : vector<16x128xf32> to vector<16x32xf32>
    %478 = arith.negf %477 : vector<16x32xf32>
    %479 = math.exp %478 : vector<16x32xf32>
    %cst_125 = arith.constant 1.000000e+00 : f32
    %480 = vector.broadcast %cst_125 : f32 to vector<16x32xf32>
    %481 = arith.addf %480, %479 : vector<16x32xf32>
    %482 = arith.divf %480, %481 : vector<16x32xf32>
    %483 = vector.extract_strided_slice %451 {offsets = [0, 32], sizes = [16, 32], strides = [1, 1]} : vector<16x128xf32> to vector<16x32xf32>
    %484 = arith.negf %483 : vector<16x32xf32>
    %485 = math.exp %484 : vector<16x32xf32>
    %cst_126 = arith.constant 1.000000e+00 : f32
    %486 = vector.broadcast %cst_126 : f32 to vector<16x32xf32>
    %487 = arith.addf %486, %485 : vector<16x32xf32>
    %488 = arith.divf %486, %487 : vector<16x32xf32>
    %489 = vector.extract_strided_slice %451 {offsets = [0, 64], sizes = [16, 32], strides = [1, 1]} : vector<16x128xf32> to vector<16x32xf32>
    %490 = math.tanh %489 : vector<16x32xf32>
    %491 = vector.extract_strided_slice %451 {offsets = [0, 96], sizes = [16, 32], strides = [1, 1]} : vector<16x128xf32> to vector<16x32xf32>
    %492 = arith.negf %491 : vector<16x32xf32>
    %493 = math.exp %492 : vector<16x32xf32>
    %cst_127 = arith.constant 1.000000e+00 : f32
    %494 = vector.broadcast %cst_127 : f32 to vector<16x32xf32>
    %495 = arith.addf %494, %493 : vector<16x32xf32>
    %496 = arith.divf %494, %495 : vector<16x32xf32>
    %497 = arith.mulf %488, %437 : vector<16x32xf32>
    %498 = arith.mulf %482, %490 : vector<16x32xf32>
    %499 = arith.addf %497, %498 : vector<16x32xf32>
    %500 = math.tanh %499 : vector<16x32xf32>
    %501 = arith.mulf %496, %500 : vector<16x32xf32>
    %502 = arith.truncf %476 : vector<16x32xf32> to vector<16x32xbf16>
    %c112_128 = arith.constant 112 : index
    %c0_129 = arith.constant 0 : index
    %503 = vector.load %arg13[%c112_128, %c0_129] : memref<128x64xbf16, #tpu.memory_space<vmem>>, vector<16x32xbf16>
    tpu.vector_store %arg13[%c112_128, %c0_129], %502 {strides = array<i32>} : memref<128x64xbf16, #tpu.memory_space<vmem>>, vector<16x32xbf16>,
    %504 = arith.truncf %501 : vector<16x32xf32> to vector<16x32xbf16>
    %c0_130 = arith.constant 0 : index
    %c32_131 = arith.constant 32 : index
    %505 = vector.load %arg13[%c0_130, %c32_131] : memref<128x64xbf16, #tpu.memory_space<vmem>>, vector<16x32xbf16>
    tpu.vector_store %arg13[%c0_130, %c32_131], %504 {strides = array<i32>} : memref<128x64xbf16, #tpu.memory_space<vmem>>, vector<16x32xbf16>,
    %c0_132 = arith.constant 0 : index
    %c0_133 = arith.constant 0 : index
    %506 = vector.load %arg13[%c0_132, %c0_133] : memref<128x64xbf16, #tpu.memory_space<vmem>>, vector<128x64xbf16>
    %c0_134 = arith.constant 0 : index
    %c0_135 = arith.constant 0 : index
    %507 = vector.load %arg6[%c0_134, %c0_135] : memref<64x256xbf16, #tpu.memory_space<vmem>>, vector<64x256xbf16>
    %cst_136 = arith.constant dense<0.000000e+00> : vector<128x256xf32>
    %508 = tpu.matmul %506, %507, %cst_136 {dimension_numbers = #tpu.dot_dimension_numbers<[1], [0], [0], [1], [0, 0, 1, 1], [], []>} : vector<128x64xbf16>, vector<64x256xbf16>, vector<128x256xf32> -> vector<128x256xf32>
    %c0_137 = arith.constant 0 : index
    %c0_138 = arith.constant 0 : index
    %509 = vector.load %arg7[%c0_137, %c0_138] : memref<1x256xf32, #tpu.memory_space<vmem>>, vector<1x256xf32>
    %510 = vector.broadcast %509 : vector<1x256xf32> to vector<128x256xf32>
    %511 = arith.addf %508, %510 : vector<128x256xf32>
    %c0_139 = arith.constant 0 : index
    %c0_140 = arith.constant 0 : index
    %512 = vector.load %arg15[%c0_139, %c0_140] : memref<128x256xf32, #tpu.memory_space<vmem>>, vector<128x256xf32>
    tpu.vector_store %arg15[%c0_139, %c0_140], %511 {strides = array<i32>} : memref<128x256xf32, #tpu.memory_space<vmem>>, vector<128x256xf32>,
    %c0_141 = arith.constant 0 : index
    %c0_142 = arith.constant 0 : index
    %513 = vector.load %arg8[%c0_141, %c0_142] : memref<32x128xbf16, #tpu.memory_space<vmem>>, vector<32x128xbf16>
    %c0_143 = arith.constant 0 : index
    %c0_144 = arith.constant 0 : index
    %514 = vector.load %arg9[%c0_143, %c0_144] : memref<32x128xbf16, #tpu.memory_space<vmem>>, vector<32x128xbf16>
    %c0_145 = arith.constant 0 : index
    %c0_146 = arith.constant 0 : index
    %515 = vector.load %arg15[%c0_145, %c0_146] : memref<128x256xf32, #tpu.memory_space<vmem>>, vector<16x128xf32>
    %516 = arith.truncf %0 : vector<16x32xf32> to vector<16x32xbf16>
    %cst_147 = arith.constant dense<0.000000e+00> : vector<16x128xf32>
    %517 = tpu.matmul %516, %513, %cst_147 {dimension_numbers = #tpu.dot_dimension_numbers<[1], [0], [0], [1], [0, 0, 1, 1], [], []>} : vector<16x32xbf16>, vector<32x128xbf16>, vector<16x128xf32> -> vector<16x128xf32>
    %518 = arith.addf %515, %517 : vector<16x128xf32>
    %c112_148 = arith.constant 112 : index
    %c128_149 = arith.constant 128 : index
    %519 = vector.load %arg15[%c112_148, %c128_149] : memref<128x256xf32, #tpu.memory_space<vmem>>, vector<16x128xf32>
    %520 = arith.truncf %0 : vector<16x32xf32> to vector<16x32xbf16>
    %cst_150 = arith.constant dense<0.000000e+00> : vector<16x128xf32>
    %521 = tpu.matmul %520, %514, %cst_150 {dimension_numbers = #tpu.dot_dimension_numbers<[1], [0], [0], [1], [0, 0, 1, 1], [], []>} : vector<16x32xbf16>, vector<32x128xbf16>, vector<16x128xf32> -> vector<16x128xf32>
    %522 = arith.addf %519, %521 : vector<16x128xf32>
    %523 = vector.extract_strided_slice %518 {offsets = [0, 0], sizes = [16, 32], strides = [1, 1]} : vector<16x128xf32> to vector<16x32xf32>
    %524 = arith.negf %523 : vector<16x32xf32>
    %525 = math.exp %524 : vector<16x32xf32>
    %cst_151 = arith.constant 1.000000e+00 : f32
    %526 = vector.broadcast %cst_151 : f32 to vector<16x32xf32>
    %527 = arith.addf %526, %525 : vector<16x32xf32>
    %528 = arith.divf %526, %527 : vector<16x32xf32>
    %529 = vector.extract_strided_slice %518 {offsets = [0, 32], sizes = [16, 32], strides = [1, 1]} : vector<16x128xf32> to vector<16x32xf32>
    %530 = arith.negf %529 : vector<16x32xf32>
    %531 = math.exp %530 : vector<16x32xf32>
    %cst_152 = arith.constant 1.000000e+00 : f32
    %532 = vector.broadcast %cst_152 : f32 to vector<16x32xf32>
    %533 = arith.addf %532, %531 : vector<16x32xf32>
    %534 = arith.divf %532, %533 : vector<16x32xf32>
    %535 = vector.extract_strided_slice %518 {offsets = [0, 64], sizes = [16, 32], strides = [1, 1]} : vector<16x128xf32> to vector<16x32xf32>
    %536 = math.tanh %535 : vector<16x32xf32>
    %537 = vector.extract_strided_slice %518 {offsets = [0, 96], sizes = [16, 32], strides = [1, 1]} : vector<16x128xf32> to vector<16x32xf32>
    %538 = arith.negf %537 : vector<16x32xf32>
    %539 = math.exp %538 : vector<16x32xf32>
    %cst_153 = arith.constant 1.000000e+00 : f32
    %540 = vector.broadcast %cst_153 : f32 to vector<16x32xf32>
    %541 = arith.addf %540, %539 : vector<16x32xf32>
    %542 = arith.divf %540, %541 : vector<16x32xf32>
    %543 = arith.mulf %534, %0 : vector<16x32xf32>
    %544 = arith.mulf %528, %536 : vector<16x32xf32>
    %545 = arith.addf %543, %544 : vector<16x32xf32>
    %546 = math.tanh %545 : vector<16x32xf32>
    %547 = arith.mulf %542, %546 : vector<16x32xf32>
    %548 = vector.extract_strided_slice %522 {offsets = [0, 0], sizes = [16, 32], strides = [1, 1]} : vector<16x128xf32> to vector<16x32xf32>
    %549 = arith.negf %548 : vector<16x32xf32>
    %550 = math.exp %549 : vector<16x32xf32>
    %cst_154 = arith.constant 1.000000e+00 : f32
    %551 = vector.broadcast %cst_154 : f32 to vector<16x32xf32>
    %552 = arith.addf %551, %550 : vector<16x32xf32>
    %553 = arith.divf %551, %552 : vector<16x32xf32>
    %554 = vector.extract_strided_slice %522 {offsets = [0, 32], sizes = [16, 32], strides = [1, 1]} : vector<16x128xf32> to vector<16x32xf32>
    %555 = arith.negf %554 : vector<16x32xf32>
    %556 = math.exp %555 : vector<16x32xf32>
    %cst_155 = arith.constant 1.000000e+00 : f32
    %557 = vector.broadcast %cst_155 : f32 to vector<16x32xf32>
    %558 = arith.addf %557, %556 : vector<16x32xf32>
    %559 = arith.divf %557, %558 : vector<16x32xf32>
    %560 = vector.extract_strided_slice %522 {offsets = [0, 64], sizes = [16, 32], strides = [1, 1]} : vector<16x128xf32> to vector<16x32xf32>
    %561 = math.tanh %560 : vector<16x32xf32>
    %562 = vector.extract_strided_slice %522 {offsets = [0, 96], sizes = [16, 32], strides = [1, 1]} : vector<16x128xf32> to vector<16x32xf32>
    %563 = arith.negf %562 : vector<16x32xf32>
    %564 = math.exp %563 : vector<16x32xf32>
    %cst_156 = arith.constant 1.000000e+00 : f32
    %565 = vector.broadcast %cst_156 : f32 to vector<16x32xf32>
    %566 = arith.addf %565, %564 : vector<16x32xf32>
    %567 = arith.divf %565, %566 : vector<16x32xf32>
    %568 = arith.mulf %559, %0 : vector<16x32xf32>
    %569 = arith.mulf %553, %561 : vector<16x32xf32>
    %570 = arith.addf %568, %569 : vector<16x32xf32>
    %571 = math.tanh %570 : vector<16x32xf32>
    %572 = arith.mulf %567, %571 : vector<16x32xf32>
    %573 = arith.truncf %547 : vector<16x32xf32> to vector<16x32xbf16>
    %c0_157 = arith.constant 0 : index
    %c0_158 = arith.constant 0 : index
    %574 = vector.load %arg14[%c0_157, %c0_158] : memref<128x64xbf16, #tpu.memory_space<vmem>>, vector<16x32xbf16>
    tpu.vector_store %arg14[%c0_157, %c0_158], %573 {strides = array<i32>} : memref<128x64xbf16, #tpu.memory_space<vmem>>, vector<16x32xbf16>,
    %575 = arith.truncf %572 : vector<16x32xf32> to vector<16x32xbf16>
    %c112_159 = arith.constant 112 : index
    %c32_160 = arith.constant 32 : index
    %576 = vector.load %arg14[%c112_159, %c32_160] : memref<128x64xbf16, #tpu.memory_space<vmem>>, vector<16x32xbf16>
    tpu.vector_store %arg14[%c112_159, %c32_160], %575 {strides = array<i32>} : memref<128x64xbf16, #tpu.memory_space<vmem>>, vector<16x32xbf16>,
    %c16_161 = arith.constant 16 : index
    %c0_162 = arith.constant 0 : index
    %577 = vector.load %arg15[%c16_161, %c0_162] : memref<128x256xf32, #tpu.memory_space<vmem>>, vector<16x128xf32>
    %578 = arith.truncf %547 : vector<16x32xf32> to vector<16x32xbf16>
    %cst_163 = arith.constant dense<0.000000e+00> : vector<16x128xf32>
    %579 = tpu.matmul %578, %513, %cst_163 {dimension_numbers = #tpu.dot_dimension_numbers<[1], [0], [0], [1], [0, 0, 1, 1], [], []>} : vector<16x32xbf16>, vector<32x128xbf16>, vector<16x128xf32> -> vector<16x128xf32>
    %580 = arith.addf %577, %579 : vector<16x128xf32>
    %c96_164 = arith.constant 96 : index
    %c128_165 = arith.constant 128 : index
    %581 = vector.load %arg15[%c96_164, %c128_165] : memref<128x256xf32, #tpu.memory_space<vmem>>, vector<16x128xf32>
    %582 = arith.truncf %572 : vector<16x32xf32> to vector<16x32xbf16>
    %cst_166 = arith.constant dense<0.000000e+00> : vector<16x128xf32>
    %583 = tpu.matmul %582, %514, %cst_166 {dimension_numbers = #tpu.dot_dimension_numbers<[1], [0], [0], [1], [0, 0, 1, 1], [], []>} : vector<16x32xbf16>, vector<32x128xbf16>, vector<16x128xf32> -> vector<16x128xf32>
    %584 = arith.addf %581, %583 : vector<16x128xf32>
    %585 = vector.extract_strided_slice %580 {offsets = [0, 0], sizes = [16, 32], strides = [1, 1]} : vector<16x128xf32> to vector<16x32xf32>
    %586 = arith.negf %585 : vector<16x32xf32>
    %587 = math.exp %586 : vector<16x32xf32>
    %cst_167 = arith.constant 1.000000e+00 : f32
    %588 = vector.broadcast %cst_167 : f32 to vector<16x32xf32>
    %589 = arith.addf %588, %587 : vector<16x32xf32>
    %590 = arith.divf %588, %589 : vector<16x32xf32>
    %591 = vector.extract_strided_slice %580 {offsets = [0, 32], sizes = [16, 32], strides = [1, 1]} : vector<16x128xf32> to vector<16x32xf32>
    %592 = arith.negf %591 : vector<16x32xf32>
    %593 = math.exp %592 : vector<16x32xf32>
    %cst_168 = arith.constant 1.000000e+00 : f32
    %594 = vector.broadcast %cst_168 : f32 to vector<16x32xf32>
    %595 = arith.addf %594, %593 : vector<16x32xf32>
    %596 = arith.divf %594, %595 : vector<16x32xf32>
    %597 = vector.extract_strided_slice %580 {offsets = [0, 64], sizes = [16, 32], strides = [1, 1]} : vector<16x128xf32> to vector<16x32xf32>
    %598 = math.tanh %597 : vector<16x32xf32>
    %599 = vector.extract_strided_slice %580 {offsets = [0, 96], sizes = [16, 32], strides = [1, 1]} : vector<16x128xf32> to vector<16x32xf32>
    %600 = arith.negf %599 : vector<16x32xf32>
    %601 = math.exp %600 : vector<16x32xf32>
    %cst_169 = arith.constant 1.000000e+00 : f32
    %602 = vector.broadcast %cst_169 : f32 to vector<16x32xf32>
    %603 = arith.addf %602, %601 : vector<16x32xf32>
    %604 = arith.divf %602, %603 : vector<16x32xf32>
    %605 = arith.mulf %596, %545 : vector<16x32xf32>
    %606 = arith.mulf %590, %598 : vector<16x32xf32>
    %607 = arith.addf %605, %606 : vector<16x32xf32>
    %608 = math.tanh %607 : vector<16x32xf32>
    %609 = arith.mulf %604, %608 : vector<16x32xf32>
    %610 = vector.extract_strided_slice %584 {offsets = [0, 0], sizes = [16, 32], strides = [1, 1]} : vector<16x128xf32> to vector<16x32xf32>
    %611 = arith.negf %610 : vector<16x32xf32>
    %612 = math.exp %611 : vector<16x32xf32>
    %cst_170 = arith.constant 1.000000e+00 : f32
    %613 = vector.broadcast %cst_170 : f32 to vector<16x32xf32>
    %614 = arith.addf %613, %612 : vector<16x32xf32>
    %615 = arith.divf %613, %614 : vector<16x32xf32>
    %616 = vector.extract_strided_slice %584 {offsets = [0, 32], sizes = [16, 32], strides = [1, 1]} : vector<16x128xf32> to vector<16x32xf32>
    %617 = arith.negf %616 : vector<16x32xf32>
    %618 = math.exp %617 : vector<16x32xf32>
    %cst_171 = arith.constant 1.000000e+00 : f32
    %619 = vector.broadcast %cst_171 : f32 to vector<16x32xf32>
    %620 = arith.addf %619, %618 : vector<16x32xf32>
    %621 = arith.divf %619, %620 : vector<16x32xf32>
    %622 = vector.extract_strided_slice %584 {offsets = [0, 64], sizes = [16, 32], strides = [1, 1]} : vector<16x128xf32> to vector<16x32xf32>
    %623 = math.tanh %622 : vector<16x32xf32>
    %624 = vector.extract_strided_slice %584 {offsets = [0, 96], sizes = [16, 32], strides = [1, 1]} : vector<16x128xf32> to vector<16x32xf32>
    %625 = arith.negf %624 : vector<16x32xf32>
    %626 = math.exp %625 : vector<16x32xf32>
    %cst_172 = arith.constant 1.000000e+00 : f32
    %627 = vector.broadcast %cst_172 : f32 to vector<16x32xf32>
    %628 = arith.addf %627, %626 : vector<16x32xf32>
    %629 = arith.divf %627, %628 : vector<16x32xf32>
    %630 = arith.mulf %621, %570 : vector<16x32xf32>
    %631 = arith.mulf %615, %623 : vector<16x32xf32>
    %632 = arith.addf %630, %631 : vector<16x32xf32>
    %633 = math.tanh %632 : vector<16x32xf32>
    %634 = arith.mulf %629, %633 : vector<16x32xf32>
    %635 = arith.truncf %609 : vector<16x32xf32> to vector<16x32xbf16>
    %c16_173 = arith.constant 16 : index
    %c0_174 = arith.constant 0 : index
    %636 = vector.load %arg14[%c16_173, %c0_174] : memref<128x64xbf16, #tpu.memory_space<vmem>>, vector<16x32xbf16>
    tpu.vector_store %arg14[%c16_173, %c0_174], %635 {strides = array<i32>} : memref<128x64xbf16, #tpu.memory_space<vmem>>, vector<16x32xbf16>,
    %637 = arith.truncf %634 : vector<16x32xf32> to vector<16x32xbf16>
    %c96_175 = arith.constant 96 : index
    %c32_176 = arith.constant 32 : index
    %638 = vector.load %arg14[%c96_175, %c32_176] : memref<128x64xbf16, #tpu.memory_space<vmem>>, vector<16x32xbf16>
    tpu.vector_store %arg14[%c96_175, %c32_176], %637 {strides = array<i32>} : memref<128x64xbf16, #tpu.memory_space<vmem>>, vector<16x32xbf16>,
    %c32_177 = arith.constant 32 : index
    %c0_178 = arith.constant 0 : index
    %639 = vector.load %arg15[%c32_177, %c0_178] : memref<128x256xf32, #tpu.memory_space<vmem>>, vector<16x128xf32>
    %640 = arith.truncf %609 : vector<16x32xf32> to vector<16x32xbf16>
    %cst_179 = arith.constant dense<0.000000e+00> : vector<16x128xf32>
    %641 = tpu.matmul %640, %513, %cst_179 {dimension_numbers = #tpu.dot_dimension_numbers<[1], [0], [0], [1], [0, 0, 1, 1], [], []>} : vector<16x32xbf16>, vector<32x128xbf16>, vector<16x128xf32> -> vector<16x128xf32>
    %642 = arith.addf %639, %641 : vector<16x128xf32>
    %c80_180 = arith.constant 80 : index
    %c128_181 = arith.constant 128 : index
    %643 = vector.load %arg15[%c80_180, %c128_181] : memref<128x256xf32, #tpu.memory_space<vmem>>, vector<16x128xf32>
    %644 = arith.truncf %634 : vector<16x32xf32> to vector<16x32xbf16>
    %cst_182 = arith.constant dense<0.000000e+00> : vector<16x128xf32>
    %645 = tpu.matmul %644, %514, %cst_182 {dimension_numbers = #tpu.dot_dimension_numbers<[1], [0], [0], [1], [0, 0, 1, 1], [], []>} : vector<16x32xbf16>, vector<32x128xbf16>, vector<16x128xf32> -> vector<16x128xf32>
    %646 = arith.addf %643, %645 : vector<16x128xf32>
    %647 = vector.extract_strided_slice %642 {offsets = [0, 0], sizes = [16, 32], strides = [1, 1]} : vector<16x128xf32> to vector<16x32xf32>
    %648 = arith.negf %647 : vector<16x32xf32>
    %649 = math.exp %648 : vector<16x32xf32>
    %cst_183 = arith.constant 1.000000e+00 : f32
    %650 = vector.broadcast %cst_183 : f32 to vector<16x32xf32>
    %651 = arith.addf %650, %649 : vector<16x32xf32>
    %652 = arith.divf %650, %651 : vector<16x32xf32>
    %653 = vector.extract_strided_slice %642 {offsets = [0, 32], sizes = [16, 32], strides = [1, 1]} : vector<16x128xf32> to vector<16x32xf32>
    %654 = arith.negf %653 : vector<16x32xf32>
    %655 = math.exp %654 : vector<16x32xf32>
    %cst_184 = arith.constant 1.000000e+00 : f32
    %656 = vector.broadcast %cst_184 : f32 to vector<16x32xf32>
    %657 = arith.addf %656, %655 : vector<16x32xf32>
    %658 = arith.divf %656, %657 : vector<16x32xf32>
    %659 = vector.extract_strided_slice %642 {offsets = [0, 64], sizes = [16, 32], strides = [1, 1]} : vector<16x128xf32> to vector<16x32xf32>
    %660 = math.tanh %659 : vector<16x32xf32>
    %661 = vector.extract_strided_slice %642 {offsets = [0, 96], sizes = [16, 32], strides = [1, 1]} : vector<16x128xf32> to vector<16x32xf32>
    %662 = arith.negf %661 : vector<16x32xf32>
    %663 = math.exp %662 : vector<16x32xf32>
    %cst_185 = arith.constant 1.000000e+00 : f32
    %664 = vector.broadcast %cst_185 : f32 to vector<16x32xf32>
    %665 = arith.addf %664, %663 : vector<16x32xf32>
    %666 = arith.divf %664, %665 : vector<16x32xf32>
    %667 = arith.mulf %658, %607 : vector<16x32xf32>
    %668 = arith.mulf %652, %660 : vector<16x32xf32>
    %669 = arith.addf %667, %668 : vector<16x32xf32>
    %670 = math.tanh %669 : vector<16x32xf32>
    %671 = arith.mulf %666, %670 : vector<16x32xf32>
    %672 = vector.extract_strided_slice %646 {offsets = [0, 0], sizes = [16, 32], strides = [1, 1]} : vector<16x128xf32> to vector<16x32xf32>
    %673 = arith.negf %672 : vector<16x32xf32>
    %674 = math.exp %673 : vector<16x32xf32>
    %cst_186 = arith.constant 1.000000e+00 : f32
    %675 = vector.broadcast %cst_186 : f32 to vector<16x32xf32>
    %676 = arith.addf %675, %674 : vector<16x32xf32>
    %677 = arith.divf %675, %676 : vector<16x32xf32>
    %678 = vector.extract_strided_slice %646 {offsets = [0, 32], sizes = [16, 32], strides = [1, 1]} : vector<16x128xf32> to vector<16x32xf32>
    %679 = arith.negf %678 : vector<16x32xf32>
    %680 = math.exp %679 : vector<16x32xf32>
    %cst_187 = arith.constant 1.000000e+00 : f32
    %681 = vector.broadcast %cst_187 : f32 to vector<16x32xf32>
    %682 = arith.addf %681, %680 : vector<16x32xf32>
    %683 = arith.divf %681, %682 : vector<16x32xf32>
    %684 = vector.extract_strided_slice %646 {offsets = [0, 64], sizes = [16, 32], strides = [1, 1]} : vector<16x128xf32> to vector<16x32xf32>
    %685 = math.tanh %684 : vector<16x32xf32>
    %686 = vector.extract_strided_slice %646 {offsets = [0, 96], sizes = [16, 32], strides = [1, 1]} : vector<16x128xf32> to vector<16x32xf32>
    %687 = arith.negf %686 : vector<16x32xf32>
    %688 = math.exp %687 : vector<16x32xf32>
    %cst_188 = arith.constant 1.000000e+00 : f32
    %689 = vector.broadcast %cst_188 : f32 to vector<16x32xf32>
    %690 = arith.addf %689, %688 : vector<16x32xf32>
    %691 = arith.divf %689, %690 : vector<16x32xf32>
    %692 = arith.mulf %683, %632 : vector<16x32xf32>
    %693 = arith.mulf %677, %685 : vector<16x32xf32>
    %694 = arith.addf %692, %693 : vector<16x32xf32>
    %695 = math.tanh %694 : vector<16x32xf32>
    %696 = arith.mulf %691, %695 : vector<16x32xf32>
    %697 = arith.truncf %671 : vector<16x32xf32> to vector<16x32xbf16>
    %c32_189 = arith.constant 32 : index
    %c0_190 = arith.constant 0 : index
    %698 = vector.load %arg14[%c32_189, %c0_190] : memref<128x64xbf16, #tpu.memory_space<vmem>>, vector<16x32xbf16>
    tpu.vector_store %arg14[%c32_189, %c0_190], %697 {strides = array<i32>} : memref<128x64xbf16, #tpu.memory_space<vmem>>, vector<16x32xbf16>,
    %699 = arith.truncf %696 : vector<16x32xf32> to vector<16x32xbf16>
    %c80_191 = arith.constant 80 : index
    %c32_192 = arith.constant 32 : index
    %700 = vector.load %arg14[%c80_191, %c32_192] : memref<128x64xbf16, #tpu.memory_space<vmem>>, vector<16x32xbf16>
    tpu.vector_store %arg14[%c80_191, %c32_192], %699 {strides = array<i32>} : memref<128x64xbf16, #tpu.memory_space<vmem>>, vector<16x32xbf16>,
    %c48_193 = arith.constant 48 : index
    %c0_194 = arith.constant 0 : index
    %701 = vector.load %arg15[%c48_193, %c0_194] : memref<128x256xf32, #tpu.memory_space<vmem>>, vector<16x128xf32>
    %702 = arith.truncf %671 : vector<16x32xf32> to vector<16x32xbf16>
    %cst_195 = arith.constant dense<0.000000e+00> : vector<16x128xf32>
    %703 = tpu.matmul %702, %513, %cst_195 {dimension_numbers = #tpu.dot_dimension_numbers<[1], [0], [0], [1], [0, 0, 1, 1], [], []>} : vector<16x32xbf16>, vector<32x128xbf16>, vector<16x128xf32> -> vector<16x128xf32>
    %704 = arith.addf %701, %703 : vector<16x128xf32>
    %c64_196 = arith.constant 64 : index
    %c128_197 = arith.constant 128 : index
    %705 = vector.load %arg15[%c64_196, %c128_197] : memref<128x256xf32, #tpu.memory_space<vmem>>, vector<16x128xf32>
    %706 = arith.truncf %696 : vector<16x32xf32> to vector<16x32xbf16>
    %cst_198 = arith.constant dense<0.000000e+00> : vector<16x128xf32>
    %707 = tpu.matmul %706, %514, %cst_198 {dimension_numbers = #tpu.dot_dimension_numbers<[1], [0], [0], [1], [0, 0, 1, 1], [], []>} : vector<16x32xbf16>, vector<32x128xbf16>, vector<16x128xf32> -> vector<16x128xf32>
    %708 = arith.addf %705, %707 : vector<16x128xf32>
    %709 = vector.extract_strided_slice %704 {offsets = [0, 0], sizes = [16, 32], strides = [1, 1]} : vector<16x128xf32> to vector<16x32xf32>
    %710 = arith.negf %709 : vector<16x32xf32>
    %711 = math.exp %710 : vector<16x32xf32>
    %cst_199 = arith.constant 1.000000e+00 : f32
    %712 = vector.broadcast %cst_199 : f32 to vector<16x32xf32>
    %713 = arith.addf %712, %711 : vector<16x32xf32>
    %714 = arith.divf %712, %713 : vector<16x32xf32>
    %715 = vector.extract_strided_slice %704 {offsets = [0, 32], sizes = [16, 32], strides = [1, 1]} : vector<16x128xf32> to vector<16x32xf32>
    %716 = arith.negf %715 : vector<16x32xf32>
    %717 = math.exp %716 : vector<16x32xf32>
    %cst_200 = arith.constant 1.000000e+00 : f32
    %718 = vector.broadcast %cst_200 : f32 to vector<16x32xf32>
    %719 = arith.addf %718, %717 : vector<16x32xf32>
    %720 = arith.divf %718, %719 : vector<16x32xf32>
    %721 = vector.extract_strided_slice %704 {offsets = [0, 64], sizes = [16, 32], strides = [1, 1]} : vector<16x128xf32> to vector<16x32xf32>
    %722 = math.tanh %721 : vector<16x32xf32>
    %723 = vector.extract_strided_slice %704 {offsets = [0, 96], sizes = [16, 32], strides = [1, 1]} : vector<16x128xf32> to vector<16x32xf32>
    %724 = arith.negf %723 : vector<16x32xf32>
    %725 = math.exp %724 : vector<16x32xf32>
    %cst_201 = arith.constant 1.000000e+00 : f32
    %726 = vector.broadcast %cst_201 : f32 to vector<16x32xf32>
    %727 = arith.addf %726, %725 : vector<16x32xf32>
    %728 = arith.divf %726, %727 : vector<16x32xf32>
    %729 = arith.mulf %720, %669 : vector<16x32xf32>
    %730 = arith.mulf %714, %722 : vector<16x32xf32>
    %731 = arith.addf %729, %730 : vector<16x32xf32>
    %732 = math.tanh %731 : vector<16x32xf32>
    %733 = arith.mulf %728, %732 : vector<16x32xf32>
    %734 = vector.extract_strided_slice %708 {offsets = [0, 0], sizes = [16, 32], strides = [1, 1]} : vector<16x128xf32> to vector<16x32xf32>
    %735 = arith.negf %734 : vector<16x32xf32>
    %736 = math.exp %735 : vector<16x32xf32>
    %cst_202 = arith.constant 1.000000e+00 : f32
    %737 = vector.broadcast %cst_202 : f32 to vector<16x32xf32>
    %738 = arith.addf %737, %736 : vector<16x32xf32>
    %739 = arith.divf %737, %738 : vector<16x32xf32>
    %740 = vector.extract_strided_slice %708 {offsets = [0, 32], sizes = [16, 32], strides = [1, 1]} : vector<16x128xf32> to vector<16x32xf32>
    %741 = arith.negf %740 : vector<16x32xf32>
    %742 = math.exp %741 : vector<16x32xf32>
    %cst_203 = arith.constant 1.000000e+00 : f32
    %743 = vector.broadcast %cst_203 : f32 to vector<16x32xf32>
    %744 = arith.addf %743, %742 : vector<16x32xf32>
    %745 = arith.divf %743, %744 : vector<16x32xf32>
    %746 = vector.extract_strided_slice %708 {offsets = [0, 64], sizes = [16, 32], strides = [1, 1]} : vector<16x128xf32> to vector<16x32xf32>
    %747 = math.tanh %746 : vector<16x32xf32>
    %748 = vector.extract_strided_slice %708 {offsets = [0, 96], sizes = [16, 32], strides = [1, 1]} : vector<16x128xf32> to vector<16x32xf32>
    %749 = arith.negf %748 : vector<16x32xf32>
    %750 = math.exp %749 : vector<16x32xf32>
    %cst_204 = arith.constant 1.000000e+00 : f32
    %751 = vector.broadcast %cst_204 : f32 to vector<16x32xf32>
    %752 = arith.addf %751, %750 : vector<16x32xf32>
    %753 = arith.divf %751, %752 : vector<16x32xf32>
    %754 = arith.mulf %745, %694 : vector<16x32xf32>
    %755 = arith.mulf %739, %747 : vector<16x32xf32>
    %756 = arith.addf %754, %755 : vector<16x32xf32>
    %757 = math.tanh %756 : vector<16x32xf32>
    %758 = arith.mulf %753, %757 : vector<16x32xf32>
    %759 = arith.truncf %733 : vector<16x32xf32> to vector<16x32xbf16>
    %c48_205 = arith.constant 48 : index
    %c0_206 = arith.constant 0 : index
    %760 = vector.load %arg14[%c48_205, %c0_206] : memref<128x64xbf16, #tpu.memory_space<vmem>>, vector<16x32xbf16>
    tpu.vector_store %arg14[%c48_205, %c0_206], %759 {strides = array<i32>} : memref<128x64xbf16, #tpu.memory_space<vmem>>, vector<16x32xbf16>,
    %761 = arith.truncf %758 : vector<16x32xf32> to vector<16x32xbf16>
    %c64_207 = arith.constant 64 : index
    %c32_208 = arith.constant 32 : index
    %762 = vector.load %arg14[%c64_207, %c32_208] : memref<128x64xbf16, #tpu.memory_space<vmem>>, vector<16x32xbf16>
    tpu.vector_store %arg14[%c64_207, %c32_208], %761 {strides = array<i32>} : memref<128x64xbf16, #tpu.memory_space<vmem>>, vector<16x32xbf16>,
    %c64_209 = arith.constant 64 : index
    %c0_210 = arith.constant 0 : index
    %763 = vector.load %arg15[%c64_209, %c0_210] : memref<128x256xf32, #tpu.memory_space<vmem>>, vector<16x128xf32>
    %764 = arith.truncf %733 : vector<16x32xf32> to vector<16x32xbf16>
    %cst_211 = arith.constant dense<0.000000e+00> : vector<16x128xf32>
    %765 = tpu.matmul %764, %513, %cst_211 {dimension_numbers = #tpu.dot_dimension_numbers<[1], [0], [0], [1], [0, 0, 1, 1], [], []>} : vector<16x32xbf16>, vector<32x128xbf16>, vector<16x128xf32> -> vector<16x128xf32>
    %766 = arith.addf %763, %765 : vector<16x128xf32>
    %c48_212 = arith.constant 48 : index
    %c128_213 = arith.constant 128 : index
    %767 = vector.load %arg15[%c48_212, %c128_213] : memref<128x256xf32, #tpu.memory_space<vmem>>, vector<16x128xf32>
    %768 = arith.truncf %758 : vector<16x32xf32> to vector<16x32xbf16>
    %cst_214 = arith.constant dense<0.000000e+00> : vector<16x128xf32>
    %769 = tpu.matmul %768, %514, %cst_214 {dimension_numbers = #tpu.dot_dimension_numbers<[1], [0], [0], [1], [0, 0, 1, 1], [], []>} : vector<16x32xbf16>, vector<32x128xbf16>, vector<16x128xf32> -> vector<16x128xf32>
    %770 = arith.addf %767, %769 : vector<16x128xf32>
    %771 = vector.extract_strided_slice %766 {offsets = [0, 0], sizes = [16, 32], strides = [1, 1]} : vector<16x128xf32> to vector<16x32xf32>
    %772 = arith.negf %771 : vector<16x32xf32>
    %773 = math.exp %772 : vector<16x32xf32>
    %cst_215 = arith.constant 1.000000e+00 : f32
    %774 = vector.broadcast %cst_215 : f32 to vector<16x32xf32>
    %775 = arith.addf %774, %773 : vector<16x32xf32>
    %776 = arith.divf %774, %775 : vector<16x32xf32>
    %777 = vector.extract_strided_slice %766 {offsets = [0, 32], sizes = [16, 32], strides = [1, 1]} : vector<16x128xf32> to vector<16x32xf32>
    %778 = arith.negf %777 : vector<16x32xf32>
    %779 = math.exp %778 : vector<16x32xf32>
    %cst_216 = arith.constant 1.000000e+00 : f32
    %780 = vector.broadcast %cst_216 : f32 to vector<16x32xf32>
    %781 = arith.addf %780, %779 : vector<16x32xf32>
    %782 = arith.divf %780, %781 : vector<16x32xf32>
    %783 = vector.extract_strided_slice %766 {offsets = [0, 64], sizes = [16, 32], strides = [1, 1]} : vector<16x128xf32> to vector<16x32xf32>
    %784 = math.tanh %783 : vector<16x32xf32>
    %785 = vector.extract_strided_slice %766 {offsets = [0, 96], sizes = [16, 32], strides = [1, 1]} : vector<16x128xf32> to vector<16x32xf32>
    %786 = arith.negf %785 : vector<16x32xf32>
    %787 = math.exp %786 : vector<16x32xf32>
    %cst_217 = arith.constant 1.000000e+00 : f32
    %788 = vector.broadcast %cst_217 : f32 to vector<16x32xf32>
    %789 = arith.addf %788, %787 : vector<16x32xf32>
    %790 = arith.divf %788, %789 : vector<16x32xf32>
    %791 = arith.mulf %782, %731 : vector<16x32xf32>
    %792 = arith.mulf %776, %784 : vector<16x32xf32>
    %793 = arith.addf %791, %792 : vector<16x32xf32>
    %794 = math.tanh %793 : vector<16x32xf32>
    %795 = arith.mulf %790, %794 : vector<16x32xf32>
    %796 = vector.extract_strided_slice %770 {offsets = [0, 0], sizes = [16, 32], strides = [1, 1]} : vector<16x128xf32> to vector<16x32xf32>
    %797 = arith.negf %796 : vector<16x32xf32>
    %798 = math.exp %797 : vector<16x32xf32>
    %cst_218 = arith.constant 1.000000e+00 : f32
    %799 = vector.broadcast %cst_218 : f32 to vector<16x32xf32>
    %800 = arith.addf %799, %798 : vector<16x32xf32>
    %801 = arith.divf %799, %800 : vector<16x32xf32>
    %802 = vector.extract_strided_slice %770 {offsets = [0, 32], sizes = [16, 32], strides = [1, 1]} : vector<16x128xf32> to vector<16x32xf32>
    %803 = arith.negf %802 : vector<16x32xf32>
    %804 = math.exp %803 : vector<16x32xf32>
    %cst_219 = arith.constant 1.000000e+00 : f32
    %805 = vector.broadcast %cst_219 : f32 to vector<16x32xf32>
    %806 = arith.addf %805, %804 : vector<16x32xf32>
    %807 = arith.divf %805, %806 : vector<16x32xf32>
    %808 = vector.extract_strided_slice %770 {offsets = [0, 64], sizes = [16, 32], strides = [1, 1]} : vector<16x128xf32> to vector<16x32xf32>
    %809 = math.tanh %808 : vector<16x32xf32>
    %810 = vector.extract_strided_slice %770 {offsets = [0, 96], sizes = [16, 32], strides = [1, 1]} : vector<16x128xf32> to vector<16x32xf32>
    %811 = arith.negf %810 : vector<16x32xf32>
    %812 = math.exp %811 : vector<16x32xf32>
    %cst_220 = arith.constant 1.000000e+00 : f32
    %813 = vector.broadcast %cst_220 : f32 to vector<16x32xf32>
    %814 = arith.addf %813, %812 : vector<16x32xf32>
    %815 = arith.divf %813, %814 : vector<16x32xf32>
    %816 = arith.mulf %807, %756 : vector<16x32xf32>
    %817 = arith.mulf %801, %809 : vector<16x32xf32>
    %818 = arith.addf %816, %817 : vector<16x32xf32>
    %819 = math.tanh %818 : vector<16x32xf32>
    %820 = arith.mulf %815, %819 : vector<16x32xf32>
    %821 = arith.truncf %795 : vector<16x32xf32> to vector<16x32xbf16>
    %c64_221 = arith.constant 64 : index
    %c0_222 = arith.constant 0 : index
    %822 = vector.load %arg14[%c64_221, %c0_222] : memref<128x64xbf16, #tpu.memory_space<vmem>>, vector<16x32xbf16>
    tpu.vector_store %arg14[%c64_221, %c0_222], %821 {strides = array<i32>} : memref<128x64xbf16, #tpu.memory_space<vmem>>, vector<16x32xbf16>,
    %823 = arith.truncf %820 : vector<16x32xf32> to vector<16x32xbf16>
    %c48_223 = arith.constant 48 : index
    %c32_224 = arith.constant 32 : index
    %824 = vector.load %arg14[%c48_223, %c32_224] : memref<128x64xbf16, #tpu.memory_space<vmem>>, vector<16x32xbf16>
    tpu.vector_store %arg14[%c48_223, %c32_224], %823 {strides = array<i32>} : memref<128x64xbf16, #tpu.memory_space<vmem>>, vector<16x32xbf16>,
    %c80_225 = arith.constant 80 : index
    %c0_226 = arith.constant 0 : index
    %825 = vector.load %arg15[%c80_225, %c0_226] : memref<128x256xf32, #tpu.memory_space<vmem>>, vector<16x128xf32>
    %826 = arith.truncf %795 : vector<16x32xf32> to vector<16x32xbf16>
    %cst_227 = arith.constant dense<0.000000e+00> : vector<16x128xf32>
    %827 = tpu.matmul %826, %513, %cst_227 {dimension_numbers = #tpu.dot_dimension_numbers<[1], [0], [0], [1], [0, 0, 1, 1], [], []>} : vector<16x32xbf16>, vector<32x128xbf16>, vector<16x128xf32> -> vector<16x128xf32>
    %828 = arith.addf %825, %827 : vector<16x128xf32>
    %c32_228 = arith.constant 32 : index
    %c128_229 = arith.constant 128 : index
    %829 = vector.load %arg15[%c32_228, %c128_229] : memref<128x256xf32, #tpu.memory_space<vmem>>, vector<16x128xf32>
    %830 = arith.truncf %820 : vector<16x32xf32> to vector<16x32xbf16>
    %cst_230 = arith.constant dense<0.000000e+00> : vector<16x128xf32>
    %831 = tpu.matmul %830, %514, %cst_230 {dimension_numbers = #tpu.dot_dimension_numbers<[1], [0], [0], [1], [0, 0, 1, 1], [], []>} : vector<16x32xbf16>, vector<32x128xbf16>, vector<16x128xf32> -> vector<16x128xf32>
    %832 = arith.addf %829, %831 : vector<16x128xf32>
    %833 = vector.extract_strided_slice %828 {offsets = [0, 0], sizes = [16, 32], strides = [1, 1]} : vector<16x128xf32> to vector<16x32xf32>
    %834 = arith.negf %833 : vector<16x32xf32>
    %835 = math.exp %834 : vector<16x32xf32>
    %cst_231 = arith.constant 1.000000e+00 : f32
    %836 = vector.broadcast %cst_231 : f32 to vector<16x32xf32>
    %837 = arith.addf %836, %835 : vector<16x32xf32>
    %838 = arith.divf %836, %837 : vector<16x32xf32>
    %839 = vector.extract_strided_slice %828 {offsets = [0, 32], sizes = [16, 32], strides = [1, 1]} : vector<16x128xf32> to vector<16x32xf32>
    %840 = arith.negf %839 : vector<16x32xf32>
    %841 = math.exp %840 : vector<16x32xf32>
    %cst_232 = arith.constant 1.000000e+00 : f32
    %842 = vector.broadcast %cst_232 : f32 to vector<16x32xf32>
    %843 = arith.addf %842, %841 : vector<16x32xf32>
    %844 = arith.divf %842, %843 : vector<16x32xf32>
    %845 = vector.extract_strided_slice %828 {offsets = [0, 64], sizes = [16, 32], strides = [1, 1]} : vector<16x128xf32> to vector<16x32xf32>
    %846 = math.tanh %845 : vector<16x32xf32>
    %847 = vector.extract_strided_slice %828 {offsets = [0, 96], sizes = [16, 32], strides = [1, 1]} : vector<16x128xf32> to vector<16x32xf32>
    %848 = arith.negf %847 : vector<16x32xf32>
    %849 = math.exp %848 : vector<16x32xf32>
    %cst_233 = arith.constant 1.000000e+00 : f32
    %850 = vector.broadcast %cst_233 : f32 to vector<16x32xf32>
    %851 = arith.addf %850, %849 : vector<16x32xf32>
    %852 = arith.divf %850, %851 : vector<16x32xf32>
    %853 = arith.mulf %844, %793 : vector<16x32xf32>
    %854 = arith.mulf %838, %846 : vector<16x32xf32>
    %855 = arith.addf %853, %854 : vector<16x32xf32>
    %856 = math.tanh %855 : vector<16x32xf32>
    %857 = arith.mulf %852, %856 : vector<16x32xf32>
    %858 = vector.extract_strided_slice %832 {offsets = [0, 0], sizes = [16, 32], strides = [1, 1]} : vector<16x128xf32> to vector<16x32xf32>
    %859 = arith.negf %858 : vector<16x32xf32>
    %860 = math.exp %859 : vector<16x32xf32>
    %cst_234 = arith.constant 1.000000e+00 : f32
    %861 = vector.broadcast %cst_234 : f32 to vector<16x32xf32>
    %862 = arith.addf %861, %860 : vector<16x32xf32>
    %863 = arith.divf %861, %862 : vector<16x32xf32>
    %864 = vector.extract_strided_slice %832 {offsets = [0, 32], sizes = [16, 32], strides = [1, 1]} : vector<16x128xf32> to vector<16x32xf32>
    %865 = arith.negf %864 : vector<16x32xf32>
    %866 = math.exp %865 : vector<16x32xf32>
    %cst_235 = arith.constant 1.000000e+00 : f32
    %867 = vector.broadcast %cst_235 : f32 to vector<16x32xf32>
    %868 = arith.addf %867, %866 : vector<16x32xf32>
    %869 = arith.divf %867, %868 : vector<16x32xf32>
    %870 = vector.extract_strided_slice %832 {offsets = [0, 64], sizes = [16, 32], strides = [1, 1]} : vector<16x128xf32> to vector<16x32xf32>
    %871 = math.tanh %870 : vector<16x32xf32>
    %872 = vector.extract_strided_slice %832 {offsets = [0, 96], sizes = [16, 32], strides = [1, 1]} : vector<16x128xf32> to vector<16x32xf32>
    %873 = arith.negf %872 : vector<16x32xf32>
    %874 = math.exp %873 : vector<16x32xf32>
    %cst_236 = arith.constant 1.000000e+00 : f32
    %875 = vector.broadcast %cst_236 : f32 to vector<16x32xf32>
    %876 = arith.addf %875, %874 : vector<16x32xf32>
    %877 = arith.divf %875, %876 : vector<16x32xf32>
    %878 = arith.mulf %869, %818 : vector<16x32xf32>
    %879 = arith.mulf %863, %871 : vector<16x32xf32>
    %880 = arith.addf %878, %879 : vector<16x32xf32>
    %881 = math.tanh %880 : vector<16x32xf32>
    %882 = arith.mulf %877, %881 : vector<16x32xf32>
    %883 = arith.truncf %857 : vector<16x32xf32> to vector<16x32xbf16>
    %c80_237 = arith.constant 80 : index
    %c0_238 = arith.constant 0 : index
    %884 = vector.load %arg14[%c80_237, %c0_238] : memref<128x64xbf16, #tpu.memory_space<vmem>>, vector<16x32xbf16>
    tpu.vector_store %arg14[%c80_237, %c0_238], %883 {strides = array<i32>} : memref<128x64xbf16, #tpu.memory_space<vmem>>, vector<16x32xbf16>,
    %885 = arith.truncf %882 : vector<16x32xf32> to vector<16x32xbf16>
    %c32_239 = arith.constant 32 : index
    %c32_240 = arith.constant 32 : index
    %886 = vector.load %arg14[%c32_239, %c32_240] : memref<128x64xbf16, #tpu.memory_space<vmem>>, vector<16x32xbf16>
    tpu.vector_store %arg14[%c32_239, %c32_240], %885 {strides = array<i32>} : memref<128x64xbf16, #tpu.memory_space<vmem>>, vector<16x32xbf16>,
    %c96_241 = arith.constant 96 : index
    %c0_242 = arith.constant 0 : index
    %887 = vector.load %arg15[%c96_241, %c0_242] : memref<128x256xf32, #tpu.memory_space<vmem>>, vector<16x128xf32>
    %888 = arith.truncf %857 : vector<16x32xf32> to vector<16x32xbf16>
    %cst_243 = arith.constant dense<0.000000e+00> : vector<16x128xf32>
    %889 = tpu.matmul %888, %513, %cst_243 {dimension_numbers = #tpu.dot_dimension_numbers<[1], [0], [0], [1], [0, 0, 1, 1], [], []>} : vector<16x32xbf16>, vector<32x128xbf16>, vector<16x128xf32> -> vector<16x128xf32>
    %890 = arith.addf %887, %889 : vector<16x128xf32>
    %c16_244 = arith.constant 16 : index
    %c128_245 = arith.constant 128 : index
    %891 = vector.load %arg15[%c16_244, %c128_245] : memref<128x256xf32, #tpu.memory_space<vmem>>, vector<16x128xf32>
    %892 = arith.truncf %882 : vector<16x32xf32> to vector<16x32xbf16>
    %cst_246 = arith.constant dense<0.000000e+00> : vector<16x128xf32>
    %893 = tpu.matmul %892, %514, %cst_246 {dimension_numbers = #tpu.dot_dimension_numbers<[1], [0], [0], [1], [0, 0, 1, 1], [], []>} : vector<16x32xbf16>, vector<32x128xbf16>, vector<16x128xf32> -> vector<16x128xf32>
    %894 = arith.addf %891, %893 : vector<16x128xf32>
    %895 = vector.extract_strided_slice %890 {offsets = [0, 0], sizes = [16, 32], strides = [1, 1]} : vector<16x128xf32> to vector<16x32xf32>
    %896 = arith.negf %895 : vector<16x32xf32>
    %897 = math.exp %896 : vector<16x32xf32>
    %cst_247 = arith.constant 1.000000e+00 : f32
    %898 = vector.broadcast %cst_247 : f32 to vector<16x32xf32>
    %899 = arith.addf %898, %897 : vector<16x32xf32>
    %900 = arith.divf %898, %899 : vector<16x32xf32>
    %901 = vector.extract_strided_slice %890 {offsets = [0, 32], sizes = [16, 32], strides = [1, 1]} : vector<16x128xf32> to vector<16x32xf32>
    %902 = arith.negf %901 : vector<16x32xf32>
    %903 = math.exp %902 : vector<16x32xf32>
    %cst_248 = arith.constant 1.000000e+00 : f32
    %904 = vector.broadcast %cst_248 : f32 to vector<16x32xf32>
    %905 = arith.addf %904, %903 : vector<16x32xf32>
    %906 = arith.divf %904, %905 : vector<16x32xf32>
    %907 = vector.extract_strided_slice %890 {offsets = [0, 64], sizes = [16, 32], strides = [1, 1]} : vector<16x128xf32> to vector<16x32xf32>
    %908 = math.tanh %907 : vector<16x32xf32>
    %909 = vector.extract_strided_slice %890 {offsets = [0, 96], sizes = [16, 32], strides = [1, 1]} : vector<16x128xf32> to vector<16x32xf32>
    %910 = arith.negf %909 : vector<16x32xf32>
    %911 = math.exp %910 : vector<16x32xf32>
    %cst_249 = arith.constant 1.000000e+00 : f32
    %912 = vector.broadcast %cst_249 : f32 to vector<16x32xf32>
    %913 = arith.addf %912, %911 : vector<16x32xf32>
    %914 = arith.divf %912, %913 : vector<16x32xf32>
    %915 = arith.mulf %906, %855 : vector<16x32xf32>
    %916 = arith.mulf %900, %908 : vector<16x32xf32>
    %917 = arith.addf %915, %916 : vector<16x32xf32>
    %918 = math.tanh %917 : vector<16x32xf32>
    %919 = arith.mulf %914, %918 : vector<16x32xf32>
    %920 = vector.extract_strided_slice %894 {offsets = [0, 0], sizes = [16, 32], strides = [1, 1]} : vector<16x128xf32> to vector<16x32xf32>
    %921 = arith.negf %920 : vector<16x32xf32>
    %922 = math.exp %921 : vector<16x32xf32>
    %cst_250 = arith.constant 1.000000e+00 : f32
    %923 = vector.broadcast %cst_250 : f32 to vector<16x32xf32>
    %924 = arith.addf %923, %922 : vector<16x32xf32>
    %925 = arith.divf %923, %924 : vector<16x32xf32>
    %926 = vector.extract_strided_slice %894 {offsets = [0, 32], sizes = [16, 32], strides = [1, 1]} : vector<16x128xf32> to vector<16x32xf32>
    %927 = arith.negf %926 : vector<16x32xf32>
    %928 = math.exp %927 : vector<16x32xf32>
    %cst_251 = arith.constant 1.000000e+00 : f32
    %929 = vector.broadcast %cst_251 : f32 to vector<16x32xf32>
    %930 = arith.addf %929, %928 : vector<16x32xf32>
    %931 = arith.divf %929, %930 : vector<16x32xf32>
    %932 = vector.extract_strided_slice %894 {offsets = [0, 64], sizes = [16, 32], strides = [1, 1]} : vector<16x128xf32> to vector<16x32xf32>
    %933 = math.tanh %932 : vector<16x32xf32>
    %934 = vector.extract_strided_slice %894 {offsets = [0, 96], sizes = [16, 32], strides = [1, 1]} : vector<16x128xf32> to vector<16x32xf32>
    %935 = arith.negf %934 : vector<16x32xf32>
    %936 = math.exp %935 : vector<16x32xf32>
    %cst_252 = arith.constant 1.000000e+00 : f32
    %937 = vector.broadcast %cst_252 : f32 to vector<16x32xf32>
    %938 = arith.addf %937, %936 : vector<16x32xf32>
    %939 = arith.divf %937, %938 : vector<16x32xf32>
    %940 = arith.mulf %931, %880 : vector<16x32xf32>
    %941 = arith.mulf %925, %933 : vector<16x32xf32>
    %942 = arith.addf %940, %941 : vector<16x32xf32>
    %943 = math.tanh %942 : vector<16x32xf32>
    %944 = arith.mulf %939, %943 : vector<16x32xf32>
    %945 = arith.truncf %919 : vector<16x32xf32> to vector<16x32xbf16>
    %c96_253 = arith.constant 96 : index
    %c0_254 = arith.constant 0 : index
    %946 = vector.load %arg14[%c96_253, %c0_254] : memref<128x64xbf16, #tpu.memory_space<vmem>>, vector<16x32xbf16>
    tpu.vector_store %arg14[%c96_253, %c0_254], %945 {strides = array<i32>} : memref<128x64xbf16, #tpu.memory_space<vmem>>, vector<16x32xbf16>,
    %947 = arith.truncf %944 : vector<16x32xf32> to vector<16x32xbf16>
    %c16_255 = arith.constant 16 : index
    %c32_256 = arith.constant 32 : index
    %948 = vector.load %arg14[%c16_255, %c32_256] : memref<128x64xbf16, #tpu.memory_space<vmem>>, vector<16x32xbf16>
    tpu.vector_store %arg14[%c16_255, %c32_256], %947 {strides = array<i32>} : memref<128x64xbf16, #tpu.memory_space<vmem>>, vector<16x32xbf16>,
    %c112_257 = arith.constant 112 : index
    %c0_258 = arith.constant 0 : index
    %949 = vector.load %arg15[%c112_257, %c0_258] : memref<128x256xf32, #tpu.memory_space<vmem>>, vector<16x128xf32>
    %950 = arith.truncf %919 : vector<16x32xf32> to vector<16x32xbf16>
    %cst_259 = arith.constant dense<0.000000e+00> : vector<16x128xf32>
    %951 = tpu.matmul %950, %513, %cst_259 {dimension_numbers = #tpu.dot_dimension_numbers<[1], [0], [0], [1], [0, 0, 1, 1], [], []>} : vector<16x32xbf16>, vector<32x128xbf16>, vector<16x128xf32> -> vector<16x128xf32>
    %952 = arith.addf %949, %951 : vector<16x128xf32>
    %c0_260 = arith.constant 0 : index
    %c128_261 = arith.constant 128 : index
    %953 = vector.load %arg15[%c0_260, %c128_261] : memref<128x256xf32, #tpu.memory_space<vmem>>, vector<16x128xf32>
    %954 = arith.truncf %944 : vector<16x32xf32> to vector<16x32xbf16>
    %cst_262 = arith.constant dense<0.000000e+00> : vector<16x128xf32>
    %955 = tpu.matmul %954, %514, %cst_262 {dimension_numbers = #tpu.dot_dimension_numbers<[1], [0], [0], [1], [0, 0, 1, 1], [], []>} : vector<16x32xbf16>, vector<32x128xbf16>, vector<16x128xf32> -> vector<16x128xf32>
    %956 = arith.addf %953, %955 : vector<16x128xf32>
    %957 = vector.extract_strided_slice %952 {offsets = [0, 0], sizes = [16, 32], strides = [1, 1]} : vector<16x128xf32> to vector<16x32xf32>
    %958 = arith.negf %957 : vector<16x32xf32>
    %959 = math.exp %958 : vector<16x32xf32>
    %cst_263 = arith.constant 1.000000e+00 : f32
    %960 = vector.broadcast %cst_263 : f32 to vector<16x32xf32>
    %961 = arith.addf %960, %959 : vector<16x32xf32>
    %962 = arith.divf %960, %961 : vector<16x32xf32>
    %963 = vector.extract_strided_slice %952 {offsets = [0, 32], sizes = [16, 32], strides = [1, 1]} : vector<16x128xf32> to vector<16x32xf32>
    %964 = arith.negf %963 : vector<16x32xf32>
    %965 = math.exp %964 : vector<16x32xf32>
    %cst_264 = arith.constant 1.000000e+00 : f32
    %966 = vector.broadcast %cst_264 : f32 to vector<16x32xf32>
    %967 = arith.addf %966, %965 : vector<16x32xf32>
    %968 = arith.divf %966, %967 : vector<16x32xf32>
    %969 = vector.extract_strided_slice %952 {offsets = [0, 64], sizes = [16, 32], strides = [1, 1]} : vector<16x128xf32> to vector<16x32xf32>
    %970 = math.tanh %969 : vector<16x32xf32>
    %971 = vector.extract_strided_slice %952 {offsets = [0, 96], sizes = [16, 32], strides = [1, 1]} : vector<16x128xf32> to vector<16x32xf32>
    %972 = arith.negf %971 : vector<16x32xf32>
    %973 = math.exp %972 : vector<16x32xf32>
    %cst_265 = arith.constant 1.000000e+00 : f32
    %974 = vector.broadcast %cst_265 : f32 to vector<16x32xf32>
    %975 = arith.addf %974, %973 : vector<16x32xf32>
    %976 = arith.divf %974, %975 : vector<16x32xf32>
    %977 = arith.mulf %968, %917 : vector<16x32xf32>
    %978 = arith.mulf %962, %970 : vector<16x32xf32>
    %979 = arith.addf %977, %978 : vector<16x32xf32>
    %980 = math.tanh %979 : vector<16x32xf32>
    %981 = arith.mulf %976, %980 : vector<16x32xf32>
    %982 = vector.extract_strided_slice %956 {offsets = [0, 0], sizes = [16, 32], strides = [1, 1]} : vector<16x128xf32> to vector<16x32xf32>
    %983 = arith.negf %982 : vector<16x32xf32>
    %984 = math.exp %983 : vector<16x32xf32>
    %cst_266 = arith.constant 1.000000e+00 : f32
    %985 = vector.broadcast %cst_266 : f32 to vector<16x32xf32>
    %986 = arith.addf %985, %984 : vector<16x32xf32>
    %987 = arith.divf %985, %986 : vector<16x32xf32>
    %988 = vector.extract_strided_slice %956 {offsets = [0, 32], sizes = [16, 32], strides = [1, 1]} : vector<16x128xf32> to vector<16x32xf32>
    %989 = arith.negf %988 : vector<16x32xf32>
    %990 = math.exp %989 : vector<16x32xf32>
    %cst_267 = arith.constant 1.000000e+00 : f32
    %991 = vector.broadcast %cst_267 : f32 to vector<16x32xf32>
    %992 = arith.addf %991, %990 : vector<16x32xf32>
    %993 = arith.divf %991, %992 : vector<16x32xf32>
    %994 = vector.extract_strided_slice %956 {offsets = [0, 64], sizes = [16, 32], strides = [1, 1]} : vector<16x128xf32> to vector<16x32xf32>
    %995 = math.tanh %994 : vector<16x32xf32>
    %996 = vector.extract_strided_slice %956 {offsets = [0, 96], sizes = [16, 32], strides = [1, 1]} : vector<16x128xf32> to vector<16x32xf32>
    %997 = arith.negf %996 : vector<16x32xf32>
    %998 = math.exp %997 : vector<16x32xf32>
    %cst_268 = arith.constant 1.000000e+00 : f32
    %999 = vector.broadcast %cst_268 : f32 to vector<16x32xf32>
    %1000 = arith.addf %999, %998 : vector<16x32xf32>
    %1001 = arith.divf %999, %1000 : vector<16x32xf32>
    %1002 = arith.mulf %993, %942 : vector<16x32xf32>
    %1003 = arith.mulf %987, %995 : vector<16x32xf32>
    %1004 = arith.addf %1002, %1003 : vector<16x32xf32>
    %1005 = math.tanh %1004 : vector<16x32xf32>
    %1006 = arith.mulf %1001, %1005 : vector<16x32xf32>
    %1007 = arith.truncf %981 : vector<16x32xf32> to vector<16x32xbf16>
    %c112_269 = arith.constant 112 : index
    %c0_270 = arith.constant 0 : index
    %1008 = vector.load %arg14[%c112_269, %c0_270] : memref<128x64xbf16, #tpu.memory_space<vmem>>, vector<16x32xbf16>
    tpu.vector_store %arg14[%c112_269, %c0_270], %1007 {strides = array<i32>} : memref<128x64xbf16, #tpu.memory_space<vmem>>, vector<16x32xbf16>,
    %1009 = arith.truncf %1006 : vector<16x32xf32> to vector<16x32xbf16>
    %c0_271 = arith.constant 0 : index
    %c32_272 = arith.constant 32 : index
    %1010 = vector.load %arg14[%c0_271, %c32_272] : memref<128x64xbf16, #tpu.memory_space<vmem>>, vector<16x32xbf16>
    tpu.vector_store %arg14[%c0_271, %c32_272], %1009 {strides = array<i32>} : memref<128x64xbf16, #tpu.memory_space<vmem>>, vector<16x32xbf16>,
    %c112_273 = arith.constant 112 : index
    %c0_274 = arith.constant 0 : index
    %1011 = vector.load %arg14[%c112_273, %c0_274] : memref<128x64xbf16, #tpu.memory_space<vmem>>, vector<16x64xbf16>
    %c0_275 = arith.constant 0 : index
    %c0_276 = arith.constant 0 : index
    %1012 = vector.load %arg10[%c0_275, %c0_276] : memref<64x128xbf16, #tpu.memory_space<vmem>>, vector<64x128xbf16>
    %cst_277 = arith.constant dense<0.000000e+00> : vector<16x128xf32>
    %1013 = tpu.matmul %1011, %1012, %cst_277 {dimension_numbers = #tpu.dot_dimension_numbers<[1], [0], [0], [1], [0, 0, 1, 1], [], []>} : vector<16x64xbf16>, vector<64x128xbf16>, vector<16x128xf32> -> vector<16x128xf32>
    %c0_278 = arith.constant 0 : index
    %c0_279 = arith.constant 0 : index
    %1014 = vector.load %arg11[%c0_278, %c0_279] : memref<1x128xf32, #tpu.memory_space<vmem>>, vector<1x128xf32>
    %1015 = vector.broadcast %1014 : vector<1x128xf32> to vector<16x128xf32>
    %1016 = arith.addf %1013, %1015 : vector<16x128xf32>
    %c0_280 = arith.constant 0 : index
    %c0_281 = arith.constant 0 : index
    %1017 = vector.load %arg12[%c0_280, %c0_281] : memref<16x128xf32, #tpu.memory_space<vmem>>, vector<16x128xf32>
    tpu.vector_store %arg12[%c0_280, %c0_281], %1016 {strides = array<i32>} : memref<16x128xf32, #tpu.memory_space<vmem>>, vector<16x128xf32>,
    return
  }
  func.func @transform_0(%arg0: i32) -> (i32, i32) {
    %c0_i32 = arith.constant 0 : i32
    %c0_i32_0 = arith.constant 0 : i32
    return %arg0, %c0_i32 : i32, i32
  }
  func.func @transform_1(%arg0: i32) -> (i32, i32) {
    %c0_i32 = arith.constant 0 : i32
    %c0_i32_0 = arith.constant 0 : i32
    %c0_i32_1 = arith.constant 0 : i32
    return %c0_i32, %c0_i32_0 : i32, i32
  }
  func.func @transform_2(%arg0: i32) -> (i32, i32) {
    %c0_i32 = arith.constant 0 : i32
    %c0_i32_0 = arith.constant 0 : i32
    %c0_i32_1 = arith.constant 0 : i32
    return %c0_i32, %c0_i32_0 : i32, i32
  }
  func.func @transform_3(%arg0: i32) -> (i32, i32) {
    %c0_i32 = arith.constant 0 : i32
    %c0_i32_0 = arith.constant 0 : i32
    %c0_i32_1 = arith.constant 0 : i32
    return %c0_i32, %c0_i32_0 : i32, i32
  }
  func.func @transform_4(%arg0: i32) -> (i32, i32) {
    %c0_i32 = arith.constant 0 : i32
    %c0_i32_0 = arith.constant 0 : i32
    %c0_i32_1 = arith.constant 0 : i32
    return %c0_i32, %c0_i32_0 : i32, i32
  }
  func.func @transform_5(%arg0: i32) -> (i32, i32) {
    %c0_i32 = arith.constant 0 : i32
    %c0_i32_0 = arith.constant 0 : i32
    %c0_i32_1 = arith.constant 0 : i32
    return %c0_i32, %c0_i32_0 : i32, i32
  }
  func.func @transform_6(%arg0: i32) -> (i32, i32) {
    %c0_i32 = arith.constant 0 : i32
    %c0_i32_0 = arith.constant 0 : i32
    %c0_i32_1 = arith.constant 0 : i32
    return %c0_i32, %c0_i32_0 : i32, i32
  }
  func.func @transform_7(%arg0: i32) -> (i32, i32) {
    %c0_i32 = arith.constant 0 : i32
    %c0_i32_0 = arith.constant 0 : i32
    %c0_i32_1 = arith.constant 0 : i32
    return %c0_i32, %c0_i32_0 : i32, i32
  }
  func.func @transform_8(%arg0: i32) -> (i32, i32) {
    %c0_i32 = arith.constant 0 : i32
    %c0_i32_0 = arith.constant 0 : i32
    %c0_i32_1 = arith.constant 0 : i32
    return %c0_i32, %c0_i32_0 : i32, i32
  }
  func.func @transform_9(%arg0: i32) -> (i32, i32) {
    %c0_i32 = arith.constant 0 : i32
    %c0_i32_0 = arith.constant 0 : i32
    %c0_i32_1 = arith.constant 0 : i32
    return %c0_i32, %c0_i32_0 : i32, i32
  }
  func.func @transform_10(%arg0: i32) -> (i32, i32) {
    %c0_i32 = arith.constant 0 : i32
    %c0_i32_0 = arith.constant 0 : i32
    %c0_i32_1 = arith.constant 0 : i32
    return %c0_i32, %c0_i32_0 : i32, i32
  }
  func.func @transform_11(%arg0: i32) -> (i32, i32) {
    %c0_i32 = arith.constant 0 : i32
    %c0_i32_0 = arith.constant 0 : i32
    return %arg0, %c0_i32 : i32, i32
  }
}

</mosaic_0001>

<llo_original>
// kernel: review_sentiment_lstm_forward.1
$region0: #{review_sentiment_lstm_forward.1}
  #allocation0 [shape = 'u32[]', space=smem, size = 0x4, offset = 0x4, fixed_abs, tag = 'smem constant byte address 0x4 - core index']
  #allocation1 [shape = 'u32[144,128]{1,0:T(1,128)}', space=vmem, size = 0x12000, scoped, tag = 'internal scratch']
  #allocation2 [shape = 'bf16[128,64]{1,0:T(8,128)(2,1)}', space=vmem, size = 0x8000, scoped, tag = 'scratch operand']
  #allocation3 [shape = 'bf16[128,64]{1,0:T(8,128)(2,1)}', space=vmem, size = 0x8000, scoped, tag = 'scratch operand']
  #allocation4 [shape = 'f32[128,256]{1,0:T(8,128)}', space=vmem, size = 0x20000, scoped, tag = 'scratch operand']
  %s0 = inlined_call_operand.vmem [shape: bf16[128,16], index: 0, kind: input, shape index: {}]
  %s1 = inlined_call_operand.vmem [shape: bf16[16,256], index: 1, kind: input, shape index: {}]
  %s2 = inlined_call_operand.vmem [shape: f32[1,256], index: 2, kind: input, shape index: {}]
  %s3 = inlined_call_operand.vmem [shape: bf16[32,128], index: 3, kind: input, shape index: {}]
  %s4 = inlined_call_operand.vmem [shape: bf16[32,128], index: 4, kind: input, shape index: {}]
  %s5 = inlined_call_operand.vmem [shape: bf16[64,256], index: 5, kind: input, shape index: {}]
  %s6 = inlined_call_operand.vmem [shape: f32[1,256], index: 6, kind: input, shape index: {}]
  %s7 = inlined_call_operand.vmem [shape: bf16[32,128], index: 7, kind: input, shape index: {}]
  %s8 = inlined_call_operand.vmem [shape: bf16[32,128], index: 8, kind: input, shape index: {}]
  %s9 = inlined_call_operand.vmem [shape: bf16[64,128], index: 9, kind: input, shape index: {}]
  %s10 = inlined_call_operand.vmem [shape: f32[1,128], index: 10, kind: input, shape index: {}]
  %s11 = inlined_call_operand.vmem [shape: f32[16,128], index: 11, kind: output, shape index: {}]
  %s12 = sld [smem:[#allocation0]]
  $region54: #{review_sentiment_lstm_forward.1} parent=0
    _
  %s14 = ssub.s32 1, %s12
  %s15 = scalar_select 0, %s14, %s12
  // Predicated region
  $region2: #{review_sentiment_lstm_forward.1} parent=0 // pred_check
    _
  $region3: #{review_sentiment_lstm_forward.1} parent=0 // pred_check_branch
    %17 = sbr.rel (0) target = $region5
  $region4: #{review_sentiment_lstm_forward.1} parent=0 // pred_region
    _
  $region5: #{review_sentiment_lstm_forward.1} parent=0 // pred_fallthru
    _
  // Predicated region
  $region6: #{review_sentiment_lstm_forward.1} parent=0 // pred_check
    _
  $region7: #{review_sentiment_lstm_forward.1} parent=0 // pred_check_branch
    %19 = sbr.rel (0) target = $region9
  $region8: #{review_sentiment_lstm_forward.1} parent=0 // pred_region
    _
  $region9: #{review_sentiment_lstm_forward.1} parent=0 // pred_fallthru
    _
  // Predicated region
  $region10: #{review_sentiment_lstm_forward.1} parent=0 // pred_check
    _
  $region11: #{review_sentiment_lstm_forward.1} parent=0 // pred_check_branch
    %21 = sbr.rel (0) target = $region13
  $region12: #{review_sentiment_lstm_forward.1} parent=0 // pred_region
    _
  $region13: #{review_sentiment_lstm_forward.1} parent=0 // pred_fallthru
    _
  // Predicated region
  $region14: #{review_sentiment_lstm_forward.1} parent=0 // pred_check
    _
  $region15: #{review_sentiment_lstm_forward.1} parent=0 // pred_check_branch
    %23 = sbr.rel (0) target = $region17
  $region16: #{review_sentiment_lstm_forward.1} parent=0 // pred_region
    _
  $region17: #{review_sentiment_lstm_forward.1} parent=0 // pred_fallthru
    _
  // Predicated region
  $region18: #{review_sentiment_lstm_forward.1} parent=0 // pred_check
    _
  $region19: #{review_sentiment_lstm_forward.1} parent=0 // pred_check_branch
    %25 = sbr.rel (0) target = $region21
  $region20: #{review_sentiment_lstm_forward.1} parent=0 // pred_region
    _
  $region21: #{review_sentiment_lstm_forward.1} parent=0 // pred_fallthru
    _
  // Predicated region
  $region22: #{review_sentiment_lstm_forward.1} parent=0 // pred_check
    _
  $region23: #{review_sentiment_lstm_forward.1} parent=0 // pred_check_branch
    %27 = sbr.rel (0) target = $region25
  $region24: #{review_sentiment_lstm_forward.1} parent=0 // pred_region
    _
  $region25: #{review_sentiment_lstm_forward.1} parent=0 // pred_fallthru
    _
  // Predicated region
  $region26: #{review_sentiment_lstm_forward.1} parent=0 // pred_check
    _
  $region27: #{review_sentiment_lstm_forward.1} parent=0 // pred_check_branch
    %29 = sbr.rel (0) target = $region29
  $region28: #{review_sentiment_lstm_forward.1} parent=0 // pred_region
    _
  $region29: #{review_sentiment_lstm_forward.1} parent=0 // pred_fallthru
    _
  // Predicated region
  $region30: #{review_sentiment_lstm_forward.1} parent=0 // pred_check
    _
  $region31: #{review_sentiment_lstm_forward.1} parent=0 // pred_check_branch
    %31 = sbr.rel (0) target = $region33
  $region32: #{review_sentiment_lstm_forward.1} parent=0 // pred_region
    _
  $region33: #{review_sentiment_lstm_forward.1} parent=0 // pred_fallthru
    _
  // Predicated region
  $region34: #{review_sentiment_lstm_forward.1} parent=0 // pred_check
    _
  $region35: #{review_sentiment_lstm_forward.1} parent=0 // pred_check_branch
    %33 = sbr.rel (0) target = $region37
  $region36: #{review_sentiment_lstm_forward.1} parent=0 // pred_region
    _
  $region37: #{review_sentiment_lstm_forward.1} parent=0 // pred_fallthru
    _
  // Predicated region
  $region38: #{review_sentiment_lstm_forward.1} parent=0 // pred_check
    _
  $region39: #{review_sentiment_lstm_forward.1} parent=0 // pred_check_branch
    %35 = sbr.rel (0) target = $region41
  $region40: #{review_sentiment_lstm_forward.1} parent=0 // pred_region
    _
  $region41: #{review_sentiment_lstm_forward.1} parent=0 // pred_fallthru
    _
  // Predicated region
  $region42: #{review_sentiment_lstm_forward.1} parent=0 // pred_check
    _
  $region43: #{review_sentiment_lstm_forward.1} parent=0 // pred_check_branch
    %37 = sbr.rel (0) target = $region45
  $region44: #{review_sentiment_lstm_forward.1} parent=0 // pred_region
    _
  $region45: #{review_sentiment_lstm_forward.1} parent=0 // pred_fallthru
    _
  %v39 = vld [vmem:[%s0] sm:$0xf]
  %v40 = vld [vmem:[%s0 + $0x4] sm:$0xf]
  %v41 = vld [vmem:[%s0 + $0x8] sm:$0xf]
  %v42 = vld [vmem:[%s0 + $0xc] sm:$0xf]
  %v43 = vld [vmem:[%s0 + $0x10] sm:$0xf]
  %v44 = vld [vmem:[%s0 + $0x14] sm:$0xf]
  %v45 = vld [vmem:[%s0 + $0x18] sm:$0xf]
  %v46 = vld [vmem:[%s0 + $0x1c] sm:$0xf]
  %v47 = vld [vmem:[%s0 + $0x20] sm:$0xf]
  %v48 = vld [vmem:[%s0 + $0x24] sm:$0xf]
  %v49 = vld [vmem:[%s0 + $0x28] sm:$0xf]
  %v50 = vld [vmem:[%s0 + $0x2c] sm:$0xf]
  %v51 = vld [vmem:[%s0 + $0x30] sm:$0xf]
  %v52 = vld [vmem:[%s0 + $0x34] sm:$0xf]
  %v53 = vld [vmem:[%s0 + $0x38] sm:$0xf]
  %v54 = vld [vmem:[%s0 + $0x3c] sm:$0xf]
  %v55 = vld [vmem:[%s1] sm:$0xff]
  %v56 = vld [vmem:[%s1 + $0x8] sm:$0xff]
  %v57 = vld [vmem:[%s2] sm:$0x3]
  %v59 = vlaneseq
  %v60 = vshrl.u32 %v59, 7
  %v61 = vsub.s32 0, %v60
  %v62 = vrot.slane %v57, %v61
  %v63 = vlaneseq
  %v64 = vshrl.u32 %v63, 7
  %v65 = vsub.s32 1, %v64
  %v66 = vrot.slane %v57, %v65
  %v85 = vunpack.c.l.b16 %v39
  %v86 = vunpack.c.l.b16 %v40
  %v87 = vunpack.c.l.b16 %v41
  %v88 = vunpack.c.l.b16 %v42
  %v89 = vunpack.c.l.b16 %v43
  %v90 = vunpack.c.l.b16 %v44
  %v91 = vunpack.c.l.b16 %v45
  %v92 = vunpack.c.l.b16 %v46
  %v93 = vunpack.c.l.b16 %v47
  %v94 = vunpack.c.l.b16 %v48
  %v95 = vunpack.c.l.b16 %v49
  %v96 = vunpack.c.l.b16 %v50
  %v97 = vunpack.c.l.b16 %v51
  %v98 = vunpack.c.l.b16 %v52
  %v99 = vunpack.c.l.b16 %v53
  %v100 = vunpack.c.l.b16 %v54
  %v101 = vpack.c.b16 %v86, %v85
  %v102 = vpack.c.b16 %v88, %v87
  %v103 = vpack.c.b16 %v90, %v89
  %v104 = vpack.c.b16 %v92, %v91
  %v105 = vpack.c.b16 %v94, %v93
  %v106 = vpack.c.b16 %v96, %v95
  %v107 = vpack.c.b16 %v98, %v97
  %v108 = vpack.c.b16 %v100, %v99
  %v111 = vunpack.c.l.b16 %v55
  %v112 = vunpack.c.h.b16 %v55
  %v113 = vunpack.c.l.b16 %v56
  %v114 = vunpack.c.h.b16 %v56
  %v115 = vpack.c.b16 %v113, %v111
  %v116 = vpack.c.b16 %v114, %v112
  %vm119 = vcmask 130048
  %v121 = vsel %vm119, %v101, 0
  %v124 = vsel %vm119, %v102, 0
  %v127 = vsel %vm119, %v103, 0
  %v130 = vsel %vm119, %v104, 0
  %v133 = vsel %vm119, %v105, 0
  %v136 = vsel %vm119, %v106, 0
  %v139 = vsel %vm119, %v107, 0
  %v142 = vsel %vm119, %v108, 0
  %144 = vmatprep.subr.bf16.mxu0 0
  %145 = vmatpush1.bf16.msra.mxu0 0
  %146 = vmatprep.subr.bf16.mxu0 0
  %147 = vmatpush1.bf16.msra.mxu0 0
  %148 = vmatprep.subr.bf16.mxu0 0
  %149 = vmatpush1.bf16.msra.mxu0 0
  %150 = vmatprep.subr.bf16.mxu0 0
  %151 = vmatpush1.bf16.msra.mxu0 0
  %152 = vmatprep.subr.bf16.mxu0 0
  %153 = vmatpush1.bf16.msra.mxu0 0
  %154 = vmatprep.subr.bf16.mxu0 0
  %155 = vmatpush1.bf16.msra.mxu0 0
  %156 = vmatprep.subr.bf16.mxu0 0
  %157 = vmatpush1.bf16.msra.mxu0 0
  %158 = vmatprep.subr.bf16.mxu0 %v116
  %159 = vmatpush1.bf16.msra.mxu0 %v115
  %160 = vmatprep.subr.bf16.mxu0 0
  %161 = vmatpush2.bf16.msra.mxu0 0
  %162 = vmatprep.subr.bf16.mxu0 0
  %163 = vmatpush2.bf16.msra.mxu0 0
  %164 = vmatprep.subr.bf16.mxu0 0
  %165 = vmatpush2.bf16.msra.mxu0 0
  %166 = vmatprep.subr.bf16.mxu0 0
  %167 = vmatpush2.bf16.msra.mxu0 0
  %168 = vmatprep.subr.bf16.mxu0 0
  %169 = vmatpush2.bf16.msra.mxu0 0
  %170 = vmatprep.subr.bf16.mxu0 0
  %171 = vmatpush2.bf16.msra.mxu0 0
  %172 = vmatprep.subr.bf16.mxu0 0
  %173 = vmatpush2.bf16.msra.mxu0 0
  %174 = vmatprep.subr.bf16.mxu0 0
  %175 = vmatpush2.bf16.msra.mxu0 0
  %176 = vmatprep.mubr.bf16.mxu0 0
  %177 = vmatmul.mubr.bf16.gmra.mxu0 %v121
  %v178 = vpop.f32.mrf.mxu0
  %v179 = vadd.f32 %v62, %v178
  %v180 = vpop.f32.mrf.mxu0
  %v181 = vadd.f32 %v66, %v180
  %v182 = vpop.f32.mrf.mxu0
  %v183 = vadd.f32 %v62, %v182
  %v184 = vpop.f32.mrf.mxu0
  %v185 = vadd.f32 %v66, %v184
  %186 = vmatprep.mubr.bf16.mxu0 0
  %187 = vmatmul.mubr.bf16.gmra.mxu0 %v124
  %v188 = vpop.f32.mrf.mxu0
  %v189 = vadd.f32 %v62, %v188
  %v190 = vpop.f32.mrf.mxu0
  %v191 = vadd.f32 %v66, %v190
  %v192 = vpop.f32.mrf.mxu0
  %v193 = vadd.f32 %v62, %v192
  %v194 = vpop.f32.mrf.mxu0
  %v195 = vadd.f32 %v66, %v194
  %196 = vmatprep.mubr.bf16.mxu0 0
  %197 = vmatmul.mubr.bf16.gmra.mxu0 %v127
  %v198 = vpop.f32.mrf.mxu0
  %v199 = vadd.f32 %v62, %v198
  %v200 = vpop.f32.mrf.mxu0
  %v201 = vadd.f32 %v66, %v200
  %v202 = vpop.f32.mrf.mxu0
  %v203 = vadd.f32 %v62, %v202
  %v204 = vpop.f32.mrf.mxu0
  %v205 = vadd.f32 %v66, %v204
  %206 = vmatprep.mubr.bf16.mxu0 0
  %207 = vmatmul.mubr.bf16.gmra.mxu0 %v130
  %v208 = vpop.f32.mrf.mxu0
  %v209 = vadd.f32 %v62, %v208
  %v210 = vpop.f32.mrf.mxu0
  %v211 = vadd.f32 %v66, %v210
  %v212 = vpop.f32.mrf.mxu0
  %v213 = vadd.f32 %v62, %v212
  %v214 = vpop.f32.mrf.mxu0
  %v215 = vadd.f32 %v66, %v214
  %216 = vmatprep.mubr.bf16.mxu0 0
  %217 = vmatmul.mubr.bf16.gmra.mxu0 %v133
  %v218 = vpop.f32.mrf.mxu0
  %v219 = vadd.f32 %v62, %v218
  %v220 = vpop.f32.mrf.mxu0
  %v221 = vadd.f32 %v66, %v220
  %v222 = vpop.f32.mrf.mxu0
  %v223 = vadd.f32 %v62, %v222
  %v224 = vpop.f32.mrf.mxu0
  %v225 = vadd.f32 %v66, %v224
  %226 = vmatprep.mubr.bf16.mxu0 0
  %227 = vmatmul.mubr.bf16.gmra.mxu0 %v136
  %v228 = vpop.f32.mrf.mxu0
  %v229 = vadd.f32 %v62, %v228
  %v230 = vpop.f32.mrf.mxu0
  %v231 = vadd.f32 %v66, %v230
  %v232 = vpop.f32.mrf.mxu0
  %v233 = vadd.f32 %v62, %v232
  %v234 = vpop.f32.mrf.mxu0
  %v235 = vadd.f32 %v66, %v234
  %236 = vmatprep.mubr.bf16.mxu0 0
  %237 = vmatmul.mubr.bf16.gmra.mxu0 %v139
  %v238 = vpop.f32.mrf.mxu0
  %v239 = vadd.f32 %v62, %v238
  %v240 = vpop.f32.mrf.mxu0
  %v241 = vadd.f32 %v66, %v240
  %v242 = vpop.f32.mrf.mxu0
  %v243 = vadd.f32 %v62, %v242
  %v244 = vpop.f32.mrf.mxu0
  %v245 = vadd.f32 %v66, %v244
  %246 = vmatprep.mubr.bf16.mxu0 0
  %247 = vmatmul.mubr.bf16.gmra.mxu0 %v142
  %v248 = vpop.f32.mrf.mxu0
  %v249 = vadd.f32 %v62, %v248
  %v250 = vpop.f32.mrf.mxu0
  %v251 = vadd.f32 %v66, %v250
  %v252 = vpop.f32.mrf.mxu0
  %v253 = vadd.f32 %v62, %v252
  %v254 = vpop.f32.mrf.mxu0
  %v255 = vadd.f32 %v66, %v254
  %256 = vdwg.mxu0
  %257 = vst [vmem:[#allocation4] sm:$0xff] %v179
  %258 = vst [vmem:[#allocation4 + $0x8] sm:$0xff] %v181
  %259 = vst [vmem:[#allocation4 + $0x10] sm:$0xff] %v183
  %260 = vst [vmem:[#allocation4 + $0x18] sm:$0xff] %v185
  %261 = vst [vmem:[#allocation4 + $0x20] sm:$0xff] %v189
  %262 = vst [vmem:[#allocation4 + $0x28] sm:$0xff] %v191
  %263 = vst [vmem:[#allocation4 + $0x30] sm:$0xff] %v193
  %264 = vst [vmem:[#allocation4 + $0x38] sm:$0xff] %v195
  %265 = vst [vmem:[#allocation4 + $0x40] sm:$0xff] %v199
  %266 = vst [vmem:[#allocation4 + $0x48] sm:$0xff] %v201
  %267 = vst [vmem:[#allocation4 + $0x50] sm:$0xff] %v203
  %268 = vst [vmem:[#allocation4 + $0x58] sm:$0xff] %v205
  %269 = vst [vmem:[#allocation4 + $0x60] sm:$0xff] %v209
  %270 = vst [vmem:[#allocation4 + $0x68] sm:$0xff] %v211
  %271 = vst [vmem:[#allocation4 + $0x70] sm:$0xff] %v213
  %272 = vst [vmem:[#allocation4 + $0x78] sm:$0xff] %v215
  %273 = vst [vmem:[#allocation4 + $0x80] sm:$0xff] %v219
  %274 = vst [vmem:[#allocation4 + $0x88] sm:$0xff] %v221
  %275 = vst [vmem:[#allocation4 + $0x90] sm:$0xff] %v223
  %276 = vst [vmem:[#allocation4 + $0x98] sm:$0xff] %v225
  %277 = vst [vmem:[#allocation4 + $0xa0] sm:$0xff] %v229
  %278 = vst [vmem:[#allocation4 + $0xa8] sm:$0xff] %v231
  %279 = vst [vmem:[#allocation4 + $0xb0] sm:$0xff] %v233
  %280 = vst [vmem:[#allocation4 + $0xb8] sm:$0xff] %v235
  %281 = vst [vmem:[#allocation4 + $0xc0] sm:$0xff] %v239
  %282 = vst [vmem:[#allocation4 + $0xc8] sm:$0xff] %v241
  %283 = vst [vmem:[#allocation4 + $0xd0] sm:$0xff] %v243
  %284 = vst [vmem:[#allocation4 + $0xd8] sm:$0xff] %v245
  %285 = vst [vmem:[#allocation4 + $0xe0] sm:$0xff] %v249
  %286 = vst [vmem:[#allocation4 + $0xe8] sm:$0xff] %v251
  %287 = vst [vmem:[#allocation4 + $0xf0] sm:$0xff] %v253
  %288 = vst [vmem:[#allocation4 + $0xf8] sm:$0xff] %v255
  %v289 = vld [vmem:[%s3] sm:$0xf]
  %v290 = vld [vmem:[%s3 + $0x4] sm:$0xf]
  %v291 = vld [vmem:[%s3 + $0x8] sm:$0xf]
  %v292 = vld [vmem:[%s3 + $0xc] sm:$0xf]
  %v293 = vld [vmem:[%s4] sm:$0xf]
  %v294 = vld [vmem:[%s4 + $0x4] sm:$0xf]
  %v295 = vld [vmem:[%s4 + $0x8] sm:$0xf]
  %v296 = vld [vmem:[%s4 + $0xc] sm:$0xf]
  %v297 = vld [vmem:[#allocation4] sm:$0xff]
  %v298 = vld [vmem:[#allocation4 + $0x10] sm:$0xff]
  %v303 = vunpack.c.l.b16 %v289
  %v304 = vunpack.c.l.b16 %v290
  %v305 = vunpack.c.l.b16 %v291
  %v306 = vunpack.c.l.b16 %v292
  %v307 = vpack.c.b16 %v304, %v303
  %v308 = vpack.c.b16 %v306, %v305
  %vm311 = vcmask 261120
  %v313 = vsel %vm311, 0, 0
  %315 = vmatprep.subr.bf16.mxu0 0
  %316 = vmatpush1.bf16.msra.mxu0 0
  %317 = vmatprep.subr.bf16.mxu0 0
  %318 = vmatpush1.bf16.msra.mxu0 0
  %319 = vmatprep.subr.bf16.mxu0 0
  %320 = vmatpush1.bf16.msra.mxu0 0
  %321 = vmatprep.subr.bf16.mxu0 0
  %322 = vmatpush1.bf16.msra.mxu0 0
  %323 = vmatprep.subr.bf16.mxu0 0
  %324 = vmatpush1.bf16.msra.mxu0 0
  %325 = vmatprep.subr.bf16.mxu0 0
  %326 = vmatpush1.bf16.msra.mxu0 0
  %327 = vmatprep.subr.bf16.mxu0 0
  %328 = vmatpush1.bf16.msra.mxu0 %v308
  %329 = vmatprep.subr.bf16.mxu0 0
  %330 = vmatpush1.bf16.msra.mxu0 %v307
  %331 = vmatprep.subr.bf16.mxu0 0
  %332 = vmatpush2.bf16.msra.mxu0 0
  %333 = vmatprep.subr.bf16.mxu0 0
  %334 = vmatpush2.bf16.msra.mxu0 0
  %335 = vmatprep.subr.bf16.mxu0 0
  %336 = vmatpush2.bf16.msra.mxu0 0
  %337 = vmatprep.subr.bf16.mxu0 0
  %338 = vmatpush2.bf16.msra.mxu0 0
  %339 = vmatprep.subr.bf16.mxu0 0
  %340 = vmatpush2.bf16.msra.mxu0 0
  %341 = vmatprep.subr.bf16.mxu0 0
  %342 = vmatpush2.bf16.msra.mxu0 0
  %343 = vmatprep.subr.bf16.mxu0 0
  %344 = vmatpush2.bf16.msra.mxu0 0
  %345 = vmatprep.subr.bf16.mxu0 0
  %346 = vmatpush2.bf16.msra.mxu0 0
  %347 = vmatprep.mubr.bf16.mxu0 0
  %348 = vmatmul.mubr.bf16.gmra.mxu0 %v313
  %v349 = vpop.f32.mrf.mxu0
  %v350 = vadd.f32 0.0, %v349
  %v351 = vpop.f32.mrf.mxu0
  %v352 = vpop.f32.mrf.mxu0
  %v353 = vadd.f32 0.0, %v352
  %v354 = vpop.f32.mrf.mxu0
  %355 = vdwg.mxu0
  %v356 = vadd.f32 %v297, %v350
  %v357 = vadd.f32 %v298, %v353
  %v358 = vld [vmem:[#allocation4 + $0xe8] sm:$0xff]
  %v359 = vld [vmem:[#allocation4 + $0xf8] sm:$0xff]
  %v364 = vunpack.c.l.b16 %v293
  %v365 = vunpack.c.l.b16 %v294
  %v366 = vunpack.c.l.b16 %v295
  %v367 = vunpack.c.l.b16 %v296
  %v368 = vpack.c.b16 %v365, %v364
  %v369 = vpack.c.b16 %v367, %v366
  %372 = vmatprep.subr.bf16.mxu0 0
  %373 = vmatpush1.bf16.msra.mxu0 0
  %374 = vmatprep.subr.bf16.mxu0 0
  %375 = vmatpush1.bf16.msra.mxu0 0
  %376 = vmatprep.subr.bf16.mxu0 0
  %377 = vmatpush1.bf16.msra.mxu0 0
  %378 = vmatprep.subr.bf16.mxu0 0
  %379 = vmatpush1.bf16.msra.mxu0 0
  %380 = vmatprep.subr.bf16.mxu0 0
  %381 = vmatpush1.bf16.msra.mxu0 0
  %382 = vmatprep.subr.bf16.mxu0 0
  %383 = vmatpush1.bf16.msra.mxu0 0
  %384 = vmatprep.subr.bf16.mxu0 0
  %385 = vmatpush1.bf16.msra.mxu0 %v369
  %386 = vmatprep.subr.bf16.mxu0 0
  %387 = vmatpush1.bf16.msra.mxu0 %v368
  %388 = vmatprep.subr.bf16.mxu0 0
  %389 = vmatpush2.bf16.msra.mxu0 0
  %390 = vmatprep.subr.bf16.mxu0 0
  %391 = vmatpush2.bf16.msra.mxu0 0
  %392 = vmatprep.subr.bf16.mxu0 0
  %393 = vmatpush2.bf16.msra.mxu0 0
  %394 = vmatprep.subr.bf16.mxu0 0
  %395 = vmatpush2.bf16.msra.mxu0 0
  %396 = vmatprep.subr.bf16.mxu0 0
  %397 = vmatpush2.bf16.msra.mxu0 0
  %398 = vmatprep.subr.bf16.mxu0 0
  %399 = vmatpush2.bf16.msra.mxu0 0
  %400 = vmatprep.subr.bf16.mxu0 0
  %401 = vmatpush2.bf16.msra.mxu0 0
  %402 = vmatprep.subr.bf16.mxu0 0
  %403 = vmatpush2.bf16.msra.mxu0 0
  %404 = vmatprep.mubr.bf16.mxu0 0
  %405 = vmatmul.mubr.bf16.gmra.mxu0 %v313
  %v406 = vpop.f32.mrf.mxu0
  %v407 = vadd.f32 0.0, %v406
  %v408 = vpop.f32.mrf.mxu0
  %v409 = vpop.f32.mrf.mxu0
  %v410 = vadd.f32 0.0, %v409
  %v411 = vpop.f32.mrf.mxu0
  %412 = vdwg.mxu0
  %v413 = vadd.f32 %v358, %v407
  %v414 = vadd.f32 %v359, %v410
  %v415 = vxor.u32 %v356, 2147483648
  %v416 = vxor.u32 %v357, 2147483648
  %v417 = vmul.f32 %v415, 1.442695
  %v418 = vpow.pop %v417
  %v419 = vmul.f32 %v416, 1.442695
  %v420 = vpow.pop %v419
  %v421 = vadd.f32 %v418, 1.0
  %v422 = vadd.f32 %v420, 1.0
  %v423 = vrcp.pop %v421
  %v424 = vmul.f32 1.0, %v423
  %v425 = vrcp.pop %v422
  %v426 = vmul.f32 1.0, %v425
  %v427 = vtanh.pop %v356
  %v428 = vtanh.pop %v357
  %v429 = vmul.f32 %v424, 0.0
  %v430 = vmul.f32 %v426, 0.0
  %433 = vrot.lane.b32.xlu0 %v427, 64
  %v434 = vpop.permute.xlu0 %433
  %435 = vrot.lane.b32.xlu0 %v428, 64
  %v436 = vpop.permute.xlu0 %435
  %v439 = vmul.f32 %v424, %v434
  %v440 = vmul.f32 %v426, %v436
  %443 = vrot.lane.b32.xlu0 %v439, 32
  %v444 = vpop.permute.xlu0 %443
  %445 = vrot.lane.b32.xlu0 %v440, 32
  %v446 = vpop.permute.xlu0 %445
  %v449 = vadd.f32 %v429, %v444
  %v450 = vadd.f32 %v430, %v446
  %v451 = vtanh.pop %v449
  %v452 = vtanh.pop %v450
  %455 = vrot.lane.b32.xlu0 %v451, 64
  %v456 = vpop.permute.xlu0 %455
  %457 = vrot.lane.b32.xlu0 %v452, 64
  %v458 = vpop.permute.xlu0 %457
  %v461 = vmul.f32 %v424, %v456
  %v462 = vmul.f32 %v426, %v458
  %v463 = vxor.u32 %v413, 2147483648
  %v464 = vxor.u32 %v414, 2147483648
  %v465 = vmul.f32 %v463, 1.442695
  %v466 = vpow.pop %v465
  %v467 = vmul.f32 %v464, 1.442695
  %v468 = vpow.pop %v467
  %v469 = vadd.f32 %v466, 1.0
  %v470 = vadd.f32 %v468, 1.0
  %v471 = vrcp.pop %v469
  %v472 = vmul.f32 1.0, %v471
  %v473 = vrcp.pop %v470
  %v474 = vmul.f32 1.0, %v473
  %v475 = vtanh.pop %v413
  %v476 = vtanh.pop %v414
  %v477 = vmul.f32 %v472, 0.0
  %v478 = vmul.f32 %v474, 0.0
  %481 = vrot.lane.b32.xlu0 %v475, 64
  %v482 = vpop.permute.xlu0 %481
  %483 = vrot.lane.b32.xlu0 %v476, 64
  %v484 = vpop.permute.xlu0 %483
  %v487 = vmul.f32 %v472, %v482
  %v488 = vmul.f32 %v474, %v484
  %491 = vrot.lane.b32.xlu0 %v487, 32
  %v492 = vpop.permute.xlu0 %491
  %493 = vrot.lane.b32.xlu0 %v488, 32
  %v494 = vpop.permute.xlu0 %493
  %v497 = vadd.f32 %v477, %v492
  %v498 = vadd.f32 %v478, %v494
  %v499 = vtanh.pop %v497
  %v500 = vtanh.pop %v498
  %503 = vrot.lane.b32.xlu0 %v499, 64
  %v504 = vpop.permute.xlu0 %503
  %505 = vrot.lane.b32.xlu0 %v500, 64
  %v506 = vpop.permute.xlu0 %505
  %v509 = vmul.f32 %v472, %v504
  %v510 = vmul.f32 %v474, %v506
  %v511 = vpack.c.bf16 %v462, %v461
  %v513 = vunpack.c.l.b16 %v511
  %v514 = vunpack.c.h.b16 %v511
  %v515 = vpack.c.b16 %v513, %v513
  %v516 = vpack.c.b16 %v514, %v514
  %517 = vrot.lane.b32.xlu0 %v515, 32
  %v518 = vpop.permute.xlu0 %517
  %519 = vrot.lane.b32.xlu0 %v516, 32
  %v520 = vpop.permute.xlu0 %519
  %vm523 = vcmask 257024
  %524 = vst.msk [vmem:[#allocation2] sm:$0xf] %vm523, %v518
  %525 = vst.msk [vmem:[#allocation2 + $0x4] sm:$0xf] %vm523, %v520
  %v526 = vpack.c.bf16 %v510, %v509
  %v528 = vunpack.c.l.b16 %v526
  %v529 = vunpack.c.h.b16 %v526
  %v530 = vpack.c.b16 %v528, %v528
  %v531 = vpack.c.b16 %v529, %v529
  %532 = vrot.lane.b32.xlu0 %v530, 64
  %v533 = vpop.permute.xlu0 %532
  %534 = vrot.lane.b32.xlu0 %v531, 64
  %v535 = vpop.permute.xlu0 %534
  %vm538 = vcmask 519424
  %539 = vst.msk [vmem:[#allocation2 + $0x38] sm:$0xf] %vm538, %v533
  %540 = vst.msk [vmem:[#allocation2 + $0x3c] sm:$0xf] %vm538, %v535
  %v541 = vld [vmem:[#allocation4 + $0x20] sm:$0xff]
  %v542 = vld [vmem:[#allocation4 + $0x30] sm:$0xff]
  %543 = vrot.lane.b32.xlu0 %v511, 32
  %v544 = vpop.permute.xlu0 %543
  %v546 = vsel %vm311, %v544, 0
  %548 = vmatprep.subr.bf16.mxu0 0
  %549 = vmatpush1.bf16.msra.mxu0 0
  %550 = vmatprep.subr.bf16.mxu0 0
  %551 = vmatpush1.bf16.msra.mxu0 0
  %552 = vmatprep.subr.bf16.mxu0 0
  %553 = vmatpush1.bf16.msra.mxu0 0
  %554 = vmatprep.subr.bf16.mxu0 0
  %555 = vmatpush1.bf16.msra.mxu0 0
  %556 = vmatprep.subr.bf16.mxu0 0
  %557 = vmatpush1.bf16.msra.mxu0 0
  %558 = vmatprep.subr.bf16.mxu0 0
  %559 = vmatpush1.bf16.msra.mxu0 0
  %560 = vmatprep.subr.bf16.mxu0 0
  %561 = vmatpush1.bf16.msra.mxu0 %v308
  %562 = vmatprep.subr.bf16.mxu0 0
  %563 = vmatpush1.bf16.msra.mxu0 %v307
  %564 = vmatprep.subr.bf16.mxu0 0
  %565 = vmatpush2.bf16.msra.mxu0 0
  %566 = vmatprep.subr.bf16.mxu0 0
  %567 = vmatpush2.bf16.msra.mxu0 0
  %568 = vmatprep.subr.bf16.mxu0 0
  %569 = vmatpush2.bf16.msra.mxu0 0
  %570 = vmatprep.subr.bf16.mxu0 0
  %571 = vmatpush2.bf16.msra.mxu0 0
  %572 = vmatprep.subr.bf16.mxu0 0
  %573 = vmatpush2.bf16.msra.mxu0 0
  %574 = vmatprep.subr.bf16.mxu0 0
  %575 = vmatpush2.bf16.msra.mxu0 0
  %576 = vmatprep.subr.bf16.mxu0 0
  %577 = vmatpush2.bf16.msra.mxu0 0
  %578 = vmatprep.subr.bf16.mxu0 0
  %579 = vmatpush2.bf16.msra.mxu0 0
  %580 = vmatprep.mubr.bf16.mxu0 0
  %581 = vmatmul.mubr.bf16.gmra.mxu0 %v546
  %v582 = vpop.f32.mrf.mxu0
  %v583 = vadd.f32 0.0, %v582
  %v584 = vpop.f32.mrf.mxu0
  %v585 = vpop.f32.mrf.mxu0
  %v586 = vadd.f32 0.0, %v585
  %v587 = vpop.f32.mrf.mxu0
  %588 = vdwg.mxu0
  %v589 = vadd.f32 %v541, %v583
  %v590 = vadd.f32 %v542, %v586
  %v591 = vld [vmem:[#allocation4 + $0xc8] sm:$0xff]
  %v592 = vld [vmem:[#allocation4 + $0xd8] sm:$0xff]
  %593 = vrot.lane.b32.xlu0 %v526, 32
  %v594 = vpop.permute.xlu0 %593
  %v596 = vsel %vm311, %v594, 0
  %598 = vmatprep.subr.bf16.mxu0 0
  %599 = vmatpush1.bf16.msra.mxu0 0
  %600 = vmatprep.subr.bf16.mxu0 0
  %601 = vmatpush1.bf16.msra.mxu0 0
  %602 = vmatprep.subr.bf16.mxu0 0
  %603 = vmatpush1.bf16.msra.mxu0 0
  %604 = vmatprep.subr.bf16.mxu0 0
  %605 = vmatpush1.bf16.msra.mxu0 0
  %606 = vmatprep.subr.bf16.mxu0 0
  %607 = vmatpush1.bf16.msra.mxu0 0
  %608 = vmatprep.subr.bf16.mxu0 0
  %609 = vmatpush1.bf16.msra.mxu0 0
  %610 = vmatprep.subr.bf16.mxu0 0
  %611 = vmatpush1.bf16.msra.mxu0 %v369
  %612 = vmatprep.subr.bf16.mxu0 0
  %613 = vmatpush1.bf16.msra.mxu0 %v368
  %614 = vmatprep.subr.bf16.mxu0 0
  %615 = vmatpush2.bf16.msra.mxu0 0
  %616 = vmatprep.subr.bf16.mxu0 0
  %617 = vmatpush2.bf16.msra.mxu0 0
  %618 = vmatprep.subr.bf16.mxu0 0
  %619 = vmatpush2.bf16.msra.mxu0 0
  %620 = vmatprep.subr.bf16.mxu0 0
  %621 = vmatpush2.bf16.msra.mxu0 0
  %622 = vmatprep.subr.bf16.mxu0 0
  %623 = vmatpush2.bf16.msra.mxu0 0
  %624 = vmatprep.subr.bf16.mxu0 0
  %625 = vmatpush2.bf16.msra.mxu0 0
  %626 = vmatprep.subr.bf16.mxu0 0
  %627 = vmatpush2.bf16.msra.mxu0 0
  %628 = vmatprep.subr.bf16.mxu0 0
  %629 = vmatpush2.bf16.msra.mxu0 0
  %630 = vmatprep.mubr.bf16.mxu0 0
  %631 = vmatmul.mubr.bf16.gmra.mxu0 %v596
  %v632 = vpop.f32.mrf.mxu0
  %v633 = vadd.f32 0.0, %v632
  %v634 = vpop.f32.mrf.mxu0
  %v635 = vpop.f32.mrf.mxu0
  %v636 = vadd.f32 0.0, %v635
  %v637 = vpop.f32.mrf.mxu0
  %638 = vdwg.mxu0
  %v639 = vadd.f32 %v591, %v633
  %v640 = vadd.f32 %v592, %v636
  %v641 = vxor.u32 %v589, 2147483648
  %v642 = vxor.u32 %v590, 2147483648
  %v643 = vmul.f32 %v641, 1.442695
  %v644 = vpow.pop %v643
  %v645 = vmul.f32 %v642, 1.442695
  %v646 = vpow.pop %v645
  %v647 = vadd.f32 %v644, 1.0
  %v648 = vadd.f32 %v646, 1.0
  %v649 = vrcp.pop %v647
  %v650 = vmul.f32 1.0, %v649
  %v651 = vrcp.pop %v648
  %v652 = vmul.f32 1.0, %v651
  %v653 = vtanh.pop %v589
  %v654 = vtanh.pop %v590
  %v655 = vmul.f32 %v650, %v449
  %v656 = vmul.f32 %v652, %v450
  %659 = vrot.lane.b32.xlu0 %v653, 64
  %v660 = vpop.permute.xlu0 %659
  %661 = vrot.lane.b32.xlu0 %v654, 64
  %v662 = vpop.permute.xlu0 %661
  %v665 = vmul.f32 %v650, %v660
  %v666 = vmul.f32 %v652, %v662
  %669 = vrot.lane.b32.xlu0 %v665, 32
  %v670 = vpop.permute.xlu0 %669
  %671 = vrot.lane.b32.xlu0 %v666, 32
  %v672 = vpop.permute.xlu0 %671
  %v675 = vadd.f32 %v655, %v670
  %v676 = vadd.f32 %v656, %v672
  %v677 = vtanh.pop %v675
  %v678 = vtanh.pop %v676
  %681 = vrot.lane.b32.xlu0 %v677, 64
  %v682 = vpop.permute.xlu0 %681
  %683 = vrot.lane.b32.xlu0 %v678, 64
  %v684 = vpop.permute.xlu0 %683
  %v687 = vmul.f32 %v650, %v682
  %v688 = vmul.f32 %v652, %v684
  %v689 = vxor.u32 %v639, 2147483648
  %v690 = vxor.u32 %v640, 2147483648
  %v691 = vmul.f32 %v689, 1.442695
  %v692 = vpow.pop %v691
  %v693 = vmul.f32 %v690, 1.442695
  %v694 = vpow.pop %v693
  %v695 = vadd.f32 %v692, 1.0
  %v696 = vadd.f32 %v694, 1.0
  %v697 = vrcp.pop %v695
  %v698 = vmul.f32 1.0, %v697
  %v699 = vrcp.pop %v696
  %v700 = vmul.f32 1.0, %v699
  %v701 = vtanh.pop %v639
  %v702 = vtanh.pop %v640
  %v703 = vmul.f32 %v698, %v497
  %v704 = vmul.f32 %v700, %v498
  %707 = vrot.lane.b32.xlu0 %v701, 64
  %v708 = vpop.permute.xlu0 %707
  %709 = vrot.lane.b32.xlu0 %v702, 64
  %v710 = vpop.permute.xlu0 %709
  %v713 = vmul.f32 %v698, %v708
  %v714 = vmul.f32 %v700, %v710
  %717 = vrot.lane.b32.xlu0 %v713, 32
  %v718 = vpop.permute.xlu0 %717
  %719 = vrot.lane.b32.xlu0 %v714, 32
  %v720 = vpop.permute.xlu0 %719
  %v723 = vadd.f32 %v703, %v718
  %v724 = vadd.f32 %v704, %v720
  %v725 = vtanh.pop %v723
  %v726 = vtanh.pop %v724
  %729 = vrot.lane.b32.xlu0 %v725, 64
  %v730 = vpop.permute.xlu0 %729
  %731 = vrot.lane.b32.xlu0 %v726, 64
  %v732 = vpop.permute.xlu0 %731
  %v735 = vmul.f32 %v698, %v730
  %v736 = vmul.f32 %v700, %v732
  %v737 = vpack.c.bf16 %v688, %v687
  %v739 = vunpack.c.l.b16 %v737
  %v740 = vunpack.c.h.b16 %v737
  %v741 = vpack.c.b16 %v739, %v739
  %v742 = vpack.c.b16 %v740, %v740
  %743 = vrot.lane.b32.xlu0 %v741, 32
  %v744 = vpop.permute.xlu0 %743
  %745 = vrot.lane.b32.xlu0 %v742, 32
  %v746 = vpop.permute.xlu0 %745
  %749 = vst.msk [vmem:[#allocation2 + $0x8] sm:$0xf] %vm523, %v744
  %750 = vst.msk [vmem:[#allocation2 + $0xc] sm:$0xf] %vm523, %v746
  %v751 = vpack.c.bf16 %v736, %v735
  %v753 = vunpack.c.l.b16 %v751
  %v754 = vunpack.c.h.b16 %v751
  %v755 = vpack.c.b16 %v753, %v753
  %v756 = vpack.c.b16 %v754, %v754
  %757 = vrot.lane.b32.xlu0 %v755, 64
  %v758 = vpop.permute.xlu0 %757
  %759 = vrot.lane.b32.xlu0 %v756, 64
  %v760 = vpop.permute.xlu0 %759
  %763 = vst.msk [vmem:[#allocation2 + $0x30] sm:$0xf] %vm538, %v758
  %764 = vst.msk [vmem:[#allocation2 + $0x34] sm:$0xf] %vm538, %v760
  %v765 = vld [vmem:[#allocation4 + $0x40] sm:$0xff]
  %v766 = vld [vmem:[#allocation4 + $0x50] sm:$0xff]
  %767 = vrot.lane.b32.xlu0 %v737, 32
  %v768 = vpop.permute.xlu0 %767
  %v770 = vsel %vm311, %v768, 0
  %772 = vmatprep.subr.bf16.mxu0 0
  %773 = vmatpush1.bf16.msra.mxu0 0
  %774 = vmatprep.subr.bf16.mxu0 0
  %775 = vmatpush1.bf16.msra.mxu0 0
  %776 = vmatprep.subr.bf16.mxu0 0
  %777 = vmatpush1.bf16.msra.mxu0 0
  %778 = vmatprep.subr.bf16.mxu0 0
  %779 = vmatpush1.bf16.msra.mxu0 0
  %780 = vmatprep.subr.bf16.mxu0 0
  %781 = vmatpush1.bf16.msra.mxu0 0
  %782 = vmatprep.subr.bf16.mxu0 0
  %783 = vmatpush1.bf16.msra.mxu0 0
  %784 = vmatprep.subr.bf16.mxu0 0
  %785 = vmatpush1.bf16.msra.mxu0 %v308
  %786 = vmatprep.subr.bf16.mxu0 0
  %787 = vmatpush1.bf16.msra.mxu0 %v307
  %788 = vmatprep.subr.bf16.mxu0 0
  %789 = vmatpush2.bf16.msra.mxu0 0
  %790 = vmatprep.subr.bf16.mxu0 0
  %791 = vmatpush2.bf16.msra.mxu0 0
  %792 = vmatprep.subr.bf16.mxu0 0
  %793 = vmatpush2.bf16.msra.mxu0 0
  %794 = vmatprep.subr.bf16.mxu0 0
  %795 = vmatpush2.bf16.msra.mxu0 0
  %796 = vmatprep.subr.bf16.mxu0 0
  %797 = vmatpush2.bf16.msra.mxu0 0
  %798 = vmatprep.subr.bf16.mxu0 0
  %799 = vmatpush2.bf16.msra.mxu0 0
  %800 = vmatprep.subr.bf16.mxu0 0
  %801 = vmatpush2.bf16.msra.mxu0 0
  %802 = vmatprep.subr.bf16.mxu0 0
  %803 = vmatpush2.bf16.msra.mxu0 0
  %804 = vmatprep.mubr.bf16.mxu0 0
  %805 = vmatmul.mubr.bf16.gmra.mxu0 %v770
  %v806 = vpop.f32.mrf.mxu0
  %v807 = vadd.f32 0.0, %v806
  %v808 = vpop.f32.mrf.mxu0
  %v809 = vpop.f32.mrf.mxu0
  %v810 = vadd.f32 0.0, %v809
  %v811 = vpop.f32.mrf.mxu0
  %812 = vdwg.mxu0
  %v813 = vadd.f32 %v765, %v807
  %v814 = vadd.f32 %v766, %v810
  %v815 = vld [vmem:[#allocation4 + $0xa8] sm:$0xff]
  %v816 = vld [vmem:[#allocation4 + $0xb8] sm:$0xff]
  %817 = vrot.lane.b32.xlu0 %v751, 32
  %v818 = vpop.permute.xlu0 %817
  %v820 = vsel %vm311, %v818, 0
  %822 = vmatprep.subr.bf16.mxu0 0
  %823 = vmatpush1.bf16.msra.mxu0 0
  %824 = vmatprep.subr.bf16.mxu0 0
  %825 = vmatpush1.bf16.msra.mxu0 0
  %826 = vmatprep.subr.bf16.mxu0 0
  %827 = vmatpush1.bf16.msra.mxu0 0
  %828 = vmatprep.subr.bf16.mxu0 0
  %829 = vmatpush1.bf16.msra.mxu0 0
  %830 = vmatprep.subr.bf16.mxu0 0
  %831 = vmatpush1.bf16.msra.mxu0 0
  %832 = vmatprep.subr.bf16.mxu0 0
  %833 = vmatpush1.bf16.msra.mxu0 0
  %834 = vmatprep.subr.bf16.mxu0 0
  %835 = vmatpush1.bf16.msra.mxu0 %v369
  %836 = vmatprep.subr.bf16.mxu0 0
  %837 = vmatpush1.bf16.msra.mxu0 %v368
  %838 = vmatprep.subr.bf16.mxu0 0
  %839 = vmatpush2.bf16.msra.mxu0 0
  %840 = vmatprep.subr.bf16.mxu0 0
  %841 = vmatpush2.bf16.msra.mxu0 0
  %842 = vmatprep.subr.bf16.mxu0 0
  %843 = vmatpush2.bf16.msra.mxu0 0
  %844 = vmatprep.subr.bf16.mxu0 0
  %845 = vmatpush2.bf16.msra.mxu0 0
  %846 = vmatprep.subr.bf16.mxu0 0
  %847 = vmatpush2.bf16.msra.mxu0 0
  %848 = vmatprep.subr.bf16.mxu0 0
  %849 = vmatpush2.bf16.msra.mxu0 0
  %850 = vmatprep.subr.bf16.mxu0 0
  %851 = vmatpush2.bf16.msra.mxu0 0
  %852 = vmatprep.subr.bf16.mxu0 0
  %853 = vmatpush2.bf16.msra.mxu0 0
  %854 = vmatprep.mubr.bf16.mxu0 0
  %855 = vmatmul.mubr.bf16.gmra.mxu0 %v820
  %v856 = vpop.f32.mrf.mxu0
  %v857 = vadd.f32 0.0, %v856
  %v858 = vpop.f32.mrf.mxu0
  %v859 = vpop.f32.mrf.mxu0
  %v860 = vadd.f32 0.0, %v859
  %v861 = vpop.f32.mrf.mxu0
  %862 = vdwg.mxu0
  %v863 = vadd.f32 %v815, %v857
  %v864 = vadd.f32 %v816, %v860
  %v865 = vxor.u32 %v813, 2147483648
  %v866 = vxor.u32 %v814, 2147483648
  %v867 = vmul.f32 %v865, 1.442695
  %v868 = vpow.pop %v867
  %v869 = vmul.f32 %v866, 1.442695
  %v870 = vpow.pop %v869
  %v871 = vadd.f32 %v868, 1.0
  %v872 = vadd.f32 %v870, 1.0
  %v873 = vrcp.pop %v871
  %v874 = vmul.f32 1.0, %v873
  %v875 = vrcp.pop %v872
  %v876 = vmul.f32 1.0, %v875
  %v877 = vtanh.pop %v813
  %v878 = vtanh.pop %v814
  %v879 = vmul.f32 %v874, %v675
  %v880 = vmul.f32 %v876, %v676
  %883 = vrot.lane.b32.xlu0 %v877, 64
  %v884 = vpop.permute.xlu0 %883
  %885 = vrot.lane.b32.xlu0 %v878, 64
  %v886 = vpop.permute.xlu0 %885
  %v889 = vmul.f32 %v874, %v884
  %v890 = vmul.f32 %v876, %v886
  %893 = vrot.lane.b32.xlu0 %v889, 32
  %v894 = vpop.permute.xlu0 %893
  %895 = vrot.lane.b32.xlu0 %v890, 32
  %v896 = vpop.permute.xlu0 %895
  %v899 = vadd.f32 %v879, %v894
  %v900 = vadd.f32 %v880, %v896
  %v901 = vtanh.pop %v899
  %v902 = vtanh.pop %v900
  %905 = vrot.lane.b32.xlu0 %v901, 64
  %v906 = vpop.permute.xlu0 %905
  %907 = vrot.lane.b32.xlu0 %v902, 64
  %v908 = vpop.permute.xlu0 %907
  %v911 = vmul.f32 %v874, %v906
  %v912 = vmul.f32 %v876, %v908
  %v913 = vxor.u32 %v863, 2147483648
  %v914 = vxor.u32 %v864, 2147483648
  %v915 = vmul.f32 %v913, 1.442695
  %v916 = vpow.pop %v915
  %v917 = vmul.f32 %v914, 1.442695
  %v918 = vpow.pop %v917
  %v919 = vadd.f32 %v916, 1.0
  %v920 = vadd.f32 %v918, 1.0
  %v921 = vrcp.pop %v919
  %v922 = vmul.f32 1.0, %v921
  %v923 = vrcp.pop %v920
  %v924 = vmul.f32 1.0, %v923
  %v925 = vtanh.pop %v863
  %v926 = vtanh.pop %v864
  %v927 = vmul.f32 %v922, %v723
  %v928 = vmul.f32 %v924, %v724
  %931 = vrot.lane.b32.xlu0 %v925, 64
  %v932 = vpop.permute.xlu0 %931
  %933 = vrot.lane.b32.xlu0 %v926, 64
  %v934 = vpop.permute.xlu0 %933
  %v937 = vmul.f32 %v922, %v932
  %v938 = vmul.f32 %v924, %v934
  %941 = vrot.lane.b32.xlu0 %v937, 32
  %v942 = vpop.permute.xlu0 %941
  %943 = vrot.lane.b32.xlu0 %v938, 32
  %v944 = vpop.permute.xlu0 %943
  %v947 = vadd.f32 %v927, %v942
  %v948 = vadd.f32 %v928, %v944
  %v949 = vtanh.pop %v947
  %v950 = vtanh.pop %v948
  %953 = vrot.lane.b32.xlu0 %v949, 64
  %v954 = vpop.permute.xlu0 %953
  %955 = vrot.lane.b32.xlu0 %v950, 64
  %v956 = vpop.permute.xlu0 %955
  %v959 = vmul.f32 %v922, %v954
  %v960 = vmul.f32 %v924, %v956
  %v961 = vpack.c.bf16 %v912, %v911
  %v963 = vunpack.c.l.b16 %v961
  %v964 = vunpack.c.h.b16 %v961
  %v965 = vpack.c.b16 %v963, %v963
  %v966 = vpack.c.b16 %v964, %v964
  %967 = vrot.lane.b32.xlu0 %v965, 32
  %v968 = vpop.permute.xlu0 %967
  %969 = vrot.lane.b32.xlu0 %v966, 32
  %v970 = vpop.permute.xlu0 %969
  %973 = vst.msk [vmem:[#allocation2 + $0x10] sm:$0xf] %vm523, %v968
  %974 = vst.msk [vmem:[#allocation2 + $0x14] sm:$0xf] %vm523, %v970
  %v975 = vpack.c.bf16 %v960, %v959
  %v977 = vunpack.c.l.b16 %v975
  %v978 = vunpack.c.h.b16 %v975
  %v979 = vpack.c.b16 %v977, %v977
  %v980 = vpack.c.b16 %v978, %v978
  %981 = vrot.lane.b32.xlu0 %v979, 64
  %v982 = vpop.permute.xlu0 %981
  %983 = vrot.lane.b32.xlu0 %v980, 64
  %v984 = vpop.permute.xlu0 %983
  %987 = vst.msk [vmem:[#allocation2 + $0x28] sm:$0xf] %vm538, %v982
  %988 = vst.msk [vmem:[#allocation2 + $0x2c] sm:$0xf] %vm538, %v984
  %v989 = vld [vmem:[#allocation4 + $0x60] sm:$0xff]
  %v990 = vld [vmem:[#allocation4 + $0x70] sm:$0xff]
  %991 = vrot.lane.b32.xlu0 %v961, 32
  %v992 = vpop.permute.xlu0 %991
  %v994 = vsel %vm311, %v992, 0
  %996 = vmatprep.subr.bf16.mxu0 0
  %997 = vmatpush1.bf16.msra.mxu0 0
  %998 = vmatprep.subr.bf16.mxu0 0
  %999 = vmatpush1.bf16.msra.mxu0 0
  %1000 = vmatprep.subr.bf16.mxu0 0
  %1001 = vmatpush1.bf16.msra.mxu0 0
  %1002 = vmatprep.subr.bf16.mxu0 0
  %1003 = vmatpush1.bf16.msra.mxu0 0
  %1004 = vmatprep.subr.bf16.mxu0 0
  %1005 = vmatpush1.bf16.msra.mxu0 0
  %1006 = vmatprep.subr.bf16.mxu0 0
  %1007 = vmatpush1.bf16.msra.mxu0 0
  %1008 = vmatprep.subr.bf16.mxu0 0
  %1009 = vmatpush1.bf16.msra.mxu0 %v308
  %1010 = vmatprep.subr.bf16.mxu0 0
  %1011 = vmatpush1.bf16.msra.mxu0 %v307
  %1012 = vmatprep.subr.bf16.mxu0 0
  %1013 = vmatpush2.bf16.msra.mxu0 0
  %1014 = vmatprep.subr.bf16.mxu0 0
  %1015 = vmatpush2.bf16.msra.mxu0 0
  %1016 = vmatprep.subr.bf16.mxu0 0
  %1017 = vmatpush2.bf16.msra.mxu0 0
  %1018 = vmatprep.subr.bf16.mxu0 0
  %1019 = vmatpush2.bf16.msra.mxu0 0
  %1020 = vmatprep.subr.bf16.mxu0 0
  %1021 = vmatpush2.bf16.msra.mxu0 0
  %1022 = vmatprep.subr.bf16.mxu0 0
  %1023 = vmatpush2.bf16.msra.mxu0 0
  %1024 = vmatprep.subr.bf16.mxu0 0
  %1025 = vmatpush2.bf16.msra.mxu0 0
  %1026 = vmatprep.subr.bf16.mxu0 0
  %1027 = vmatpush2.bf16.msra.mxu0 0
  %1028 = vmatprep.mubr.bf16.mxu0 0
  %1029 = vmatmul.mubr.bf16.gmra.mxu0 %v994
  %v1030 = vpop.f32.mrf.mxu0
  %v1031 = vadd.f32 0.0, %v1030
  %v1032 = vpop.f32.mrf.mxu0
  %v1033 = vpop.f32.mrf.mxu0
  %v1034 = vadd.f32 0.0, %v1033
  %v1035 = vpop.f32.mrf.mxu0
  %1036 = vdwg.mxu0
  %v1037 = vadd.f32 %v989, %v1031
  %v1038 = vadd.f32 %v990, %v1034
  %v1039 = vld [vmem:[#allocation4 + $0x88] sm:$0xff]
  %v1040 = vld [vmem:[#allocation4 + $0x98] sm:$0xff]
  %1041 = vrot.lane.b32.xlu0 %v975, 32
  %v1042 = vpop.permute.xlu0 %1041
  %v1044 = vsel %vm311, %v1042, 0
  %1046 = vmatprep.subr.bf16.mxu0 0
  %1047 = vmatpush1.bf16.msra.mxu0 0
  %1048 = vmatprep.subr.bf16.mxu0 0
  %1049 = vmatpush1.bf16.msra.mxu0 0
  %1050 = vmatprep.subr.bf16.mxu0 0
  %1051 = vmatpush1.bf16.msra.mxu0 0
  %1052 = vmatprep.subr.bf16.mxu0 0
  %1053 = vmatpush1.bf16.msra.mxu0 0
  %1054 = vmatprep.subr.bf16.mxu0 0
  %1055 = vmatpush1.bf16.msra.mxu0 0
  %1056 = vmatprep.subr.bf16.mxu0 0
  %1057 = vmatpush1.bf16.msra.mxu0 0
  %1058 = vmatprep.subr.bf16.mxu0 0
  %1059 = vmatpush1.bf16.msra.mxu0 %v369
  %1060 = vmatprep.subr.bf16.mxu0 0
  %1061 = vmatpush1.bf16.msra.mxu0 %v368
  %1062 = vmatprep.subr.bf16.mxu0 0
  %1063 = vmatpush2.bf16.msra.mxu0 0
  %1064 = vmatprep.subr.bf16.mxu0 0
  %1065 = vmatpush2.bf16.msra.mxu0 0
  %1066 = vmatprep.subr.bf16.mxu0 0
  %1067 = vmatpush2.bf16.msra.mxu0 0
  %1068 = vmatprep.subr.bf16.mxu0 0
  %1069 = vmatpush2.bf16.msra.mxu0 0
  %1070 = vmatprep.subr.bf16.mxu0 0
  %1071 = vmatpush2.bf16.msra.mxu0 0
  %1072 = vmatprep.subr.bf16.mxu0 0
  %1073 = vmatpush2.bf16.msra.mxu0 0
  %1074 = vmatprep.subr.bf16.mxu0 0
  %1075 = vmatpush2.bf16.msra.mxu0 0
  %1076 = vmatprep.subr.bf16.mxu0 0
  %1077 = vmatpush2.bf16.msra.mxu0 0
  %1078 = vmatprep.mubr.bf16.mxu0 0
  %1079 = vmatmul.mubr.bf16.gmra.mxu0 %v1044
  %v1080 = vpop.f32.mrf.mxu0
  %v1081 = vadd.f32 0.0, %v1080
  %v1082 = vpop.f32.mrf.mxu0
  %v1083 = vpop.f32.mrf.mxu0
  %v1084 = vadd.f32 0.0, %v1083
  %v1085 = vpop.f32.mrf.mxu0
  %1086 = vdwg.mxu0
  %v1087 = vadd.f32 %v1039, %v1081
  %v1088 = vadd.f32 %v1040, %v1084
  %v1089 = vxor.u32 %v1037, 2147483648
  %v1090 = vxor.u32 %v1038, 2147483648
  %v1091 = vmul.f32 %v1089, 1.442695
  %v1092 = vpow.pop %v1091
  %v1093 = vmul.f32 %v1090, 1.442695
  %v1094 = vpow.pop %v1093
  %v1095 = vadd.f32 %v1092, 1.0
  %v1096 = vadd.f32 %v1094, 1.0
  %v1097 = vrcp.pop %v1095
  %v1098 = vmul.f32 1.0, %v1097
  %v1099 = vrcp.pop %v1096
  %v1100 = vmul.f32 1.0, %v1099
  %v1101 = vtanh.pop %v1037
  %v1102 = vtanh.pop %v1038
  %v1103 = vmul.f32 %v1098, %v899
  %v1104 = vmul.f32 %v1100, %v900
  %1107 = vrot.lane.b32.xlu0 %v1101, 64
  %v1108 = vpop.permute.xlu0 %1107
  %1109 = vrot.lane.b32.xlu0 %v1102, 64
  %v1110 = vpop.permute.xlu0 %1109
  %v1113 = vmul.f32 %v1098, %v1108
  %v1114 = vmul.f32 %v1100, %v1110
  %1117 = vrot.lane.b32.xlu0 %v1113, 32
  %v1118 = vpop.permute.xlu0 %1117
  %1119 = vrot.lane.b32.xlu0 %v1114, 32
  %v1120 = vpop.permute.xlu0 %1119
  %v1123 = vadd.f32 %v1103, %v1118
  %v1124 = vadd.f32 %v1104, %v1120
  %v1125 = vtanh.pop %v1123
  %v1126 = vtanh.pop %v1124
  %1129 = vrot.lane.b32.xlu0 %v1125, 64
  %v1130 = vpop.permute.xlu0 %1129
  %1131 = vrot.lane.b32.xlu0 %v1126, 64
  %v1132 = vpop.permute.xlu0 %1131
  %v1135 = vmul.f32 %v1098, %v1130
  %v1136 = vmul.f32 %v1100, %v1132
  %v1137 = vxor.u32 %v1087, 2147483648
  %v1138 = vxor.u32 %v1088, 2147483648
  %v1139 = vmul.f32 %v1137, 1.442695
  %v1140 = vpow.pop %v1139
  %v1141 = vmul.f32 %v1138, 1.442695
  %v1142 = vpow.pop %v1141
  %v1143 = vadd.f32 %v1140, 1.0
  %v1144 = vadd.f32 %v1142, 1.0
  %v1145 = vrcp.pop %v1143
  %v1146 = vmul.f32 1.0, %v1145
  %v1147 = vrcp.pop %v1144
  %v1148 = vmul.f32 1.0, %v1147
  %v1149 = vtanh.pop %v1087
  %v1150 = vtanh.pop %v1088
  %v1151 = vmul.f32 %v1146, %v947
  %v1152 = vmul.f32 %v1148, %v948
  %1155 = vrot.lane.b32.xlu0 %v1149, 64
  %v1156 = vpop.permute.xlu0 %1155
  %1157 = vrot.lane.b32.xlu0 %v1150, 64
  %v1158 = vpop.permute.xlu0 %1157
  %v1161 = vmul.f32 %v1146, %v1156
  %v1162 = vmul.f32 %v1148, %v1158
  %1165 = vrot.lane.b32.xlu0 %v1161, 32
  %v1166 = vpop.permute.xlu0 %1165
  %1167 = vrot.lane.b32.xlu0 %v1162, 32
  %v1168 = vpop.permute.xlu0 %1167
  %v1171 = vadd.f32 %v1151, %v1166
  %v1172 = vadd.f32 %v1152, %v1168
  %v1173 = vtanh.pop %v1171
  %v1174 = vtanh.pop %v1172
  %1177 = vrot.lane.b32.xlu0 %v1173, 64
  %v1178 = vpop.permute.xlu0 %1177
  %1179 = vrot.lane.b32.xlu0 %v1174, 64
  %v1180 = vpop.permute.xlu0 %1179
  %v1183 = vmul.f32 %v1146, %v1178
  %v1184 = vmul.f32 %v1148, %v1180
  %v1185 = vpack.c.bf16 %v1136, %v1135
  %v1187 = vunpack.c.l.b16 %v1185
  %v1188 = vunpack.c.h.b16 %v1185
  %v1189 = vpack.c.b16 %v1187, %v1187
  %v1190 = vpack.c.b16 %v1188, %v1188
  %1191 = vrot.lane.b32.xlu0 %v1189, 32
  %v1192 = vpop.permute.xlu0 %1191
  %1193 = vrot.lane.b32.xlu0 %v1190, 32
  %v1194 = vpop.permute.xlu0 %1193
  %1197 = vst.msk [vmem:[#allocation2 + $0x18] sm:$0xf] %vm523, %v1192
  %1198 = vst.msk [vmem:[#allocation2 + $0x1c] sm:$0xf] %vm523, %v1194
  %v1199 = vpack.c.bf16 %v1184, %v1183
  %v1201 = vunpack.c.l.b16 %v1199
  %v1202 = vunpack.c.h.b16 %v1199
  %v1203 = vpack.c.b16 %v1201, %v1201
  %v1204 = vpack.c.b16 %v1202, %v1202
  %1205 = vrot.lane.b32.xlu0 %v1203, 64
  %v1206 = vpop.permute.xlu0 %1205
  %1207 = vrot.lane.b32.xlu0 %v1204, 64
  %v1208 = vpop.permute.xlu0 %1207
  %1211 = vst.msk [vmem:[#allocation2 + $0x20] sm:$0xf] %vm538, %v1206
  %1212 = vst.msk [vmem:[#allocation2 + $0x24] sm:$0xf] %vm538, %v1208
  %v1213 = vld [vmem:[#allocation4 + $0x80] sm:$0xff]
  %v1214 = vld [vmem:[#allocation4 + $0x90] sm:$0xff]
  %1215 = vrot.lane.b32.xlu0 %v1185, 32
  %v1216 = vpop.permute.xlu0 %1215
  %v1218 = vsel %vm311, %v1216, 0
  %1220 = vmatprep.subr.bf16.mxu0 0
  %1221 = vmatpush1.bf16.msra.mxu0 0
  %1222 = vmatprep.subr.bf16.mxu0 0
  %1223 = vmatpush1.bf16.msra.mxu0 0
  %1224 = vmatprep.subr.bf16.mxu0 0
  %1225 = vmatpush1.bf16.msra.mxu0 0
  %1226 = vmatprep.subr.bf16.mxu0 0
  %1227 = vmatpush1.bf16.msra.mxu0 0
  %1228 = vmatprep.subr.bf16.mxu0 0
  %1229 = vmatpush1.bf16.msra.mxu0 0
  %1230 = vmatprep.subr.bf16.mxu0 0
  %1231 = vmatpush1.bf16.msra.mxu0 0
  %1232 = vmatprep.subr.bf16.mxu0 0
  %1233 = vmatpush1.bf16.msra.mxu0 %v308
  %1234 = vmatprep.subr.bf16.mxu0 0
  %1235 = vmatpush1.bf16.msra.mxu0 %v307
  %1236 = vmatprep.subr.bf16.mxu0 0
  %1237 = vmatpush2.bf16.msra.mxu0 0
  %1238 = vmatprep.subr.bf16.mxu0 0
  %1239 = vmatpush2.bf16.msra.mxu0 0
  %1240 = vmatprep.subr.bf16.mxu0 0
  %1241 = vmatpush2.bf16.msra.mxu0 0
  %1242 = vmatprep.subr.bf16.mxu0 0
  %1243 = vmatpush2.bf16.msra.mxu0 0
  %1244 = vmatprep.subr.bf16.mxu0 0
  %1245 = vmatpush2.bf16.msra.mxu0 0
  %1246 = vmatprep.subr.bf16.mxu0 0
  %1247 = vmatpush2.bf16.msra.mxu0 0
  %1248 = vmatprep.subr.bf16.mxu0 0
  %1249 = vmatpush2.bf16.msra.mxu0 0
  %1250 = vmatprep.subr.bf16.mxu0 0
  %1251 = vmatpush2.bf16.msra.mxu0 0
  %1252 = vmatprep.mubr.bf16.mxu0 0
  %1253 = vmatmul.mubr.bf16.gmra.mxu0 %v1218
  %v1254 = vpop.f32.mrf.mxu0
  %v1255 = vadd.f32 0.0, %v1254
  %v1256 = vpop.f32.mrf.mxu0
  %v1257 = vpop.f32.mrf.mxu0
  %v1258 = vadd.f32 0.0, %v1257
  %v1259 = vpop.f32.mrf.mxu0
  %1260 = vdwg.mxu0
  %v1261 = vadd.f32 %v1213, %v1255
  %v1262 = vadd.f32 %v1214, %v1258
  %v1263 = vld [vmem:[#allocation4 + $0x68] sm:$0xff]
  %v1264 = vld [vmem:[#allocation4 + $0x78] sm:$0xff]
  %1265 = vrot.lane.b32.xlu0 %v1199, 32
  %v1266 = vpop.permute.xlu0 %1265
  %v1268 = vsel %vm311, %v1266, 0
  %1270 = vmatprep.subr.bf16.mxu0 0
  %1271 = vmatpush1.bf16.msra.mxu0 0
  %1272 = vmatprep.subr.bf16.mxu0 0
  %1273 = vmatpush1.bf16.msra.mxu0 0
  %1274 = vmatprep.subr.bf16.mxu0 0
  %1275 = vmatpush1.bf16.msra.mxu0 0
  %1276 = vmatprep.subr.bf16.mxu0 0
  %1277 = vmatpush1.bf16.msra.mxu0 0
  %1278 = vmatprep.subr.bf16.mxu0 0
  %1279 = vmatpush1.bf16.msra.mxu0 0
  %1280 = vmatprep.subr.bf16.mxu0 0
  %1281 = vmatpush1.bf16.msra.mxu0 0
  %1282 = vmatprep.subr.bf16.mxu0 0
  %1283 = vmatpush1.bf16.msra.mxu0 %v369
  %1284 = vmatprep.subr.bf16.mxu0 0
  %1285 = vmatpush1.bf16.msra.mxu0 %v368
  %1286 = vmatprep.subr.bf16.mxu0 0
  %1287 = vmatpush2.bf16.msra.mxu0 0
  %1288 = vmatprep.subr.bf16.mxu0 0
  %1289 = vmatpush2.bf16.msra.mxu0 0
  %1290 = vmatprep.subr.bf16.mxu0 0
  %1291 = vmatpush2.bf16.msra.mxu0 0
  %1292 = vmatprep.subr.bf16.mxu0 0
  %1293 = vmatpush2.bf16.msra.mxu0 0
  %1294 = vmatprep.subr.bf16.mxu0 0
  %1295 = vmatpush2.bf16.msra.mxu0 0
  %1296 = vmatprep.subr.bf16.mxu0 0
  %1297 = vmatpush2.bf16.msra.mxu0 0
  %1298 = vmatprep.subr.bf16.mxu0 0
  %1299 = vmatpush2.bf16.msra.mxu0 0
  %1300 = vmatprep.subr.bf16.mxu0 0
  %1301 = vmatpush2.bf16.msra.mxu0 0
  %1302 = vmatprep.mubr.bf16.mxu0 0
  %1303 = vmatmul.mubr.bf16.gmra.mxu0 %v1268
  %v1304 = vpop.f32.mrf.mxu0
  %v1305 = vadd.f32 0.0, %v1304
  %v1306 = vpop.f32.mrf.mxu0
  %v1307 = vpop.f32.mrf.mxu0
  %v1308 = vadd.f32 0.0, %v1307
  %v1309 = vpop.f32.mrf.mxu0
  %1310 = vdwg.mxu0
  %v1311 = vadd.f32 %v1263, %v1305
  %v1312 = vadd.f32 %v1264, %v1308
  %v1313 = vxor.u32 %v1261, 2147483648
  %v1314 = vxor.u32 %v1262, 2147483648
  %v1315 = vmul.f32 %v1313, 1.442695
  %v1316 = vpow.pop %v1315
  %v1317 = vmul.f32 %v1314, 1.442695
  %v1318 = vpow.pop %v1317
  %v1319 = vadd.f32 %v1316, 1.0
  %v1320 = vadd.f32 %v1318, 1.0
  %v1321 = vrcp.pop %v1319
  %v1322 = vmul.f32 1.0, %v1321
  %v1323 = vrcp.pop %v1320
  %v1324 = vmul.f32 1.0, %v1323
  %v1325 = vtanh.pop %v1261
  %v1326 = vtanh.pop %v1262
  %v1327 = vmul.f32 %v1322, %v1123
  %v1328 = vmul.f32 %v1324, %v1124
  %1331 = vrot.lane.b32.xlu0 %v1325, 64
  %v1332 = vpop.permute.xlu0 %1331
  %1333 = vrot.lane.b32.xlu0 %v1326, 64
  %v1334 = vpop.permute.xlu0 %1333
  %v1337 = vmul.f32 %v1322, %v1332
  %v1338 = vmul.f32 %v1324, %v1334
  %1341 = vrot.lane.b32.xlu0 %v1337, 32
  %v1342 = vpop.permute.xlu0 %1341
  %1343 = vrot.lane.b32.xlu0 %v1338, 32
  %v1344 = vpop.permute.xlu0 %1343
  %v1347 = vadd.f32 %v1327, %v1342
  %v1348 = vadd.f32 %v1328, %v1344
  %v1349 = vtanh.pop %v1347
  %v1350 = vtanh.pop %v1348
  %1353 = vrot.lane.b32.xlu0 %v1349, 64
  %v1354 = vpop.permute.xlu0 %1353
  %1355 = vrot.lane.b32.xlu0 %v1350, 64
  %v1356 = vpop.permute.xlu0 %1355
  %v1359 = vmul.f32 %v1322, %v1354
  %v1360 = vmul.f32 %v1324, %v1356
  %v1361 = vxor.u32 %v1311, 2147483648
  %v1362 = vxor.u32 %v1312, 2147483648
  %v1363 = vmul.f32 %v1361, 1.442695
  %v1364 = vpow.pop %v1363
  %v1365 = vmul.f32 %v1362, 1.442695
  %v1366 = vpow.pop %v1365
  %v1367 = vadd.f32 %v1364, 1.0
  %v1368 = vadd.f32 %v1366, 1.0
  %v1369 = vrcp.pop %v1367
  %v1370 = vmul.f32 1.0, %v1369
  %v1371 = vrcp.pop %v1368
  %v1372 = vmul.f32 1.0, %v1371
  %v1373 = vtanh.pop %v1311
  %v1374 = vtanh.pop %v1312
  %v1375 = vmul.f32 %v1370, %v1171
  %v1376 = vmul.f32 %v1372, %v1172
  %1379 = vrot.lane.b32.xlu0 %v1373, 64
  %v1380 = vpop.permute.xlu0 %1379
  %1381 = vrot.lane.b32.xlu0 %v1374, 64
  %v1382 = vpop.permute.xlu0 %1381
  %v1385 = vmul.f32 %v1370, %v1380
  %v1386 = vmul.f32 %v1372, %v1382
  %1389 = vrot.lane.b32.xlu0 %v1385, 32
  %v1390 = vpop.permute.xlu0 %1389
  %1391 = vrot.lane.b32.xlu0 %v1386, 32
  %v1392 = vpop.permute.xlu0 %1391
  %v1395 = vadd.f32 %v1375, %v1390
  %v1396 = vadd.f32 %v1376, %v1392
  %v1397 = vtanh.pop %v1395
  %v1398 = vtanh.pop %v1396
  %1401 = vrot.lane.b32.xlu0 %v1397, 64
  %v1402 = vpop.permute.xlu0 %1401
  %1403 = vrot.lane.b32.xlu0 %v1398, 64
  %v1404 = vpop.permute.xlu0 %1403
  %v1407 = vmul.f32 %v1370, %v1402
  %v1408 = vmul.f32 %v1372, %v1404
  %v1409 = vpack.c.bf16 %v1360, %v1359
  %v1411 = vunpack.c.l.b16 %v1409
  %v1412 = vunpack.c.h.b16 %v1409
  %v1413 = vpack.c.b16 %v1411, %v1411
  %v1414 = vpack.c.b16 %v1412, %v1412
  %1415 = vrot.lane.b32.xlu0 %v1413, 32
  %v1416 = vpop.permute.xlu0 %1415
  %1417 = vrot.lane.b32.xlu0 %v1414, 32
  %v1418 = vpop.permute.xlu0 %1417
  %1421 = vst.msk [vmem:[#allocation2 + $0x20] sm:$0xf] %vm523, %v1416
  %1422 = vst.msk [vmem:[#allocation2 + $0x24] sm:$0xf] %vm523, %v1418
  %v1423 = vpack.c.bf16 %v1408, %v1407
  %v1425 = vunpack.c.l.b16 %v1423
  %v1426 = vunpack.c.h.b16 %v1423
  %v1427 = vpack.c.b16 %v1425, %v1425
  %v1428 = vpack.c.b16 %v1426, %v1426
  %1429 = vrot.lane.b32.xlu0 %v1427, 64
  %v1430 = vpop.permute.xlu0 %1429
  %1431 = vrot.lane.b32.xlu0 %v1428, 64
  %v1432 = vpop.permute.xlu0 %1431
  %1435 = vst.msk [vmem:[#allocation2 + $0x18] sm:$0xf] %vm538, %v1430
  %1436 = vst.msk [vmem:[#allocation2 + $0x1c] sm:$0xf] %vm538, %v1432
  %v1437 = vld [vmem:[#allocation4 + $0xa0] sm:$0xff]
  %v1438 = vld [vmem:[#allocation4 + $0xb0] sm:$0xff]
  %1439 = vrot.lane.b32.xlu0 %v1409, 32
  %v1440 = vpop.permute.xlu0 %1439
  %v1442 = vsel %vm311, %v1440, 0
  %1444 = vmatprep.subr.bf16.mxu0 0
  %1445 = vmatpush1.bf16.msra.mxu0 0
  %1446 = vmatprep.subr.bf16.mxu0 0
  %1447 = vmatpush1.bf16.msra.mxu0 0
  %1448 = vmatprep.subr.bf16.mxu0 0
  %1449 = vmatpush1.bf16.msra.mxu0 0
  %1450 = vmatprep.subr.bf16.mxu0 0
  %1451 = vmatpush1.bf16.msra.mxu0 0
  %1452 = vmatprep.subr.bf16.mxu0 0
  %1453 = vmatpush1.bf16.msra.mxu0 0
  %1454 = vmatprep.subr.bf16.mxu0 0
  %1455 = vmatpush1.bf16.msra.mxu0 0
  %1456 = vmatprep.subr.bf16.mxu0 0
  %1457 = vmatpush1.bf16.msra.mxu0 %v308
  %1458 = vmatprep.subr.bf16.mxu0 0
  %1459 = vmatpush1.bf16.msra.mxu0 %v307
  %1460 = vmatprep.subr.bf16.mxu0 0
  %1461 = vmatpush2.bf16.msra.mxu0 0
  %1462 = vmatprep.subr.bf16.mxu0 0
  %1463 = vmatpush2.bf16.msra.mxu0 0
  %1464 = vmatprep.subr.bf16.mxu0 0
  %1465 = vmatpush2.bf16.msra.mxu0 0
  %1466 = vmatprep.subr.bf16.mxu0 0
  %1467 = vmatpush2.bf16.msra.mxu0 0
  %1468 = vmatprep.subr.bf16.mxu0 0
  %1469 = vmatpush2.bf16.msra.mxu0 0
  %1470 = vmatprep.subr.bf16.mxu0 0
  %1471 = vmatpush2.bf16.msra.mxu0 0
  %1472 = vmatprep.subr.bf16.mxu0 0
  %1473 = vmatpush2.bf16.msra.mxu0 0
  %1474 = vmatprep.subr.bf16.mxu0 0
  %1475 = vmatpush2.bf16.msra.mxu0 0
  %1476 = vmatprep.mubr.bf16.mxu0 0
  %1477 = vmatmul.mubr.bf16.gmra.mxu0 %v1442
  %v1478 = vpop.f32.mrf.mxu0
  %v1479 = vadd.f32 0.0, %v1478
  %v1480 = vpop.f32.mrf.mxu0
  %v1481 = vpop.f32.mrf.mxu0
  %v1482 = vadd.f32 0.0, %v1481
  %v1483 = vpop.f32.mrf.mxu0
  %1484 = vdwg.mxu0
  %v1485 = vadd.f32 %v1437, %v1479
  %v1486 = vadd.f32 %v1438, %v1482
  %v1487 = vld [vmem:[#allocation4 + $0x48] sm:$0xff]
  %v1488 = vld [vmem:[#allocation4 + $0x58] sm:$0xff]
  %1489 = vrot.lane.b32.xlu0 %v1423, 32
  %v1490 = vpop.permute.xlu0 %1489
  %v1492 = vsel %vm311, %v1490, 0
  %1494 = vmatprep.subr.bf16.mxu0 0
  %1495 = vmatpush1.bf16.msra.mxu0 0
  %1496 = vmatprep.subr.bf16.mxu0 0
  %1497 = vmatpush1.bf16.msra.mxu0 0
  %1498 = vmatprep.subr.bf16.mxu0 0
  %1499 = vmatpush1.bf16.msra.mxu0 0
  %1500 = vmatprep.subr.bf16.mxu0 0
  %1501 = vmatpush1.bf16.msra.mxu0 0
  %1502 = vmatprep.subr.bf16.mxu0 0
  %1503 = vmatpush1.bf16.msra.mxu0 0
  %1504 = vmatprep.subr.bf16.mxu0 0
  %1505 = vmatpush1.bf16.msra.mxu0 0
  %1506 = vmatprep.subr.bf16.mxu0 0
  %1507 = vmatpush1.bf16.msra.mxu0 %v369
  %1508 = vmatprep.subr.bf16.mxu0 0
  %1509 = vmatpush1.bf16.msra.mxu0 %v368
  %1510 = vmatprep.subr.bf16.mxu0 0
  %1511 = vmatpush2.bf16.msra.mxu0 0
  %1512 = vmatprep.subr.bf16.mxu0 0
  %1513 = vmatpush2.bf16.msra.mxu0 0
  %1514 = vmatprep.subr.bf16.mxu0 0
  %1515 = vmatpush2.bf16.msra.mxu0 0
  %1516 = vmatprep.subr.bf16.mxu0 0
  %1517 = vmatpush2.bf16.msra.mxu0 0
  %1518 = vmatprep.subr.bf16.mxu0 0
  %1519 = vmatpush2.bf16.msra.mxu0 0
  %1520 = vmatprep.subr.bf16.mxu0 0
  %1521 = vmatpush2.bf16.msra.mxu0 0
  %1522 = vmatprep.subr.bf16.mxu0 0
  %1523 = vmatpush2.bf16.msra.mxu0 0
  %1524 = vmatprep.subr.bf16.mxu0 0
  %1525 = vmatpush2.bf16.msra.mxu0 0
  %1526 = vmatprep.mubr.bf16.mxu0 0
  %1527 = vmatmul.mubr.bf16.gmra.mxu0 %v1492
  %v1528 = vpop.f32.mrf.mxu0
  %v1529 = vadd.f32 0.0, %v1528
  %v1530 = vpop.f32.mrf.mxu0
  %v1531 = vpop.f32.mrf.mxu0
  %v1532 = vadd.f32 0.0, %v1531
  %v1533 = vpop.f32.mrf.mxu0
  %1534 = vdwg.mxu0
  %v1535 = vadd.f32 %v1487, %v1529
  %v1536 = vadd.f32 %v1488, %v1532
  %v1537 = vxor.u32 %v1485, 2147483648
  %v1538 = vxor.u32 %v1486, 2147483648
  %v1539 = vmul.f32 %v1537, 1.442695
  %v1540 = vpow.pop %v1539
  %v1541 = vmul.f32 %v1538, 1.442695
  %v1542 = vpow.pop %v1541
  %v1543 = vadd.f32 %v1540, 1.0
  %v1544 = vadd.f32 %v1542, 1.0
  %v1545 = vrcp.pop %v1543
  %v1546 = vmul.f32 1.0, %v1545
  %v1547 = vrcp.pop %v1544
  %v1548 = vmul.f32 1.0, %v1547
  %v1549 = vtanh.pop %v1485
  %v1550 = vtanh.pop %v1486
  %v1551 = vmul.f32 %v1546, %v1347
  %v1552 = vmul.f32 %v1548, %v1348
  %1555 = vrot.lane.b32.xlu0 %v1549, 64
  %v1556 = vpop.permute.xlu0 %1555
  %1557 = vrot.lane.b32.xlu0 %v1550, 64
  %v1558 = vpop.permute.xlu0 %1557
  %v1561 = vmul.f32 %v1546, %v1556
  %v1562 = vmul.f32 %v1548, %v1558
  %1565 = vrot.lane.b32.xlu0 %v1561, 32
  %v1566 = vpop.permute.xlu0 %1565
  %1567 = vrot.lane.b32.xlu0 %v1562, 32
  %v1568 = vpop.permute.xlu0 %1567
  %v1571 = vadd.f32 %v1551, %v1566
  %v1572 = vadd.f32 %v1552, %v1568
  %v1573 = vtanh.pop %v1571
  %v1574 = vtanh.pop %v1572
  %1577 = vrot.lane.b32.xlu0 %v1573, 64
  %v1578 = vpop.permute.xlu0 %1577
  %1579 = vrot.lane.b32.xlu0 %v1574, 64
  %v1580 = vpop.permute.xlu0 %1579
  %v1583 = vmul.f32 %v1546, %v1578
  %v1584 = vmul.f32 %v1548, %v1580
  %v1585 = vxor.u32 %v1535, 2147483648
  %v1586 = vxor.u32 %v1536, 2147483648
  %v1587 = vmul.f32 %v1585, 1.442695
  %v1588 = vpow.pop %v1587
  %v1589 = vmul.f32 %v1586, 1.442695
  %v1590 = vpow.pop %v1589
  %v1591 = vadd.f32 %v1588, 1.0
  %v1592 = vadd.f32 %v1590, 1.0
  %v1593 = vrcp.pop %v1591
  %v1594 = vmul.f32 1.0, %v1593
  %v1595 = vrcp.pop %v1592
  %v1596 = vmul.f32 1.0, %v1595
  %v1597 = vtanh.pop %v1535
  %v1598 = vtanh.pop %v1536
  %v1599 = vmul.f32 %v1594, %v1395
  %v1600 = vmul.f32 %v1596, %v1396
  %1603 = vrot.lane.b32.xlu0 %v1597, 64
  %v1604 = vpop.permute.xlu0 %1603
  %1605 = vrot.lane.b32.xlu0 %v1598, 64
  %v1606 = vpop.permute.xlu0 %1605
  %v1609 = vmul.f32 %v1594, %v1604
  %v1610 = vmul.f32 %v1596, %v1606
  %1613 = vrot.lane.b32.xlu0 %v1609, 32
  %v1614 = vpop.permute.xlu0 %1613
  %1615 = vrot.lane.b32.xlu0 %v1610, 32
  %v1616 = vpop.permute.xlu0 %1615
  %v1619 = vadd.f32 %v1599, %v1614
  %v1620 = vadd.f32 %v1600, %v1616
  %v1621 = vtanh.pop %v1619
  %v1622 = vtanh.pop %v1620
  %1625 = vrot.lane.b32.xlu0 %v1621, 64
  %v1626 = vpop.permute.xlu0 %1625
  %1627 = vrot.lane.b32.xlu0 %v1622, 64
  %v1628 = vpop.permute.xlu0 %1627
  %v1631 = vmul.f32 %v1594, %v1626
  %v1632 = vmul.f32 %v1596, %v1628
  %v1633 = vpack.c.bf16 %v1584, %v1583
  %v1635 = vunpack.c.l.b16 %v1633
  %v1636 = vunpack.c.h.b16 %v1633
  %v1637 = vpack.c.b16 %v1635, %v1635
  %v1638 = vpack.c.b16 %v1636, %v1636
  %1639 = vrot.lane.b32.xlu0 %v1637, 32
  %v1640 = vpop.permute.xlu0 %1639
  %1641 = vrot.lane.b32.xlu0 %v1638, 32
  %v1642 = vpop.permute.xlu0 %1641
  %1645 = vst.msk [vmem:[#allocation2 + $0x28] sm:$0xf] %vm523, %v1640
  %1646 = vst.msk [vmem:[#allocation2 + $0x2c] sm:$0xf] %vm523, %v1642
  %v1647 = vpack.c.bf16 %v1632, %v1631
  %v1649 = vunpack.c.l.b16 %v1647
  %v1650 = vunpack.c.h.b16 %v1647
  %v1651 = vpack.c.b16 %v1649, %v1649
  %v1652 = vpack.c.b16 %v1650, %v1650
  %1653 = vrot.lane.b32.xlu0 %v1651, 64
  %v1654 = vpop.permute.xlu0 %1653
  %1655 = vrot.lane.b32.xlu0 %v1652, 64
  %v1656 = vpop.permute.xlu0 %1655
  %1659 = vst.msk [vmem:[#allocation2 + $0x10] sm:$0xf] %vm538, %v1654
  %1660 = vst.msk [vmem:[#allocation2 + $0x14] sm:$0xf] %vm538, %v1656
  %v1661 = vld [vmem:[#allocation4 + $0xc0] sm:$0xff]
  %v1662 = vld [vmem:[#allocation4 + $0xd0] sm:$0xff]
  %1663 = vrot.lane.b32.xlu0 %v1633, 32
  %v1664 = vpop.permute.xlu0 %1663
  %v1666 = vsel %vm311, %v1664, 0
  %1668 = vmatprep.subr.bf16.mxu0 0
  %1669 = vmatpush1.bf16.msra.mxu0 0
  %1670 = vmatprep.subr.bf16.mxu0 0
  %1671 = vmatpush1.bf16.msra.mxu0 0
  %1672 = vmatprep.subr.bf16.mxu0 0
  %1673 = vmatpush1.bf16.msra.mxu0 0
  %1674 = vmatprep.subr.bf16.mxu0 0
  %1675 = vmatpush1.bf16.msra.mxu0 0
  %1676 = vmatprep.subr.bf16.mxu0 0
  %1677 = vmatpush1.bf16.msra.mxu0 0
  %1678 = vmatprep.subr.bf16.mxu0 0
  %1679 = vmatpush1.bf16.msra.mxu0 0
  %1680 = vmatprep.subr.bf16.mxu0 0
  %1681 = vmatpush1.bf16.msra.mxu0 %v308
  %1682 = vmatprep.subr.bf16.mxu0 0
  %1683 = vmatpush1.bf16.msra.mxu0 %v307
  %1684 = vmatprep.subr.bf16.mxu0 0
  %1685 = vmatpush2.bf16.msra.mxu0 0
  %1686 = vmatprep.subr.bf16.mxu0 0
  %1687 = vmatpush2.bf16.msra.mxu0 0
  %1688 = vmatprep.subr.bf16.mxu0 0
  %1689 = vmatpush2.bf16.msra.mxu0 0
  %1690 = vmatprep.subr.bf16.mxu0 0
  %1691 = vmatpush2.bf16.msra.mxu0 0
  %1692 = vmatprep.subr.bf16.mxu0 0
  %1693 = vmatpush2.bf16.msra.mxu0 0
  %1694 = vmatprep.subr.bf16.mxu0 0
  %1695 = vmatpush2.bf16.msra.mxu0 0
  %1696 = vmatprep.subr.bf16.mxu0 0
  %1697 = vmatpush2.bf16.msra.mxu0 0
  %1698 = vmatprep.subr.bf16.mxu0 0
  %1699 = vmatpush2.bf16.msra.mxu0 0
  %1700 = vmatprep.mubr.bf16.mxu0 0
  %1701 = vmatmul.mubr.bf16.gmra.mxu0 %v1666
  %v1702 = vpop.f32.mrf.mxu0
  %v1703 = vadd.f32 0.0, %v1702
  %v1704 = vpop.f32.mrf.mxu0
  %v1705 = vpop.f32.mrf.mxu0
  %v1706 = vadd.f32 0.0, %v1705
  %v1707 = vpop.f32.mrf.mxu0
  %1708 = vdwg.mxu0
  %v1709 = vadd.f32 %v1661, %v1703
  %v1710 = vadd.f32 %v1662, %v1706
  %v1711 = vld [vmem:[#allocation4 + $0x28] sm:$0xff]
  %v1712 = vld [vmem:[#allocation4 + $0x38] sm:$0xff]
  %1713 = vrot.lane.b32.xlu0 %v1647, 32
  %v1714 = vpop.permute.xlu0 %1713
  %v1716 = vsel %vm311, %v1714, 0
  %1718 = vmatprep.subr.bf16.mxu0 0
  %1719 = vmatpush1.bf16.msra.mxu0 0
  %1720 = vmatprep.subr.bf16.mxu0 0
  %1721 = vmatpush1.bf16.msra.mxu0 0
  %1722 = vmatprep.subr.bf16.mxu0 0
  %1723 = vmatpush1.bf16.msra.mxu0 0
  %1724 = vmatprep.subr.bf16.mxu0 0
  %1725 = vmatpush1.bf16.msra.mxu0 0
  %1726 = vmatprep.subr.bf16.mxu0 0
  %1727 = vmatpush1.bf16.msra.mxu0 0
  %1728 = vmatprep.subr.bf16.mxu0 0
  %1729 = vmatpush1.bf16.msra.mxu0 0
  %1730 = vmatprep.subr.bf16.mxu0 0
  %1731 = vmatpush1.bf16.msra.mxu0 %v369
  %1732 = vmatprep.subr.bf16.mxu0 0
  %1733 = vmatpush1.bf16.msra.mxu0 %v368
  %1734 = vmatprep.subr.bf16.mxu0 0
  %1735 = vmatpush2.bf16.msra.mxu0 0
  %1736 = vmatprep.subr.bf16.mxu0 0
  %1737 = vmatpush2.bf16.msra.mxu0 0
  %1738 = vmatprep.subr.bf16.mxu0 0
  %1739 = vmatpush2.bf16.msra.mxu0 0
  %1740 = vmatprep.subr.bf16.mxu0 0
  %1741 = vmatpush2.bf16.msra.mxu0 0
  %1742 = vmatprep.subr.bf16.mxu0 0
  %1743 = vmatpush2.bf16.msra.mxu0 0
  %1744 = vmatprep.subr.bf16.mxu0 0
  %1745 = vmatpush2.bf16.msra.mxu0 0
  %1746 = vmatprep.subr.bf16.mxu0 0
  %1747 = vmatpush2.bf16.msra.mxu0 0
  %1748 = vmatprep.subr.bf16.mxu0 0
  %1749 = vmatpush2.bf16.msra.mxu0 0
  %1750 = vmatprep.mubr.bf16.mxu0 0
  %1751 = vmatmul.mubr.bf16.gmra.mxu0 %v1716
  %v1752 = vpop.f32.mrf.mxu0
  %v1753 = vadd.f32 0.0, %v1752
  %v1754 = vpop.f32.mrf.mxu0
  %v1755 = vpop.f32.mrf.mxu0
  %v1756 = vadd.f32 0.0, %v1755
  %v1757 = vpop.f32.mrf.mxu0
  %1758 = vdwg.mxu0
  %v1759 = vadd.f32 %v1711, %v1753
  %v1760 = vadd.f32 %v1712, %v1756
  %v1761 = vxor.u32 %v1709, 2147483648
  %v1762 = vxor.u32 %v1710, 2147483648
  %v1763 = vmul.f32 %v1761, 1.442695
  %v1764 = vpow.pop %v1763
  %v1765 = vmul.f32 %v1762, 1.442695
  %v1766 = vpow.pop %v1765
  %v1767 = vadd.f32 %v1764, 1.0
  %v1768 = vadd.f32 %v1766, 1.0
  %v1769 = vrcp.pop %v1767
  %v1770 = vmul.f32 1.0, %v1769
  %v1771 = vrcp.pop %v1768
  %v1772 = vmul.f32 1.0, %v1771
  %v1773 = vtanh.pop %v1709
  %v1774 = vtanh.pop %v1710
  %v1775 = vmul.f32 %v1770, %v1571
  %v1776 = vmul.f32 %v1772, %v1572
  %1779 = vrot.lane.b32.xlu0 %v1773, 64
  %v1780 = vpop.permute.xlu0 %1779
  %1781 = vrot.lane.b32.xlu0 %v1774, 64
  %v1782 = vpop.permute.xlu0 %1781
  %v1785 = vmul.f32 %v1770, %v1780
  %v1786 = vmul.f32 %v1772, %v1782
  %1789 = vrot.lane.b32.xlu0 %v1785, 32
  %v1790 = vpop.permute.xlu0 %1789
  %1791 = vrot.lane.b32.xlu0 %v1786, 32
  %v1792 = vpop.permute.xlu0 %1791
  %v1795 = vadd.f32 %v1775, %v1790
  %v1796 = vadd.f32 %v1776, %v1792
  %v1797 = vtanh.pop %v1795
  %v1798 = vtanh.pop %v1796
  %1801 = vrot.lane.b32.xlu0 %v1797, 64
  %v1802 = vpop.permute.xlu0 %1801
  %1803 = vrot.lane.b32.xlu0 %v1798, 64
  %v1804 = vpop.permute.xlu0 %1803
  %v1807 = vmul.f32 %v1770, %v1802
  %v1808 = vmul.f32 %v1772, %v1804
  %v1809 = vxor.u32 %v1759, 2147483648
  %v1810 = vxor.u32 %v1760, 2147483648
  %v1811 = vmul.f32 %v1809, 1.442695
  %v1812 = vpow.pop %v1811
  %v1813 = vmul.f32 %v1810, 1.442695
  %v1814 = vpow.pop %v1813
  %v1815 = vadd.f32 %v1812, 1.0
  %v1816 = vadd.f32 %v1814, 1.0
  %v1817 = vrcp.pop %v1815
  %v1818 = vmul.f32 1.0, %v1817
  %v1819 = vrcp.pop %v1816
  %v1820 = vmul.f32 1.0, %v1819
  %v1821 = vtanh.pop %v1759
  %v1822 = vtanh.pop %v1760
  %v1823 = vmul.f32 %v1818, %v1619
  %v1824 = vmul.f32 %v1820, %v1620
  %1827 = vrot.lane.b32.xlu0 %v1821, 64
  %v1828 = vpop.permute.xlu0 %1827
  %1829 = vrot.lane.b32.xlu0 %v1822, 64
  %v1830 = vpop.permute.xlu0 %1829
  %v1833 = vmul.f32 %v1818, %v1828
  %v1834 = vmul.f32 %v1820, %v1830
  %1837 = vrot.lane.b32.xlu0 %v1833, 32
  %v1838 = vpop.permute.xlu0 %1837
  %1839 = vrot.lane.b32.xlu0 %v1834, 32
  %v1840 = vpop.permute.xlu0 %1839
  %v1843 = vadd.f32 %v1823, %v1838
  %v1844 = vadd.f32 %v1824, %v1840
  %v1845 = vtanh.pop %v1843
  %v1846 = vtanh.pop %v1844
  %1849 = vrot.lane.b32.xlu0 %v1845, 64
  %v1850 = vpop.permute.xlu0 %1849
  %1851 = vrot.lane.b32.xlu0 %v1846, 64
  %v1852 = vpop.permute.xlu0 %1851
  %v1855 = vmul.f32 %v1818, %v1850
  %v1856 = vmul.f32 %v1820, %v1852
  %v1857 = vpack.c.bf16 %v1808, %v1807
  %v1859 = vunpack.c.l.b16 %v1857
  %v1860 = vunpack.c.h.b16 %v1857
  %v1861 = vpack.c.b16 %v1859, %v1859
  %v1862 = vpack.c.b16 %v1860, %v1860
  %1863 = vrot.lane.b32.xlu0 %v1861, 32
  %v1864 = vpop.permute.xlu0 %1863
  %1865 = vrot.lane.b32.xlu0 %v1862, 32
  %v1866 = vpop.permute.xlu0 %1865
  %1869 = vst.msk [vmem:[#allocation2 + $0x30] sm:$0xf] %vm523, %v1864
  %1870 = vst.msk [vmem:[#allocation2 + $0x34] sm:$0xf] %vm523, %v1866
  %v1871 = vpack.c.bf16 %v1856, %v1855
  %v1873 = vunpack.c.l.b16 %v1871
  %v1874 = vunpack.c.h.b16 %v1871
  %v1875 = vpack.c.b16 %v1873, %v1873
  %v1876 = vpack.c.b16 %v1874, %v1874
  %1877 = vrot.lane.b32.xlu0 %v1875, 64
  %v1878 = vpop.permute.xlu0 %1877
  %1879 = vrot.lane.b32.xlu0 %v1876, 64
  %v1880 = vpop.permute.xlu0 %1879
  %1883 = vst.msk [vmem:[#allocation2 + $0x8] sm:$0xf] %vm538, %v1878
  %1884 = vst.msk [vmem:[#allocation2 + $0xc] sm:$0xf] %vm538, %v1880
  %v1885 = vld [vmem:[#allocation4 + $0xe0] sm:$0xff]
  %v1886 = vld [vmem:[#allocation4 + $0xf0] sm:$0xff]
  %1887 = vrot.lane.b32.xlu0 %v1857, 32
  %v1888 = vpop.permute.xlu0 %1887
  %v1890 = vsel %vm311, %v1888, 0
  %1892 = vmatprep.subr.bf16.mxu0 0
  %1893 = vmatpush1.bf16.msra.mxu0 0
  %1894 = vmatprep.subr.bf16.mxu0 0
  %1895 = vmatpush1.bf16.msra.mxu0 0
  %1896 = vmatprep.subr.bf16.mxu0 0
  %1897 = vmatpush1.bf16.msra.mxu0 0
  %1898 = vmatprep.subr.bf16.mxu0 0
  %1899 = vmatpush1.bf16.msra.mxu0 0
  %1900 = vmatprep.subr.bf16.mxu0 0
  %1901 = vmatpush1.bf16.msra.mxu0 0
  %1902 = vmatprep.subr.bf16.mxu0 0
  %1903 = vmatpush1.bf16.msra.mxu0 0
  %1904 = vmatprep.subr.bf16.mxu0 0
  %1905 = vmatpush1.bf16.msra.mxu0 %v308
  %1906 = vmatprep.subr.bf16.mxu0 0
  %1907 = vmatpush1.bf16.msra.mxu0 %v307
  %1908 = vmatprep.subr.bf16.mxu0 0
  %1909 = vmatpush2.bf16.msra.mxu0 0
  %1910 = vmatprep.subr.bf16.mxu0 0
  %1911 = vmatpush2.bf16.msra.mxu0 0
  %1912 = vmatprep.subr.bf16.mxu0 0
  %1913 = vmatpush2.bf16.msra.mxu0 0
  %1914 = vmatprep.subr.bf16.mxu0 0
  %1915 = vmatpush2.bf16.msra.mxu0 0
  %1916 = vmatprep.subr.bf16.mxu0 0
  %1917 = vmatpush2.bf16.msra.mxu0 0
  %1918 = vmatprep.subr.bf16.mxu0 0
  %1919 = vmatpush2.bf16.msra.mxu0 0
  %1920 = vmatprep.subr.bf16.mxu0 0
  %1921 = vmatpush2.bf16.msra.mxu0 0
  %1922 = vmatprep.subr.bf16.mxu0 0
  %1923 = vmatpush2.bf16.msra.mxu0 0
  %1924 = vmatprep.mubr.bf16.mxu0 0
  %1925 = vmatmul.mubr.bf16.gmra.mxu0 %v1890
  %v1926 = vpop.f32.mrf.mxu0
  %v1927 = vadd.f32 0.0, %v1926
  %v1928 = vpop.f32.mrf.mxu0
  %v1929 = vpop.f32.mrf.mxu0
  %v1930 = vadd.f32 0.0, %v1929
  %v1931 = vpop.f32.mrf.mxu0
  %1932 = vdwg.mxu0
  %v1933 = vadd.f32 %v1885, %v1927
  %v1934 = vadd.f32 %v1886, %v1930
  %v1935 = vld [vmem:[#allocation4 + $0x8] sm:$0xff]
  %v1936 = vld [vmem:[#allocation4 + $0x18] sm:$0xff]
  %1937 = vrot.lane.b32.xlu0 %v1871, 32
  %v1938 = vpop.permute.xlu0 %1937
  %v1940 = vsel %vm311, %v1938, 0
  %1942 = vmatprep.subr.bf16.mxu0 0
  %1943 = vmatpush1.bf16.msra.mxu0 0
  %1944 = vmatprep.subr.bf16.mxu0 0
  %1945 = vmatpush1.bf16.msra.mxu0 0
  %1946 = vmatprep.subr.bf16.mxu0 0
  %1947 = vmatpush1.bf16.msra.mxu0 0
  %1948 = vmatprep.subr.bf16.mxu0 0
  %1949 = vmatpush1.bf16.msra.mxu0 0
  %1950 = vmatprep.subr.bf16.mxu0 0
  %1951 = vmatpush1.bf16.msra.mxu0 0
  %1952 = vmatprep.subr.bf16.mxu0 0
  %1953 = vmatpush1.bf16.msra.mxu0 0
  %1954 = vmatprep.subr.bf16.mxu0 0
  %1955 = vmatpush1.bf16.msra.mxu0 %v369
  %1956 = vmatprep.subr.bf16.mxu0 0
  %1957 = vmatpush1.bf16.msra.mxu0 %v368
  %1958 = vmatprep.subr.bf16.mxu0 0
  %1959 = vmatpush2.bf16.msra.mxu0 0
  %1960 = vmatprep.subr.bf16.mxu0 0
  %1961 = vmatpush2.bf16.msra.mxu0 0
  %1962 = vmatprep.subr.bf16.mxu0 0
  %1963 = vmatpush2.bf16.msra.mxu0 0
  %1964 = vmatprep.subr.bf16.mxu0 0
  %1965 = vmatpush2.bf16.msra.mxu0 0
  %1966 = vmatprep.subr.bf16.mxu0 0
  %1967 = vmatpush2.bf16.msra.mxu0 0
  %1968 = vmatprep.subr.bf16.mxu0 0
  %1969 = vmatpush2.bf16.msra.mxu0 0
  %1970 = vmatprep.subr.bf16.mxu0 0
  %1971 = vmatpush2.bf16.msra.mxu0 0
  %1972 = vmatprep.subr.bf16.mxu0 0
  %1973 = vmatpush2.bf16.msra.mxu0 0
  %1974 = vmatprep.mubr.bf16.mxu0 0
  %1975 = vmatmul.mubr.bf16.gmra.mxu0 %v1940
  %v1976 = vpop.f32.mrf.mxu0
  %v1977 = vadd.f32 0.0, %v1976
  %v1978 = vpop.f32.mrf.mxu0
  %v1979 = vpop.f32.mrf.mxu0
  %v1980 = vadd.f32 0.0, %v1979
  %v1981 = vpop.f32.mrf.mxu0
  %1982 = vdwg.mxu0
  %v1983 = vadd.f32 %v1935, %v1977
  %v1984 = vadd.f32 %v1936, %v1980
  %v1985 = vxor.u32 %v1933, 2147483648
  %v1986 = vxor.u32 %v1934, 2147483648
  %v1987 = vmul.f32 %v1985, 1.442695
  %v1988 = vpow.pop %v1987
  %v1989 = vmul.f32 %v1986, 1.442695
  %v1990 = vpow.pop %v1989
  %v1991 = vadd.f32 %v1988, 1.0
  %v1992 = vadd.f32 %v1990, 1.0
  %v1993 = vrcp.pop %v1991
  %v1994 = vmul.f32 1.0, %v1993
  %v1995 = vrcp.pop %v1992
  %v1996 = vmul.f32 1.0, %v1995
  %v1997 = vtanh.pop %v1933
  %v1998 = vtanh.pop %v1934
  %v1999 = vmul.f32 %v1994, %v1795
  %v2000 = vmul.f32 %v1996, %v1796
  %2003 = vrot.lane.b32.xlu0 %v1997, 64
  %v2004 = vpop.permute.xlu0 %2003
  %2005 = vrot.lane.b32.xlu0 %v1998, 64
  %v2006 = vpop.permute.xlu0 %2005
  %v2009 = vmul.f32 %v1994, %v2004
  %v2010 = vmul.f32 %v1996, %v2006
  %2013 = vrot.lane.b32.xlu0 %v2009, 32
  %v2014 = vpop.permute.xlu0 %2013
  %2015 = vrot.lane.b32.xlu0 %v2010, 32
  %v2016 = vpop.permute.xlu0 %2015
  %v2019 = vadd.f32 %v1999, %v2014
  %v2020 = vadd.f32 %v2000, %v2016
  %v2021 = vtanh.pop %v2019
  %v2022 = vtanh.pop %v2020
  %2025 = vrot.lane.b32.xlu0 %v2021, 64
  %v2026 = vpop.permute.xlu0 %2025
  %2027 = vrot.lane.b32.xlu0 %v2022, 64
  %v2028 = vpop.permute.xlu0 %2027
  %v2031 = vmul.f32 %v1994, %v2026
  %v2032 = vmul.f32 %v1996, %v2028
  %v2033 = vxor.u32 %v1983, 2147483648
  %v2034 = vxor.u32 %v1984, 2147483648
  %v2035 = vmul.f32 %v2033, 1.442695
  %v2036 = vpow.pop %v2035
  %v2037 = vmul.f32 %v2034, 1.442695
  %v2038 = vpow.pop %v2037
  %v2039 = vadd.f32 %v2036, 1.0
  %v2040 = vadd.f32 %v2038, 1.0
  %v2041 = vrcp.pop %v2039
  %v2042 = vmul.f32 1.0, %v2041
  %v2043 = vrcp.pop %v2040
  %v2044 = vmul.f32 1.0, %v2043
  %v2045 = vtanh.pop %v1983
  %v2046 = vtanh.pop %v1984
  %v2047 = vmul.f32 %v2042, %v1843
  %v2048 = vmul.f32 %v2044, %v1844
  %2051 = vrot.lane.b32.xlu0 %v2045, 64
  %v2052 = vpop.permute.xlu0 %2051
  %2053 = vrot.lane.b32.xlu0 %v2046, 64
  %v2054 = vpop.permute.xlu0 %2053
  %v2057 = vmul.f32 %v2042, %v2052
  %v2058 = vmul.f32 %v2044, %v2054
  %2061 = vrot.lane.b32.xlu0 %v2057, 32
  %v2062 = vpop.permute.xlu0 %2061
  %2063 = vrot.lane.b32.xlu0 %v2058, 32
  %v2064 = vpop.permute.xlu0 %2063
  %v2067 = vadd.f32 %v2047, %v2062
  %v2068 = vadd.f32 %v2048, %v2064
  %v2069 = vtanh.pop %v2067
  %v2070 = vtanh.pop %v2068
  %2073 = vrot.lane.b32.xlu0 %v2069, 64
  %v2074 = vpop.permute.xlu0 %2073
  %2075 = vrot.lane.b32.xlu0 %v2070, 64
  %v2076 = vpop.permute.xlu0 %2075
  %v2079 = vmul.f32 %v2042, %v2074
  %v2080 = vmul.f32 %v2044, %v2076
  %v2081 = vpack.c.bf16 %v2032, %v2031
  %v2083 = vunpack.c.l.b16 %v2081
  %v2084 = vunpack.c.h.b16 %v2081
  %v2085 = vpack.c.b16 %v2083, %v2083
  %v2086 = vpack.c.b16 %v2084, %v2084
  %2087 = vrot.lane.b32.xlu0 %v2085, 32
  %v2088 = vpop.permute.xlu0 %2087
  %2089 = vrot.lane.b32.xlu0 %v2086, 32
  %v2090 = vpop.permute.xlu0 %2089
  %2093 = vst.msk [vmem:[#allocation2 + $0x38] sm:$0xf] %vm523, %v2088
  %2094 = vst.msk [vmem:[#allocation2 + $0x3c] sm:$0xf] %vm523, %v2090
  %v2095 = vpack.c.bf16 %v2080, %v2079
  %v2097 = vunpack.c.l.b16 %v2095
  %v2098 = vunpack.c.h.b16 %v2095
  %v2099 = vpack.c.b16 %v2097, %v2097
  %v2100 = vpack.c.b16 %v2098, %v2098
  %2101 = vrot.lane.b32.xlu0 %v2099, 64
  %v2102 = vpop.permute.xlu0 %2101
  %2103 = vrot.lane.b32.xlu0 %v2100, 64
  %v2104 = vpop.permute.xlu0 %2103
  %2107 = vst.msk [vmem:[#allocation2] sm:$0xf] %vm538, %v2102
  %2108 = vst.msk [vmem:[#allocation2 + $0x4] sm:$0xf] %vm538, %v2104
  %v2109 = vld [vmem:[#allocation2] sm:$0xf]
  %v2110 = vld [vmem:[#allocation2 + $0x4] sm:$0xf]
  %v2111 = vld [vmem:[#allocation2 + $0x8] sm:$0xf]
  %v2112 = vld [vmem:[#allocation2 + $0xc] sm:$0xf]
  %v2113 = vld [vmem:[#allocation2 + $0x10] sm:$0xf]
  %v2114 = vld [vmem:[#allocation2 + $0x14] sm:$0xf]
  %v2115 = vld [vmem:[#allocation2 + $0x18] sm:$0xf]
  %v2116 = vld [vmem:[#allocation2 + $0x1c] sm:$0xf]
  %v2117 = vld [vmem:[#allocation2 + $0x20] sm:$0xf]
  %v2118 = vld [vmem:[#allocation2 + $0x24] sm:$0xf]
  %v2119 = vld [vmem:[#allocation2 + $0x28] sm:$0xf]
  %v2120 = vld [vmem:[#allocation2 + $0x2c] sm:$0xf]
  %v2121 = vld [vmem:[#allocation2 + $0x30] sm:$0xf]
  %v2122 = vld [vmem:[#allocation2 + $0x34] sm:$0xf]
  %v2123 = vld [vmem:[#allocation2 + $0x38] sm:$0xf]
  %v2124 = vld [vmem:[#allocation2 + $0x3c] sm:$0xf]
  %v2125 = vld [vmem:[%s5] sm:$0xff]
  %v2126 = vld [vmem:[%s5 + $0x8] sm:$0xff]
  %v2127 = vld [vmem:[%s5 + $0x10] sm:$0xff]
  %v2128 = vld [vmem:[%s5 + $0x18] sm:$0xff]
  %v2129 = vld [vmem:[%s5 + $0x20] sm:$0xff]
  %v2130 = vld [vmem:[%s5 + $0x28] sm:$0xff]
  %v2131 = vld [vmem:[%s5 + $0x30] sm:$0xff]
  %v2132 = vld [vmem:[%s5 + $0x38] sm:$0xff]
  %v2133 = vld [vmem:[%s6] sm:$0x3]
  %v2135 = vlaneseq
  %v2136 = vshrl.u32 %v2135, 7
  %v2137 = vsub.s32 0, %v2136
  %v2138 = vrot.slane %v2133, %v2137
  %v2139 = vlaneseq
  %v2140 = vshrl.u32 %v2139, 7
  %v2141 = vsub.s32 1, %v2140
  %v2142 = vrot.slane %v2133, %v2141
  %v2161 = vunpack.c.l.b16 %v2109
  %v2162 = vunpack.c.l.b16 %v2110
  %v2163 = vunpack.c.l.b16 %v2111
  %v2164 = vunpack.c.l.b16 %v2112
  %v2165 = vunpack.c.l.b16 %v2113
  %v2166 = vunpack.c.l.b16 %v2114
  %v2167 = vunpack.c.l.b16 %v2115
  %v2168 = vunpack.c.l.b16 %v2116
  %v2169 = vunpack.c.l.b16 %v2117
  %v2170 = vunpack.c.l.b16 %v2118
  %v2171 = vunpack.c.l.b16 %v2119
  %v2172 = vunpack.c.l.b16 %v2120
  %v2173 = vunpack.c.l.b16 %v2121
  %v2174 = vunpack.c.l.b16 %v2122
  %v2175 = vunpack.c.l.b16 %v2123
  %v2176 = vunpack.c.l.b16 %v2124
  %v2177 = vpack.c.b16 %v2162, %v2161
  %v2178 = vpack.c.b16 %v2164, %v2163
  %v2179 = vpack.c.b16 %v2166, %v2165
  %v2180 = vpack.c.b16 %v2168, %v2167
  %v2181 = vpack.c.b16 %v2170, %v2169
  %v2182 = vpack.c.b16 %v2172, %v2171
  %v2183 = vpack.c.b16 %v2174, %v2173
  %v2184 = vpack.c.b16 %v2176, %v2175
  %v2193 = vunpack.c.l.b16 %v2125
  %v2194 = vunpack.c.h.b16 %v2125
  %v2195 = vunpack.c.l.b16 %v2126
  %v2196 = vunpack.c.h.b16 %v2126
  %v2197 = vunpack.c.l.b16 %v2127
  %v2198 = vunpack.c.h.b16 %v2127
  %v2199 = vunpack.c.l.b16 %v2128
  %v2200 = vunpack.c.h.b16 %v2128
  %v2201 = vunpack.c.l.b16 %v2129
  %v2202 = vunpack.c.h.b16 %v2129
  %v2203 = vunpack.c.l.b16 %v2130
  %v2204 = vunpack.c.h.b16 %v2130
  %v2205 = vunpack.c.l.b16 %v2131
  %v2206 = vunpack.c.h.b16 %v2131
  %v2207 = vunpack.c.l.b16 %v2132
  %v2208 = vunpack.c.h.b16 %v2132
  %v2209 = vpack.c.b16 %v2195, %v2193
  %v2210 = vpack.c.b16 %v2196, %v2194
  %v2211 = vpack.c.b16 %v2199, %v2197
  %v2212 = vpack.c.b16 %v2200, %v2198
  %v2213 = vpack.c.b16 %v2203, %v2201
  %v2214 = vpack.c.b16 %v2204, %v2202
  %v2215 = vpack.c.b16 %v2207, %v2205
  %v2216 = vpack.c.b16 %v2208, %v2206
  %vm2225 = vcmask 523264
  %v2227 = vsel %vm2225, %v2177, 0
  %v2230 = vsel %vm2225, %v2178, 0
  %v2233 = vsel %vm2225, %v2179, 0
  %v2236 = vsel %vm2225, %v2180, 0
  %v2239 = vsel %vm2225, %v2181, 0
  %v2242 = vsel %vm2225, %v2182, 0
  %v2245 = vsel %vm2225, %v2183, 0
  %v2248 = vsel %vm2225, %v2184, 0
  %2250 = vmatprep.subr.bf16.mxu0 0
  %2251 = vmatpush1.bf16.msra.mxu0 0
  %2252 = vmatprep.subr.bf16.mxu0 0
  %2253 = vmatpush1.bf16.msra.mxu0 0
  %2254 = vmatprep.subr.bf16.mxu0 0
  %2255 = vmatpush1.bf16.msra.mxu0 0
  %2256 = vmatprep.subr.bf16.mxu0 0
  %2257 = vmatpush1.bf16.msra.mxu0 0
  %2258 = vmatprep.subr.bf16.mxu0 %v2216
  %2259 = vmatpush1.bf16.msra.mxu0 %v2215
  %2260 = vmatprep.subr.bf16.mxu0 %v2214
  %2261 = vmatpush1.bf16.msra.mxu0 %v2213
  %2262 = vmatprep.subr.bf16.mxu0 %v2212
  %2263 = vmatpush1.bf16.msra.mxu0 %v2211
  %2264 = vmatprep.subr.bf16.mxu0 %v2210
  %2265 = vmatpush1.bf16.msra.mxu0 %v2209
  %2266 = vmatprep.subr.bf16.mxu0 0
  %2267 = vmatpush2.bf16.msra.mxu0 0
  %2268 = vmatprep.subr.bf16.mxu0 0
  %2269 = vmatpush2.bf16.msra.mxu0 0
  %2270 = vmatprep.subr.bf16.mxu0 0
  %2271 = vmatpush2.bf16.msra.mxu0 0
  %2272 = vmatprep.subr.bf16.mxu0 0
  %2273 = vmatpush2.bf16.msra.mxu0 0
  %2274 = vmatprep.subr.bf16.mxu0 0
  %2275 = vmatpush2.bf16.msra.mxu0 0
  %2276 = vmatprep.subr.bf16.mxu0 0
  %2277 = vmatpush2.bf16.msra.mxu0 0
  %2278 = vmatprep.subr.bf16.mxu0 0
  %2279 = vmatpush2.bf16.msra.mxu0 0
  %2280 = vmatprep.subr.bf16.mxu0 0
  %2281 = vmatpush2.bf16.msra.mxu0 0
  %2282 = vmatprep.mubr.bf16.mxu0 0
  %2283 = vmatmul.mubr.bf16.gmra.mxu0 %v2227
  %v2284 = vpop.f32.mrf.mxu0
  %v2285 = vadd.f32 %v2138, %v2284
  %v2286 = vpop.f32.mrf.mxu0
  %v2287 = vadd.f32 %v2142, %v2286
  %v2288 = vpop.f32.mrf.mxu0
  %v2289 = vadd.f32 %v2138, %v2288
  %v2290 = vpop.f32.mrf.mxu0
  %v2291 = vadd.f32 %v2142, %v2290
  %2292 = vmatprep.mubr.bf16.mxu0 0
  %2293 = vmatmul.mubr.bf16.gmra.mxu0 %v2230
  %v2294 = vpop.f32.mrf.mxu0
  %v2295 = vadd.f32 %v2138, %v2294
  %v2296 = vpop.f32.mrf.mxu0
  %v2297 = vadd.f32 %v2142, %v2296
  %v2298 = vpop.f32.mrf.mxu0
  %v2299 = vadd.f32 %v2138, %v2298
  %v2300 = vpop.f32.mrf.mxu0
  %v2301 = vadd.f32 %v2142, %v2300
  %2302 = vmatprep.mubr.bf16.mxu0 0
  %2303 = vmatmul.mubr.bf16.gmra.mxu0 %v2233
  %v2304 = vpop.f32.mrf.mxu0
  %v2305 = vadd.f32 %v2138, %v2304
  %v2306 = vpop.f32.mrf.mxu0
  %v2307 = vadd.f32 %v2142, %v2306
  %v2308 = vpop.f32.mrf.mxu0
  %v2309 = vadd.f32 %v2138, %v2308
  %v2310 = vpop.f32.mrf.mxu0
  %v2311 = vadd.f32 %v2142, %v2310
  %2312 = vmatprep.mubr.bf16.mxu0 0
  %2313 = vmatmul.mubr.bf16.gmra.mxu0 %v2236
  %v2314 = vpop.f32.mrf.mxu0
  %v2315 = vadd.f32 %v2138, %v2314
  %v2316 = vpop.f32.mrf.mxu0
  %v2317 = vadd.f32 %v2142, %v2316
  %v2318 = vpop.f32.mrf.mxu0
  %v2319 = vadd.f32 %v2138, %v2318
  %v2320 = vpop.f32.mrf.mxu0
  %v2321 = vadd.f32 %v2142, %v2320
  %2322 = vmatprep.mubr.bf16.mxu0 0
  %2323 = vmatmul.mubr.bf16.gmra.mxu0 %v2239
  %v2324 = vpop.f32.mrf.mxu0
  %v2325 = vadd.f32 %v2138, %v2324
  %v2326 = vpop.f32.mrf.mxu0
  %v2327 = vadd.f32 %v2142, %v2326
  %v2328 = vpop.f32.mrf.mxu0
  %v2329 = vadd.f32 %v2138, %v2328
  %v2330 = vpop.f32.mrf.mxu0
  %v2331 = vadd.f32 %v2142, %v2330
  %2332 = vmatprep.mubr.bf16.mxu0 0
  %2333 = vmatmul.mubr.bf16.gmra.mxu0 %v2242
  %v2334 = vpop.f32.mrf.mxu0
  %v2335 = vadd.f32 %v2138, %v2334
  %v2336 = vpop.f32.mrf.mxu0
  %v2337 = vadd.f32 %v2142, %v2336
  %v2338 = vpop.f32.mrf.mxu0
  %v2339 = vadd.f32 %v2138, %v2338
  %v2340 = vpop.f32.mrf.mxu0
  %v2341 = vadd.f32 %v2142, %v2340
  %2342 = vmatprep.mubr.bf16.mxu0 0
  %2343 = vmatmul.mubr.bf16.gmra.mxu0 %v2245
  %v2344 = vpop.f32.mrf.mxu0
  %v2345 = vadd.f32 %v2138, %v2344
  %v2346 = vpop.f32.mrf.mxu0
  %v2347 = vadd.f32 %v2142, %v2346
  %v2348 = vpop.f32.mrf.mxu0
  %v2349 = vadd.f32 %v2138, %v2348
  %v2350 = vpop.f32.mrf.mxu0
  %v2351 = vadd.f32 %v2142, %v2350
  %2352 = vmatprep.mubr.bf16.mxu0 0
  %2353 = vmatmul.mubr.bf16.gmra.mxu0 %v2248
  %v2354 = vpop.f32.mrf.mxu0
  %v2355 = vadd.f32 %v2138, %v2354
  %v2356 = vpop.f32.mrf.mxu0
  %v2357 = vadd.f32 %v2142, %v2356
  %v2358 = vpop.f32.mrf.mxu0
  %v2359 = vadd.f32 %v2138, %v2358
  %v2360 = vpop.f32.mrf.mxu0
  %v2361 = vadd.f32 %v2142, %v2360
  %2362 = vdwg.mxu0
  %2363 = vst [vmem:[#allocation4] sm:$0xff] %v2285
  %2364 = vst [vmem:[#allocation4 + $0x8] sm:$0xff] %v2287
  %2365 = vst [vmem:[#allocation4 + $0x10] sm:$0xff] %v2289
  %2366 = vst [vmem:[#allocation4 + $0x18] sm:$0xff] %v2291
  %2367 = vst [vmem:[#allocation4 + $0x20] sm:$0xff] %v2295
  %2368 = vst [vmem:[#allocation4 + $0x28] sm:$0xff] %v2297
  %2369 = vst [vmem:[#allocation4 + $0x30] sm:$0xff] %v2299
  %2370 = vst [vmem:[#allocation4 + $0x38] sm:$0xff] %v2301
  %2371 = vst [vmem:[#allocation4 + $0x40] sm:$0xff] %v2305
  %2372 = vst [vmem:[#allocation4 + $0x48] sm:$0xff] %v2307
  %2373 = vst [vmem:[#allocation4 + $0x50] sm:$0xff] %v2309
  %2374 = vst [vmem:[#allocation4 + $0x58] sm:$0xff] %v2311
  %2375 = vst [vmem:[#allocation4 + $0x60] sm:$0xff] %v2315
  %2376 = vst [vmem:[#allocation4 + $0x68] sm:$0xff] %v2317
  %2377 = vst [vmem:[#allocation4 + $0x70] sm:$0xff] %v2319
  %2378 = vst [vmem:[#allocation4 + $0x78] sm:$0xff] %v2321
  %2379 = vst [vmem:[#allocation4 + $0x80] sm:$0xff] %v2325
  %2380 = vst [vmem:[#allocation4 + $0x88] sm:$0xff] %v2327
  %2381 = vst [vmem:[#allocation4 + $0x90] sm:$0xff] %v2329
  %2382 = vst [vmem:[#allocation4 + $0x98] sm:$0xff] %v2331
  %2383 = vst [vmem:[#allocation4 + $0xa0] sm:$0xff] %v2335
  %2384 = vst [vmem:[#allocation4 + $0xa8] sm:$0xff] %v2337
  %2385 = vst [vmem:[#allocation4 + $0xb0] sm:$0xff] %v2339
  %2386 = vst [vmem:[#allocation4 + $0xb8] sm:$0xff] %v2341
  %2387 = vst [vmem:[#allocation4 + $0xc0] sm:$0xff] %v2345
  %2388 = vst [vmem:[#allocation4 + $0xc8] sm:$0xff] %v2347
  %2389 = vst [vmem:[#allocation4 + $0xd0] sm:$0xff] %v2349
  %2390 = vst [vmem:[#allocation4 + $0xd8] sm:$0xff] %v2351
  %2391 = vst [vmem:[#allocation4 + $0xe0] sm:$0xff] %v2355
  %2392 = vst [vmem:[#allocation4 + $0xe8] sm:$0xff] %v2357
  %2393 = vst [vmem:[#allocation4 + $0xf0] sm:$0xff] %v2359
  %2394 = vst [vmem:[#allocation4 + $0xf8] sm:$0xff] %v2361
  %v2395 = vld [vmem:[%s7] sm:$0xf]
  %v2396 = vld [vmem:[%s7 + $0x4] sm:$0xf]
  %v2397 = vld [vmem:[%s7 + $0x8] sm:$0xf]
  %v2398 = vld [vmem:[%s7 + $0xc] sm:$0xf]
  %v2399 = vld [vmem:[%s8] sm:$0xf]
  %v2400 = vld [vmem:[%s8 + $0x4] sm:$0xf]
  %v2401 = vld [vmem:[%s8 + $0x8] sm:$0xf]
  %v2402 = vld [vmem:[%s8 + $0xc] sm:$0xf]
  %v2403 = vld [vmem:[#allocation4] sm:$0xff]
  %v2404 = vld [vmem:[#allocation4 + $0x10] sm:$0xff]
  %v2409 = vunpack.c.l.b16 %v2395
  %v2410 = vunpack.c.l.b16 %v2396
  %v2411 = vunpack.c.l.b16 %v2397
  %v2412 = vunpack.c.l.b16 %v2398
  %v2413 = vpack.c.b16 %v2410, %v2409
  %v2414 = vpack.c.b16 %v2412, %v2411
  %2417 = vmatprep.subr.bf16.mxu0 0
  %2418 = vmatpush1.bf16.msra.mxu0 0
  %2419 = vmatprep.subr.bf16.mxu0 0
  %2420 = vmatpush1.bf16.msra.mxu0 0
  %2421 = vmatprep.subr.bf16.mxu0 0
  %2422 = vmatpush1.bf16.msra.mxu0 0
  %2423 = vmatprep.subr.bf16.mxu0 0
  %2424 = vmatpush1.bf16.msra.mxu0 0
  %2425 = vmatprep.subr.bf16.mxu0 0
  %2426 = vmatpush1.bf16.msra.mxu0 0
  %2427 = vmatprep.subr.bf16.mxu0 0
  %2428 = vmatpush1.bf16.msra.mxu0 0
  %2429 = vmatprep.subr.bf16.mxu0 0
  %2430 = vmatpush1.bf16.msra.mxu0 %v2414
  %2431 = vmatprep.subr.bf16.mxu0 0
  %2432 = vmatpush1.bf16.msra.mxu0 %v2413
  %2433 = vmatprep.subr.bf16.mxu0 0
  %2434 = vmatpush2.bf16.msra.mxu0 0
  %2435 = vmatprep.subr.bf16.mxu0 0
  %2436 = vmatpush2.bf16.msra.mxu0 0
  %2437 = vmatprep.subr.bf16.mxu0 0
  %2438 = vmatpush2.bf16.msra.mxu0 0
  %2439 = vmatprep.subr.bf16.mxu0 0
  %2440 = vmatpush2.bf16.msra.mxu0 0
  %2441 = vmatprep.subr.bf16.mxu0 0
  %2442 = vmatpush2.bf16.msra.mxu0 0
  %2443 = vmatprep.subr.bf16.mxu0 0
  %2444 = vmatpush2.bf16.msra.mxu0 0
  %2445 = vmatprep.subr.bf16.mxu0 0
  %2446 = vmatpush2.bf16.msra.mxu0 0
  %2447 = vmatprep.subr.bf16.mxu0 0
  %2448 = vmatpush2.bf16.msra.mxu0 0
  %2449 = vmatprep.mubr.bf16.mxu0 0
  %2450 = vmatmul.mubr.bf16.gmra.mxu0 %v313
  %v2451 = vpop.f32.mrf.mxu0
  %v2452 = vadd.f32 0.0, %v2451
  %v2453 = vpop.f32.mrf.mxu0
  %v2454 = vpop.f32.mrf.mxu0
  %v2455 = vadd.f32 0.0, %v2454
  %v2456 = vpop.f32.mrf.mxu0
  %2457 = vdwg.mxu0
  %v2458 = vadd.f32 %v2403, %v2452
  %v2459 = vadd.f32 %v2404, %v2455
  %v2460 = vld [vmem:[#allocation4 + $0xe8] sm:$0xff]
  %v2461 = vld [vmem:[#allocation4 + $0xf8] sm:$0xff]
  %v2466 = vunpack.c.l.b16 %v2399
  %v2467 = vunpack.c.l.b16 %v2400
  %v2468 = vunpack.c.l.b16 %v2401
  %v2469 = vunpack.c.l.b16 %v2402
  %v2470 = vpack.c.b16 %v2467, %v2466
  %v2471 = vpack.c.b16 %v2469, %v2468
  %2474 = vmatprep.subr.bf16.mxu0 0
  %2475 = vmatpush1.bf16.msra.mxu0 0
  %2476 = vmatprep.subr.bf16.mxu0 0
  %2477 = vmatpush1.bf16.msra.mxu0 0
  %2478 = vmatprep.subr.bf16.mxu0 0
  %2479 = vmatpush1.bf16.msra.mxu0 0
  %2480 = vmatprep.subr.bf16.mxu0 0
  %2481 = vmatpush1.bf16.msra.mxu0 0
  %2482 = vmatprep.subr.bf16.mxu0 0
  %2483 = vmatpush1.bf16.msra.mxu0 0
  %2484 = vmatprep.subr.bf16.mxu0 0
  %2485 = vmatpush1.bf16.msra.mxu0 0
  %2486 = vmatprep.subr.bf16.mxu0 0
  %2487 = vmatpush1.bf16.msra.mxu0 %v2471
  %2488 = vmatprep.subr.bf16.mxu0 0
  %2489 = vmatpush1.bf16.msra.mxu0 %v2470
  %2490 = vmatprep.subr.bf16.mxu0 0
  %2491 = vmatpush2.bf16.msra.mxu0 0
  %2492 = vmatprep.subr.bf16.mxu0 0
  %2493 = vmatpush2.bf16.msra.mxu0 0
  %2494 = vmatprep.subr.bf16.mxu0 0
  %2495 = vmatpush2.bf16.msra.mxu0 0
  %2496 = vmatprep.subr.bf16.mxu0 0
  %2497 = vmatpush2.bf16.msra.mxu0 0
  %2498 = vmatprep.subr.bf16.mxu0 0
  %2499 = vmatpush2.bf16.msra.mxu0 0
  %2500 = vmatprep.subr.bf16.mxu0 0
  %2501 = vmatpush2.bf16.msra.mxu0 0
  %2502 = vmatprep.subr.bf16.mxu0 0
  %2503 = vmatpush2.bf16.msra.mxu0 0
  %2504 = vmatprep.subr.bf16.mxu0 0
  %2505 = vmatpush2.bf16.msra.mxu0 0
  %2506 = vmatprep.mubr.bf16.mxu0 0
  %2507 = vmatmul.mubr.bf16.gmra.mxu0 %v313
  %v2508 = vpop.f32.mrf.mxu0
  %v2509 = vadd.f32 0.0, %v2508
  %v2510 = vpop.f32.mrf.mxu0
  %v2511 = vpop.f32.mrf.mxu0
  %v2512 = vadd.f32 0.0, %v2511
  %v2513 = vpop.f32.mrf.mxu0
  %2514 = vdwg.mxu0
  %v2515 = vadd.f32 %v2460, %v2509
  %v2516 = vadd.f32 %v2461, %v2512
  %v2517 = vxor.u32 %v2458, 2147483648
  %v2518 = vxor.u32 %v2459, 2147483648
  %v2519 = vmul.f32 %v2517, 1.442695
  %v2520 = vpow.pop %v2519
  %v2521 = vmul.f32 %v2518, 1.442695
  %v2522 = vpow.pop %v2521
  %v2523 = vadd.f32 %v2520, 1.0
  %v2524 = vadd.f32 %v2522, 1.0
  %v2525 = vrcp.pop %v2523
  %v2526 = vmul.f32 1.0, %v2525
  %v2527 = vrcp.pop %v2524
  %v2528 = vmul.f32 1.0, %v2527
  %v2529 = vtanh.pop %v2458
  %v2530 = vtanh.pop %v2459
  %v2531 = vmul.f32 %v2526, 0.0
  %v2532 = vmul.f32 %v2528, 0.0
  %2535 = vrot.lane.b32.xlu0 %v2529, 64
  %v2536 = vpop.permute.xlu0 %2535
  %2537 = vrot.lane.b32.xlu0 %v2530, 64
  %v2538 = vpop.permute.xlu0 %2537
  %v2541 = vmul.f32 %v2526, %v2536
  %v2542 = vmul.f32 %v2528, %v2538
  %2545 = vrot.lane.b32.xlu0 %v2541, 32
  %v2546 = vpop.permute.xlu0 %2545
  %2547 = vrot.lane.b32.xlu0 %v2542, 32
  %v2548 = vpop.permute.xlu0 %2547
  %v2551 = vadd.f32 %v2531, %v2546
  %v2552 = vadd.f32 %v2532, %v2548
  %v2553 = vtanh.pop %v2551
  %v2554 = vtanh.pop %v2552
  %2557 = vrot.lane.b32.xlu0 %v2553, 64
  %v2558 = vpop.permute.xlu0 %2557
  %2559 = vrot.lane.b32.xlu0 %v2554, 64
  %v2560 = vpop.permute.xlu0 %2559
  %v2563 = vmul.f32 %v2526, %v2558
  %v2564 = vmul.f32 %v2528, %v2560
  %v2565 = vxor.u32 %v2515, 2147483648
  %v2566 = vxor.u32 %v2516, 2147483648
  %v2567 = vmul.f32 %v2565, 1.442695
  %v2568 = vpow.pop %v2567
  %v2569 = vmul.f32 %v2566, 1.442695
  %v2570 = vpow.pop %v2569
  %v2571 = vadd.f32 %v2568, 1.0
  %v2572 = vadd.f32 %v2570, 1.0
  %v2573 = vrcp.pop %v2571
  %v2574 = vmul.f32 1.0, %v2573
  %v2575 = vrcp.pop %v2572
  %v2576 = vmul.f32 1.0, %v2575
  %v2577 = vtanh.pop %v2515
  %v2578 = vtanh.pop %v2516
  %v2579 = vmul.f32 %v2574, 0.0
  %v2580 = vmul.f32 %v2576, 0.0
  %2583 = vrot.lane.b32.xlu0 %v2577, 64
  %v2584 = vpop.permute.xlu0 %2583
  %2585 = vrot.lane.b32.xlu0 %v2578, 64
  %v2586 = vpop.permute.xlu0 %2585
  %v2589 = vmul.f32 %v2574, %v2584
  %v2590 = vmul.f32 %v2576, %v2586
  %2593 = vrot.lane.b32.xlu0 %v2589, 32
  %v2594 = vpop.permute.xlu0 %2593
  %2595 = vrot.lane.b32.xlu0 %v2590, 32
  %v2596 = vpop.permute.xlu0 %2595
  %v2599 = vadd.f32 %v2579, %v2594
  %v2600 = vadd.f32 %v2580, %v2596
  %v2601 = vtanh.pop %v2599
  %v2602 = vtanh.pop %v2600
  %2605 = vrot.lane.b32.xlu0 %v2601, 64
  %v2606 = vpop.permute.xlu0 %2605
  %2607 = vrot.lane.b32.xlu0 %v2602, 64
  %v2608 = vpop.permute.xlu0 %2607
  %v2611 = vmul.f32 %v2574, %v2606
  %v2612 = vmul.f32 %v2576, %v2608
  %v2613 = vpack.c.bf16 %v2564, %v2563
  %v2615 = vunpack.c.l.b16 %v2613
  %v2616 = vunpack.c.h.b16 %v2613
  %v2617 = vpack.c.b16 %v2615, %v2615
  %v2618 = vpack.c.b16 %v2616, %v2616
  %2619 = vrot.lane.b32.xlu0 %v2617, 32
  %v2620 = vpop.permute.xlu0 %2619
  %2621 = vrot.lane.b32.xlu0 %v2618, 32
  %v2622 = vpop.permute.xlu0 %2621
  %2625 = vst.msk [vmem:[#allocation3] sm:$0xf] %vm523, %v2620
  %2626 = vst.msk [vmem:[#allocation3 + $0x4] sm:$0xf] %vm523, %v2622
  %v2627 = vpack.c.bf16 %v2612, %v2611
  %v2629 = vunpack.c.l.b16 %v2627
  %v2630 = vunpack.c.h.b16 %v2627
  %v2631 = vpack.c.b16 %v2629, %v2629
  %v2632 = vpack.c.b16 %v2630, %v2630
  %2633 = vrot.lane.b32.xlu0 %v2631, 64
  %v2634 = vpop.permute.xlu0 %2633
  %2635 = vrot.lane.b32.xlu0 %v2632, 64
  %v2636 = vpop.permute.xlu0 %2635
  %2639 = vst.msk [vmem:[#allocation3 + $0x38] sm:$0xf] %vm538, %v2634
  %2640 = vst.msk [vmem:[#allocation3 + $0x3c] sm:$0xf] %vm538, %v2636
  %v2641 = vld [vmem:[#allocation4 + $0x20] sm:$0xff]
  %v2642 = vld [vmem:[#allocation4 + $0x30] sm:$0xff]
  %2643 = vrot.lane.b32.xlu0 %v2613, 32
  %v2644 = vpop.permute.xlu0 %2643
  %v2646 = vsel %vm311, %v2644, 0
  %2648 = vmatprep.subr.bf16.mxu0 0
  %2649 = vmatpush1.bf16.msra.mxu0 0
  %2650 = vmatprep.subr.bf16.mxu0 0
  %2651 = vmatpush1.bf16.msra.mxu0 0
  %2652 = vmatprep.subr.bf16.mxu0 0
  %2653 = vmatpush1.bf16.msra.mxu0 0
  %2654 = vmatprep.subr.bf16.mxu0 0
  %2655 = vmatpush1.bf16.msra.mxu0 0
  %2656 = vmatprep.subr.bf16.mxu0 0
  %2657 = vmatpush1.bf16.msra.mxu0 0
  %2658 = vmatprep.subr.bf16.mxu0 0
  %2659 = vmatpush1.bf16.msra.mxu0 0
  %2660 = vmatprep.subr.bf16.mxu0 0
  %2661 = vmatpush1.bf16.msra.mxu0 %v2414
  %2662 = vmatprep.subr.bf16.mxu0 0
  %2663 = vmatpush1.bf16.msra.mxu0 %v2413
  %2664 = vmatprep.subr.bf16.mxu0 0
  %2665 = vmatpush2.bf16.msra.mxu0 0
  %2666 = vmatprep.subr.bf16.mxu0 0
  %2667 = vmatpush2.bf16.msra.mxu0 0
  %2668 = vmatprep.subr.bf16.mxu0 0
  %2669 = vmatpush2.bf16.msra.mxu0 0
  %2670 = vmatprep.subr.bf16.mxu0 0
  %2671 = vmatpush2.bf16.msra.mxu0 0
  %2672 = vmatprep.subr.bf16.mxu0 0
  %2673 = vmatpush2.bf16.msra.mxu0 0
  %2674 = vmatprep.subr.bf16.mxu0 0
  %2675 = vmatpush2.bf16.msra.mxu0 0
  %2676 = vmatprep.subr.bf16.mxu0 0
  %2677 = vmatpush2.bf16.msra.mxu0 0
  %2678 = vmatprep.subr.bf16.mxu0 0
  %2679 = vmatpush2.bf16.msra.mxu0 0
  %2680 = vmatprep.mubr.bf16.mxu0 0
  %2681 = vmatmul.mubr.bf16.gmra.mxu0 %v2646
  %v2682 = vpop.f32.mrf.mxu0
  %v2683 = vadd.f32 0.0, %v2682
  %v2684 = vpop.f32.mrf.mxu0
  %v2685 = vpop.f32.mrf.mxu0
  %v2686 = vadd.f32 0.0, %v2685
  %v2687 = vpop.f32.mrf.mxu0
  %2688 = vdwg.mxu0
  %v2689 = vadd.f32 %v2641, %v2683
  %v2690 = vadd.f32 %v2642, %v2686
  %v2691 = vld [vmem:[#allocation4 + $0xc8] sm:$0xff]
  %v2692 = vld [vmem:[#allocation4 + $0xd8] sm:$0xff]
  %2693 = vrot.lane.b32.xlu0 %v2627, 32
  %v2694 = vpop.permute.xlu0 %2693
  %v2696 = vsel %vm311, %v2694, 0
  %2698 = vmatprep.subr.bf16.mxu0 0
  %2699 = vmatpush1.bf16.msra.mxu0 0
  %2700 = vmatprep.subr.bf16.mxu0 0
  %2701 = vmatpush1.bf16.msra.mxu0 0
  %2702 = vmatprep.subr.bf16.mxu0 0
  %2703 = vmatpush1.bf16.msra.mxu0 0
  %2704 = vmatprep.subr.bf16.mxu0 0
  %2705 = vmatpush1.bf16.msra.mxu0 0
  %2706 = vmatprep.subr.bf16.mxu0 0
  %2707 = vmatpush1.bf16.msra.mxu0 0
  %2708 = vmatprep.subr.bf16.mxu0 0
  %2709 = vmatpush1.bf16.msra.mxu0 0
  %2710 = vmatprep.subr.bf16.mxu0 0
  %2711 = vmatpush1.bf16.msra.mxu0 %v2471
  %2712 = vmatprep.subr.bf16.mxu0 0
  %2713 = vmatpush1.bf16.msra.mxu0 %v2470
  %2714 = vmatprep.subr.bf16.mxu0 0
  %2715 = vmatpush2.bf16.msra.mxu0 0
  %2716 = vmatprep.subr.bf16.mxu0 0
  %2717 = vmatpush2.bf16.msra.mxu0 0
  %2718 = vmatprep.subr.bf16.mxu0 0
  %2719 = vmatpush2.bf16.msra.mxu0 0
  %2720 = vmatprep.subr.bf16.mxu0 0
  %2721 = vmatpush2.bf16.msra.mxu0 0
  %2722 = vmatprep.subr.bf16.mxu0 0
  %2723 = vmatpush2.bf16.msra.mxu0 0
  %2724 = vmatprep.subr.bf16.mxu0 0
  %2725 = vmatpush2.bf16.msra.mxu0 0
  %2726 = vmatprep.subr.bf16.mxu0 0
  %2727 = vmatpush2.bf16.msra.mxu0 0
  %2728 = vmatprep.subr.bf16.mxu0 0
  %2729 = vmatpush2.bf16.msra.mxu0 0
  %2730 = vmatprep.mubr.bf16.mxu0 0
  %2731 = vmatmul.mubr.bf16.gmra.mxu0 %v2696
  %v2732 = vpop.f32.mrf.mxu0
  %v2733 = vadd.f32 0.0, %v2732
  %v2734 = vpop.f32.mrf.mxu0
  %v2735 = vpop.f32.mrf.mxu0
  %v2736 = vadd.f32 0.0, %v2735
  %v2737 = vpop.f32.mrf.mxu0
  %2738 = vdwg.mxu0
  %v2739 = vadd.f32 %v2691, %v2733
  %v2740 = vadd.f32 %v2692, %v2736
  %v2741 = vxor.u32 %v2689, 2147483648
  %v2742 = vxor.u32 %v2690, 2147483648
  %v2743 = vmul.f32 %v2741, 1.442695
  %v2744 = vpow.pop %v2743
  %v2745 = vmul.f32 %v2742, 1.442695
  %v2746 = vpow.pop %v2745
  %v2747 = vadd.f32 %v2744, 1.0
  %v2748 = vadd.f32 %v2746, 1.0
  %v2749 = vrcp.pop %v2747
  %v2750 = vmul.f32 1.0, %v2749
  %v2751 = vrcp.pop %v2748
  %v2752 = vmul.f32 1.0, %v2751
  %v2753 = vtanh.pop %v2689
  %v2754 = vtanh.pop %v2690
  %v2755 = vmul.f32 %v2750, %v2551
  %v2756 = vmul.f32 %v2752, %v2552
  %2759 = vrot.lane.b32.xlu0 %v2753, 64
  %v2760 = vpop.permute.xlu0 %2759
  %2761 = vrot.lane.b32.xlu0 %v2754, 64
  %v2762 = vpop.permute.xlu0 %2761
  %v2765 = vmul.f32 %v2750, %v2760
  %v2766 = vmul.f32 %v2752, %v2762
  %2769 = vrot.lane.b32.xlu0 %v2765, 32
  %v2770 = vpop.permute.xlu0 %2769
  %2771 = vrot.lane.b32.xlu0 %v2766, 32
  %v2772 = vpop.permute.xlu0 %2771
  %v2775 = vadd.f32 %v2755, %v2770
  %v2776 = vadd.f32 %v2756, %v2772
  %v2777 = vtanh.pop %v2775
  %v2778 = vtanh.pop %v2776
  %2781 = vrot.lane.b32.xlu0 %v2777, 64
  %v2782 = vpop.permute.xlu0 %2781
  %2783 = vrot.lane.b32.xlu0 %v2778, 64
  %v2784 = vpop.permute.xlu0 %2783
  %v2787 = vmul.f32 %v2750, %v2782
  %v2788 = vmul.f32 %v2752, %v2784
  %v2789 = vxor.u32 %v2739, 2147483648
  %v2790 = vxor.u32 %v2740, 2147483648
  %v2791 = vmul.f32 %v2789, 1.442695
  %v2792 = vpow.pop %v2791
  %v2793 = vmul.f32 %v2790, 1.442695
  %v2794 = vpow.pop %v2793
  %v2795 = vadd.f32 %v2792, 1.0
  %v2796 = vadd.f32 %v2794, 1.0
  %v2797 = vrcp.pop %v2795
  %v2798 = vmul.f32 1.0, %v2797
  %v2799 = vrcp.pop %v2796
  %v2800 = vmul.f32 1.0, %v2799
  %v2801 = vtanh.pop %v2739
  %v2802 = vtanh.pop %v2740
  %v2803 = vmul.f32 %v2798, %v2599
  %v2804 = vmul.f32 %v2800, %v2600
  %2807 = vrot.lane.b32.xlu0 %v2801, 64
  %v2808 = vpop.permute.xlu0 %2807
  %2809 = vrot.lane.b32.xlu0 %v2802, 64
  %v2810 = vpop.permute.xlu0 %2809
  %v2813 = vmul.f32 %v2798, %v2808
  %v2814 = vmul.f32 %v2800, %v2810
  %2817 = vrot.lane.b32.xlu0 %v2813, 32
  %v2818 = vpop.permute.xlu0 %2817
  %2819 = vrot.lane.b32.xlu0 %v2814, 32
  %v2820 = vpop.permute.xlu0 %2819
  %v2823 = vadd.f32 %v2803, %v2818
  %v2824 = vadd.f32 %v2804, %v2820
  %v2825 = vtanh.pop %v2823
  %v2826 = vtanh.pop %v2824
  %2829 = vrot.lane.b32.xlu0 %v2825, 64
  %v2830 = vpop.permute.xlu0 %2829
  %2831 = vrot.lane.b32.xlu0 %v2826, 64
  %v2832 = vpop.permute.xlu0 %2831
  %v2835 = vmul.f32 %v2798, %v2830
  %v2836 = vmul.f32 %v2800, %v2832
  %v2837 = vpack.c.bf16 %v2788, %v2787
  %v2839 = vunpack.c.l.b16 %v2837
  %v2840 = vunpack.c.h.b16 %v2837
  %v2841 = vpack.c.b16 %v2839, %v2839
  %v2842 = vpack.c.b16 %v2840, %v2840
  %2843 = vrot.lane.b32.xlu0 %v2841, 32
  %v2844 = vpop.permute.xlu0 %2843
  %2845 = vrot.lane.b32.xlu0 %v2842, 32
  %v2846 = vpop.permute.xlu0 %2845
  %2849 = vst.msk [vmem:[#allocation3 + $0x8] sm:$0xf] %vm523, %v2844
  %2850 = vst.msk [vmem:[#allocation3 + $0xc] sm:$0xf] %vm523, %v2846
  %v2851 = vpack.c.bf16 %v2836, %v2835
  %v2853 = vunpack.c.l.b16 %v2851
  %v2854 = vunpack.c.h.b16 %v2851
  %v2855 = vpack.c.b16 %v2853, %v2853
  %v2856 = vpack.c.b16 %v2854, %v2854
  %2857 = vrot.lane.b32.xlu0 %v2855, 64
  %v2858 = vpop.permute.xlu0 %2857
  %2859 = vrot.lane.b32.xlu0 %v2856, 64
  %v2860 = vpop.permute.xlu0 %2859
  %2863 = vst.msk [vmem:[#allocation3 + $0x30] sm:$0xf] %vm538, %v2858
  %2864 = vst.msk [vmem:[#allocation3 + $0x34] sm:$0xf] %vm538, %v2860
  %v2865 = vld [vmem:[#allocation4 + $0x40] sm:$0xff]
  %v2866 = vld [vmem:[#allocation4 + $0x50] sm:$0xff]
  %2867 = vrot.lane.b32.xlu0 %v2837, 32
  %v2868 = vpop.permute.xlu0 %2867
  %v2870 = vsel %vm311, %v2868, 0
  %2872 = vmatprep.subr.bf16.mxu0 0
  %2873 = vmatpush1.bf16.msra.mxu0 0
  %2874 = vmatprep.subr.bf16.mxu0 0
  %2875 = vmatpush1.bf16.msra.mxu0 0
  %2876 = vmatprep.subr.bf16.mxu0 0
  %2877 = vmatpush1.bf16.msra.mxu0 0
  %2878 = vmatprep.subr.bf16.mxu0 0
  %2879 = vmatpush1.bf16.msra.mxu0 0
  %2880 = vmatprep.subr.bf16.mxu0 0
  %2881 = vmatpush1.bf16.msra.mxu0 0
  %2882 = vmatprep.subr.bf16.mxu0 0
  %2883 = vmatpush1.bf16.msra.mxu0 0
  %2884 = vmatprep.subr.bf16.mxu0 0
  %2885 = vmatpush1.bf16.msra.mxu0 %v2414
  %2886 = vmatprep.subr.bf16.mxu0 0
  %2887 = vmatpush1.bf16.msra.mxu0 %v2413
  %2888 = vmatprep.subr.bf16.mxu0 0
  %2889 = vmatpush2.bf16.msra.mxu0 0
  %2890 = vmatprep.subr.bf16.mxu0 0
  %2891 = vmatpush2.bf16.msra.mxu0 0
  %2892 = vmatprep.subr.bf16.mxu0 0
  %2893 = vmatpush2.bf16.msra.mxu0 0
  %2894 = vmatprep.subr.bf16.mxu0 0
  %2895 = vmatpush2.bf16.msra.mxu0 0
  %2896 = vmatprep.subr.bf16.mxu0 0
  %2897 = vmatpush2.bf16.msra.mxu0 0
  %2898 = vmatprep.subr.bf16.mxu0 0
  %2899 = vmatpush2.bf16.msra.mxu0 0
  %2900 = vmatprep.subr.bf16.mxu0 0
  %2901 = vmatpush2.bf16.msra.mxu0 0
  %2902 = vmatprep.subr.bf16.mxu0 0
  %2903 = vmatpush2.bf16.msra.mxu0 0
  %2904 = vmatprep.mubr.bf16.mxu0 0
  %2905 = vmatmul.mubr.bf16.gmra.mxu0 %v2870
  %v2906 = vpop.f32.mrf.mxu0
  %v2907 = vadd.f32 0.0, %v2906
  %v2908 = vpop.f32.mrf.mxu0
  %v2909 = vpop.f32.mrf.mxu0
  %v2910 = vadd.f32 0.0, %v2909
  %v2911 = vpop.f32.mrf.mxu0
  %2912 = vdwg.mxu0
  %v2913 = vadd.f32 %v2865, %v2907
  %v2914 = vadd.f32 %v2866, %v2910
  %v2915 = vld [vmem:[#allocation4 + $0xa8] sm:$0xff]
  %v2916 = vld [vmem:[#allocation4 + $0xb8] sm:$0xff]
  %2917 = vrot.lane.b32.xlu0 %v2851, 32
  %v2918 = vpop.permute.xlu0 %2917
  %v2920 = vsel %vm311, %v2918, 0
  %2922 = vmatprep.subr.bf16.mxu0 0
  %2923 = vmatpush1.bf16.msra.mxu0 0
  %2924 = vmatprep.subr.bf16.mxu0 0
  %2925 = vmatpush1.bf16.msra.mxu0 0
  %2926 = vmatprep.subr.bf16.mxu0 0
  %2927 = vmatpush1.bf16.msra.mxu0 0
  %2928 = vmatprep.subr.bf16.mxu0 0
  %2929 = vmatpush1.bf16.msra.mxu0 0
  %2930 = vmatprep.subr.bf16.mxu0 0
  %2931 = vmatpush1.bf16.msra.mxu0 0
  %2932 = vmatprep.subr.bf16.mxu0 0
  %2933 = vmatpush1.bf16.msra.mxu0 0
  %2934 = vmatprep.subr.bf16.mxu0 0
  %2935 = vmatpush1.bf16.msra.mxu0 %v2471
  %2936 = vmatprep.subr.bf16.mxu0 0
  %2937 = vmatpush1.bf16.msra.mxu0 %v2470
  %2938 = vmatprep.subr.bf16.mxu0 0
  %2939 = vmatpush2.bf16.msra.mxu0 0
  %2940 = vmatprep.subr.bf16.mxu0 0
  %2941 = vmatpush2.bf16.msra.mxu0 0
  %2942 = vmatprep.subr.bf16.mxu0 0
  %2943 = vmatpush2.bf16.msra.mxu0 0
  %2944 = vmatprep.subr.bf16.mxu0 0
  %2945 = vmatpush2.bf16.msra.mxu0 0
  %2946 = vmatprep.subr.bf16.mxu0 0
  %2947 = vmatpush2.bf16.msra.mxu0 0
  %2948 = vmatprep.subr.bf16.mxu0 0
  %2949 = vmatpush2.bf16.msra.mxu0 0
  %2950 = vmatprep.subr.bf16.mxu0 0
  %2951 = vmatpush2.bf16.msra.mxu0 0
  %2952 = vmatprep.subr.bf16.mxu0 0
  %2953 = vmatpush2.bf16.msra.mxu0 0
  %2954 = vmatprep.mubr.bf16.mxu0 0
  %2955 = vmatmul.mubr.bf16.gmra.mxu0 %v2920
  %v2956 = vpop.f32.mrf.mxu0
  %v2957 = vadd.f32 0.0, %v2956
  %v2958 = vpop.f32.mrf.mxu0
  %v2959 = vpop.f32.mrf.mxu0
  %v2960 = vadd.f32 0.0, %v2959
  %v2961 = vpop.f32.mrf.mxu0
  %2962 = vdwg.mxu0
  %v2963 = vadd.f32 %v2915, %v2957
  %v2964 = vadd.f32 %v2916, %v2960
  %v2965 = vxor.u32 %v2913, 2147483648
  %v2966 = vxor.u32 %v2914, 2147483648
  %v2967 = vmul.f32 %v2965, 1.442695
  %v2968 = vpow.pop %v2967
  %v2969 = vmul.f32 %v2966, 1.442695
  %v2970 = vpow.pop %v2969
  %v2971 = vadd.f32 %v2968, 1.0
  %v2972 = vadd.f32 %v2970, 1.0
  %v2973 = vrcp.pop %v2971
  %v2974 = vmul.f32 1.0, %v2973
  %v2975 = vrcp.pop %v2972
  %v2976 = vmul.f32 1.0, %v2975
  %v2977 = vtanh.pop %v2913
  %v2978 = vtanh.pop %v2914
  %v2979 = vmul.f32 %v2974, %v2775
  %v2980 = vmul.f32 %v2976, %v2776
  %2983 = vrot.lane.b32.xlu0 %v2977, 64
  %v2984 = vpop.permute.xlu0 %2983
  %2985 = vrot.lane.b32.xlu0 %v2978, 64
  %v2986 = vpop.permute.xlu0 %2985
  %v2989 = vmul.f32 %v2974, %v2984
  %v2990 = vmul.f32 %v2976, %v2986
  %2993 = vrot.lane.b32.xlu0 %v2989, 32
  %v2994 = vpop.permute.xlu0 %2993
  %2995 = vrot.lane.b32.xlu0 %v2990, 32
  %v2996 = vpop.permute.xlu0 %2995
  %v2999 = vadd.f32 %v2979, %v2994
  %v3000 = vadd.f32 %v2980, %v2996
  %v3001 = vtanh.pop %v2999
  %v3002 = vtanh.pop %v3000
  %3005 = vrot.lane.b32.xlu0 %v3001, 64
  %v3006 = vpop.permute.xlu0 %3005
  %3007 = vrot.lane.b32.xlu0 %v3002, 64
  %v3008 = vpop.permute.xlu0 %3007
  %v3011 = vmul.f32 %v2974, %v3006
  %v3012 = vmul.f32 %v2976, %v3008
  %v3013 = vxor.u32 %v2963, 2147483648
  %v3014 = vxor.u32 %v2964, 2147483648
  %v3015 = vmul.f32 %v3013, 1.442695
  %v3016 = vpow.pop %v3015
  %v3017 = vmul.f32 %v3014, 1.442695
  %v3018 = vpow.pop %v3017
  %v3019 = vadd.f32 %v3016, 1.0
  %v3020 = vadd.f32 %v3018, 1.0
  %v3021 = vrcp.pop %v3019
  %v3022 = vmul.f32 1.0, %v3021
  %v3023 = vrcp.pop %v3020
  %v3024 = vmul.f32 1.0, %v3023
  %v3025 = vtanh.pop %v2963
  %v3026 = vtanh.pop %v2964
  %v3027 = vmul.f32 %v3022, %v2823
  %v3028 = vmul.f32 %v3024, %v2824
  %3031 = vrot.lane.b32.xlu0 %v3025, 64
  %v3032 = vpop.permute.xlu0 %3031
  %3033 = vrot.lane.b32.xlu0 %v3026, 64
  %v3034 = vpop.permute.xlu0 %3033
  %v3037 = vmul.f32 %v3022, %v3032
  %v3038 = vmul.f32 %v3024, %v3034
  %3041 = vrot.lane.b32.xlu0 %v3037, 32
  %v3042 = vpop.permute.xlu0 %3041
  %3043 = vrot.lane.b32.xlu0 %v3038, 32
  %v3044 = vpop.permute.xlu0 %3043
  %v3047 = vadd.f32 %v3027, %v3042
  %v3048 = vadd.f32 %v3028, %v3044
  %v3049 = vtanh.pop %v3047
  %v3050 = vtanh.pop %v3048
  %3053 = vrot.lane.b32.xlu0 %v3049, 64
  %v3054 = vpop.permute.xlu0 %3053
  %3055 = vrot.lane.b32.xlu0 %v3050, 64
  %v3056 = vpop.permute.xlu0 %3055
  %v3059 = vmul.f32 %v3022, %v3054
  %v3060 = vmul.f32 %v3024, %v3056
  %v3061 = vpack.c.bf16 %v3012, %v3011
  %v3063 = vunpack.c.l.b16 %v3061
  %v3064 = vunpack.c.h.b16 %v3061
  %v3065 = vpack.c.b16 %v3063, %v3063
  %v3066 = vpack.c.b16 %v3064, %v3064
  %3067 = vrot.lane.b32.xlu0 %v3065, 32
  %v3068 = vpop.permute.xlu0 %3067
  %3069 = vrot.lane.b32.xlu0 %v3066, 32
  %v3070 = vpop.permute.xlu0 %3069
  %3073 = vst.msk [vmem:[#allocation3 + $0x10] sm:$0xf] %vm523, %v3068
  %3074 = vst.msk [vmem:[#allocation3 + $0x14] sm:$0xf] %vm523, %v3070
  %v3075 = vpack.c.bf16 %v3060, %v3059
  %v3077 = vunpack.c.l.b16 %v3075
  %v3078 = vunpack.c.h.b16 %v3075
  %v3079 = vpack.c.b16 %v3077, %v3077
  %v3080 = vpack.c.b16 %v3078, %v3078
  %3081 = vrot.lane.b32.xlu0 %v3079, 64
  %v3082 = vpop.permute.xlu0 %3081
  %3083 = vrot.lane.b32.xlu0 %v3080, 64
  %v3084 = vpop.permute.xlu0 %3083
  %3087 = vst.msk [vmem:[#allocation3 + $0x28] sm:$0xf] %vm538, %v3082
  %3088 = vst.msk [vmem:[#allocation3 + $0x2c] sm:$0xf] %vm538, %v3084
  %v3089 = vld [vmem:[#allocation4 + $0x60] sm:$0xff]
  %v3090 = vld [vmem:[#allocation4 + $0x70] sm:$0xff]
  %3091 = vrot.lane.b32.xlu0 %v3061, 32
  %v3092 = vpop.permute.xlu0 %3091
  %v3094 = vsel %vm311, %v3092, 0
  %3096 = vmatprep.subr.bf16.mxu0 0
  %3097 = vmatpush1.bf16.msra.mxu0 0
  %3098 = vmatprep.subr.bf16.mxu0 0
  %3099 = vmatpush1.bf16.msra.mxu0 0
  %3100 = vmatprep.subr.bf16.mxu0 0
  %3101 = vmatpush1.bf16.msra.mxu0 0
  %3102 = vmatprep.subr.bf16.mxu0 0
  %3103 = vmatpush1.bf16.msra.mxu0 0
  %3104 = vmatprep.subr.bf16.mxu0 0
  %3105 = vmatpush1.bf16.msra.mxu0 0
  %3106 = vmatprep.subr.bf16.mxu0 0
  %3107 = vmatpush1.bf16.msra.mxu0 0
  %3108 = vmatprep.subr.bf16.mxu0 0
  %3109 = vmatpush1.bf16.msra.mxu0 %v2414
  %3110 = vmatprep.subr.bf16.mxu0 0
  %3111 = vmatpush1.bf16.msra.mxu0 %v2413
  %3112 = vmatprep.subr.bf16.mxu0 0
  %3113 = vmatpush2.bf16.msra.mxu0 0
  %3114 = vmatprep.subr.bf16.mxu0 0
  %3115 = vmatpush2.bf16.msra.mxu0 0
  %3116 = vmatprep.subr.bf16.mxu0 0
  %3117 = vmatpush2.bf16.msra.mxu0 0
  %3118 = vmatprep.subr.bf16.mxu0 0
  %3119 = vmatpush2.bf16.msra.mxu0 0
  %3120 = vmatprep.subr.bf16.mxu0 0
  %3121 = vmatpush2.bf16.msra.mxu0 0
  %3122 = vmatprep.subr.bf16.mxu0 0
  %3123 = vmatpush2.bf16.msra.mxu0 0
  %3124 = vmatprep.subr.bf16.mxu0 0
  %3125 = vmatpush2.bf16.msra.mxu0 0
  %3126 = vmatprep.subr.bf16.mxu0 0
  %3127 = vmatpush2.bf16.msra.mxu0 0
  %3128 = vmatprep.mubr.bf16.mxu0 0
  %3129 = vmatmul.mubr.bf16.gmra.mxu0 %v3094
  %v3130 = vpop.f32.mrf.mxu0
  %v3131 = vadd.f32 0.0, %v3130
  %v3132 = vpop.f32.mrf.mxu0
  %v3133 = vpop.f32.mrf.mxu0
  %v3134 = vadd.f32 0.0, %v3133
  %v3135 = vpop.f32.mrf.mxu0
  %3136 = vdwg.mxu0
  %v3137 = vadd.f32 %v3089, %v3131
  %v3138 = vadd.f32 %v3090, %v3134
  %v3139 = vld [vmem:[#allocation4 + $0x88] sm:$0xff]
  %v3140 = vld [vmem:[#allocation4 + $0x98] sm:$0xff]
  %3141 = vrot.lane.b32.xlu0 %v3075, 32
  %v3142 = vpop.permute.xlu0 %3141
  %v3144 = vsel %vm311, %v3142, 0
  %3146 = vmatprep.subr.bf16.mxu0 0
  %3147 = vmatpush1.bf16.msra.mxu0 0
  %3148 = vmatprep.subr.bf16.mxu0 0
  %3149 = vmatpush1.bf16.msra.mxu0 0
  %3150 = vmatprep.subr.bf16.mxu0 0
  %3151 = vmatpush1.bf16.msra.mxu0 0
  %3152 = vmatprep.subr.bf16.mxu0 0
  %3153 = vmatpush1.bf16.msra.mxu0 0
  %3154 = vmatprep.subr.bf16.mxu0 0
  %3155 = vmatpush1.bf16.msra.mxu0 0
  %3156 = vmatprep.subr.bf16.mxu0 0
  %3157 = vmatpush1.bf16.msra.mxu0 0
  %3158 = vmatprep.subr.bf16.mxu0 0
  %3159 = vmatpush1.bf16.msra.mxu0 %v2471
  %3160 = vmatprep.subr.bf16.mxu0 0
  %3161 = vmatpush1.bf16.msra.mxu0 %v2470
  %3162 = vmatprep.subr.bf16.mxu0 0
  %3163 = vmatpush2.bf16.msra.mxu0 0
  %3164 = vmatprep.subr.bf16.mxu0 0
  %3165 = vmatpush2.bf16.msra.mxu0 0
  %3166 = vmatprep.subr.bf16.mxu0 0
  %3167 = vmatpush2.bf16.msra.mxu0 0
  %3168 = vmatprep.subr.bf16.mxu0 0
  %3169 = vmatpush2.bf16.msra.mxu0 0
  %3170 = vmatprep.subr.bf16.mxu0 0
  %3171 = vmatpush2.bf16.msra.mxu0 0
  %3172 = vmatprep.subr.bf16.mxu0 0
  %3173 = vmatpush2.bf16.msra.mxu0 0
  %3174 = vmatprep.subr.bf16.mxu0 0
  %3175 = vmatpush2.bf16.msra.mxu0 0
  %3176 = vmatprep.subr.bf16.mxu0 0
  %3177 = vmatpush2.bf16.msra.mxu0 0
  %3178 = vmatprep.mubr.bf16.mxu0 0
  %3179 = vmatmul.mubr.bf16.gmra.mxu0 %v3144
  %v3180 = vpop.f32.mrf.mxu0
  %v3181 = vadd.f32 0.0, %v3180
  %v3182 = vpop.f32.mrf.mxu0
  %v3183 = vpop.f32.mrf.mxu0
  %v3184 = vadd.f32 0.0, %v3183
  %v3185 = vpop.f32.mrf.mxu0
  %3186 = vdwg.mxu0
  %v3187 = vadd.f32 %v3139, %v3181
  %v3188 = vadd.f32 %v3140, %v3184
  %v3189 = vxor.u32 %v3137, 2147483648
  %v3190 = vxor.u32 %v3138, 2147483648
  %v3191 = vmul.f32 %v3189, 1.442695
  %v3192 = vpow.pop %v3191
  %v3193 = vmul.f32 %v3190, 1.442695
  %v3194 = vpow.pop %v3193
  %v3195 = vadd.f32 %v3192, 1.0
  %v3196 = vadd.f32 %v3194, 1.0
  %v3197 = vrcp.pop %v3195
  %v3198 = vmul.f32 1.0, %v3197
  %v3199 = vrcp.pop %v3196
  %v3200 = vmul.f32 1.0, %v3199
  %v3201 = vtanh.pop %v3137
  %v3202 = vtanh.pop %v3138
  %v3203 = vmul.f32 %v3198, %v2999
  %v3204 = vmul.f32 %v3200, %v3000
  %3207 = vrot.lane.b32.xlu0 %v3201, 64
  %v3208 = vpop.permute.xlu0 %3207
  %3209 = vrot.lane.b32.xlu0 %v3202, 64
  %v3210 = vpop.permute.xlu0 %3209
  %v3213 = vmul.f32 %v3198, %v3208
  %v3214 = vmul.f32 %v3200, %v3210
  %3217 = vrot.lane.b32.xlu0 %v3213, 32
  %v3218 = vpop.permute.xlu0 %3217
  %3219 = vrot.lane.b32.xlu0 %v3214, 32
  %v3220 = vpop.permute.xlu0 %3219
  %v3223 = vadd.f32 %v3203, %v3218
  %v3224 = vadd.f32 %v3204, %v3220
  %v3225 = vtanh.pop %v3223
  %v3226 = vtanh.pop %v3224
  %3229 = vrot.lane.b32.xlu0 %v3225, 64
  %v3230 = vpop.permute.xlu0 %3229
  %3231 = vrot.lane.b32.xlu0 %v3226, 64
  %v3232 = vpop.permute.xlu0 %3231
  %v3235 = vmul.f32 %v3198, %v3230
  %v3236 = vmul.f32 %v3200, %v3232
  %v3237 = vxor.u32 %v3187, 2147483648
  %v3238 = vxor.u32 %v3188, 2147483648
  %v3239 = vmul.f32 %v3237, 1.442695
  %v3240 = vpow.pop %v3239
  %v3241 = vmul.f32 %v3238, 1.442695
  %v3242 = vpow.pop %v3241
  %v3243 = vadd.f32 %v3240, 1.0
  %v3244 = vadd.f32 %v3242, 1.0
  %v3245 = vrcp.pop %v3243
  %v3246 = vmul.f32 1.0, %v3245
  %v3247 = vrcp.pop %v3244
  %v3248 = vmul.f32 1.0, %v3247
  %v3249 = vtanh.pop %v3187
  %v3250 = vtanh.pop %v3188
  %v3251 = vmul.f32 %v3246, %v3047
  %v3252 = vmul.f32 %v3248, %v3048
  %3255 = vrot.lane.b32.xlu0 %v3249, 64
  %v3256 = vpop.permute.xlu0 %3255
  %3257 = vrot.lane.b32.xlu0 %v3250, 64
  %v3258 = vpop.permute.xlu0 %3257
  %v3261 = vmul.f32 %v3246, %v3256
  %v3262 = vmul.f32 %v3248, %v3258
  %3265 = vrot.lane.b32.xlu0 %v3261, 32
  %v3266 = vpop.permute.xlu0 %3265
  %3267 = vrot.lane.b32.xlu0 %v3262, 32
  %v3268 = vpop.permute.xlu0 %3267
  %v3271 = vadd.f32 %v3251, %v3266
  %v3272 = vadd.f32 %v3252, %v3268
  %v3273 = vtanh.pop %v3271
  %v3274 = vtanh.pop %v3272
  %3277 = vrot.lane.b32.xlu0 %v3273, 64
  %v3278 = vpop.permute.xlu0 %3277
  %3279 = vrot.lane.b32.xlu0 %v3274, 64
  %v3280 = vpop.permute.xlu0 %3279
  %v3283 = vmul.f32 %v3246, %v3278
  %v3284 = vmul.f32 %v3248, %v3280
  %v3285 = vpack.c.bf16 %v3236, %v3235
  %v3287 = vunpack.c.l.b16 %v3285
  %v3288 = vunpack.c.h.b16 %v3285
  %v3289 = vpack.c.b16 %v3287, %v3287
  %v3290 = vpack.c.b16 %v3288, %v3288
  %3291 = vrot.lane.b32.xlu0 %v3289, 32
  %v3292 = vpop.permute.xlu0 %3291
  %3293 = vrot.lane.b32.xlu0 %v3290, 32
  %v3294 = vpop.permute.xlu0 %3293
  %3297 = vst.msk [vmem:[#allocation3 + $0x18] sm:$0xf] %vm523, %v3292
  %3298 = vst.msk [vmem:[#allocation3 + $0x1c] sm:$0xf] %vm523, %v3294
  %v3299 = vpack.c.bf16 %v3284, %v3283
  %v3301 = vunpack.c.l.b16 %v3299
  %v3302 = vunpack.c.h.b16 %v3299
  %v3303 = vpack.c.b16 %v3301, %v3301
  %v3304 = vpack.c.b16 %v3302, %v3302
  %3305 = vrot.lane.b32.xlu0 %v3303, 64
  %v3306 = vpop.permute.xlu0 %3305
  %3307 = vrot.lane.b32.xlu0 %v3304, 64
  %v3308 = vpop.permute.xlu0 %3307
  %3311 = vst.msk [vmem:[#allocation3 + $0x20] sm:$0xf] %vm538, %v3306
  %3312 = vst.msk [vmem:[#allocation3 + $0x24] sm:$0xf] %vm538, %v3308
  %v3313 = vld [vmem:[#allocation4 + $0x80] sm:$0xff]
  %v3314 = vld [vmem:[#allocation4 + $0x90] sm:$0xff]
  %3315 = vrot.lane.b32.xlu0 %v3285, 32
  %v3316 = vpop.permute.xlu0 %3315
  %v3318 = vsel %vm311, %v3316, 0
  %3320 = vmatprep.subr.bf16.mxu0 0
  %3321 = vmatpush1.bf16.msra.mxu0 0
  %3322 = vmatprep.subr.bf16.mxu0 0
  %3323 = vmatpush1.bf16.msra.mxu0 0
  %3324 = vmatprep.subr.bf16.mxu0 0
  %3325 = vmatpush1.bf16.msra.mxu0 0
  %3326 = vmatprep.subr.bf16.mxu0 0
  %3327 = vmatpush1.bf16.msra.mxu0 0
  %3328 = vmatprep.subr.bf16.mxu0 0
  %3329 = vmatpush1.bf16.msra.mxu0 0
  %3330 = vmatprep.subr.bf16.mxu0 0
  %3331 = vmatpush1.bf16.msra.mxu0 0
  %3332 = vmatprep.subr.bf16.mxu0 0
  %3333 = vmatpush1.bf16.msra.mxu0 %v2414
  %3334 = vmatprep.subr.bf16.mxu0 0
  %3335 = vmatpush1.bf16.msra.mxu0 %v2413
  %3336 = vmatprep.subr.bf16.mxu0 0
  %3337 = vmatpush2.bf16.msra.mxu0 0
  %3338 = vmatprep.subr.bf16.mxu0 0
  %3339 = vmatpush2.bf16.msra.mxu0 0
  %3340 = vmatprep.subr.bf16.mxu0 0
  %3341 = vmatpush2.bf16.msra.mxu0 0
  %3342 = vmatprep.subr.bf16.mxu0 0
  %3343 = vmatpush2.bf16.msra.mxu0 0
  %3344 = vmatprep.subr.bf16.mxu0 0
  %3345 = vmatpush2.bf16.msra.mxu0 0
  %3346 = vmatprep.subr.bf16.mxu0 0
  %3347 = vmatpush2.bf16.msra.mxu0 0
  %3348 = vmatprep.subr.bf16.mxu0 0
  %3349 = vmatpush2.bf16.msra.mxu0 0
  %3350 = vmatprep.subr.bf16.mxu0 0
  %3351 = vmatpush2.bf16.msra.mxu0 0
  %3352 = vmatprep.mubr.bf16.mxu0 0
  %3353 = vmatmul.mubr.bf16.gmra.mxu0 %v3318
  %v3354 = vpop.f32.mrf.mxu0
  %v3355 = vadd.f32 0.0, %v3354
  %v3356 = vpop.f32.mrf.mxu0
  %v3357 = vpop.f32.mrf.mxu0
  %v3358 = vadd.f32 0.0, %v3357
  %v3359 = vpop.f32.mrf.mxu0
  %3360 = vdwg.mxu0
  %v3361 = vadd.f32 %v3313, %v3355
  %v3362 = vadd.f32 %v3314, %v3358
  %v3363 = vld [vmem:[#allocation4 + $0x68] sm:$0xff]
  %v3364 = vld [vmem:[#allocation4 + $0x78] sm:$0xff]
  %3365 = vrot.lane.b32.xlu0 %v3299, 32
  %v3366 = vpop.permute.xlu0 %3365
  %v3368 = vsel %vm311, %v3366, 0
  %3370 = vmatprep.subr.bf16.mxu0 0
  %3371 = vmatpush1.bf16.msra.mxu0 0
  %3372 = vmatprep.subr.bf16.mxu0 0
  %3373 = vmatpush1.bf16.msra.mxu0 0
  %3374 = vmatprep.subr.bf16.mxu0 0
  %3375 = vmatpush1.bf16.msra.mxu0 0
  %3376 = vmatprep.subr.bf16.mxu0 0
  %3377 = vmatpush1.bf16.msra.mxu0 0
  %3378 = vmatprep.subr.bf16.mxu0 0
  %3379 = vmatpush1.bf16.msra.mxu0 0
  %3380 = vmatprep.subr.bf16.mxu0 0
  %3381 = vmatpush1.bf16.msra.mxu0 0
  %3382 = vmatprep.subr.bf16.mxu0 0
  %3383 = vmatpush1.bf16.msra.mxu0 %v2471
  %3384 = vmatprep.subr.bf16.mxu0 0
  %3385 = vmatpush1.bf16.msra.mxu0 %v2470
  %3386 = vmatprep.subr.bf16.mxu0 0
  %3387 = vmatpush2.bf16.msra.mxu0 0
  %3388 = vmatprep.subr.bf16.mxu0 0
  %3389 = vmatpush2.bf16.msra.mxu0 0
  %3390 = vmatprep.subr.bf16.mxu0 0
  %3391 = vmatpush2.bf16.msra.mxu0 0
  %3392 = vmatprep.subr.bf16.mxu0 0
  %3393 = vmatpush2.bf16.msra.mxu0 0
  %3394 = vmatprep.subr.bf16.mxu0 0
  %3395 = vmatpush2.bf16.msra.mxu0 0
  %3396 = vmatprep.subr.bf16.mxu0 0
  %3397 = vmatpush2.bf16.msra.mxu0 0
  %3398 = vmatprep.subr.bf16.mxu0 0
  %3399 = vmatpush2.bf16.msra.mxu0 0
  %3400 = vmatprep.subr.bf16.mxu0 0
  %3401 = vmatpush2.bf16.msra.mxu0 0
  %3402 = vmatprep.mubr.bf16.mxu0 0
  %3403 = vmatmul.mubr.bf16.gmra.mxu0 %v3368
  %v3404 = vpop.f32.mrf.mxu0
  %v3405 = vadd.f32 0.0, %v3404
  %v3406 = vpop.f32.mrf.mxu0
  %v3407 = vpop.f32.mrf.mxu0
  %v3408 = vadd.f32 0.0, %v3407
  %v3409 = vpop.f32.mrf.mxu0
  %3410 = vdwg.mxu0
  %v3411 = vadd.f32 %v3363, %v3405
  %v3412 = vadd.f32 %v3364, %v3408
  %v3413 = vxor.u32 %v3361, 2147483648
  %v3414 = vxor.u32 %v3362, 2147483648
  %v3415 = vmul.f32 %v3413, 1.442695
  %v3416 = vpow.pop %v3415
  %v3417 = vmul.f32 %v3414, 1.442695
  %v3418 = vpow.pop %v3417
  %v3419 = vadd.f32 %v3416, 1.0
  %v3420 = vadd.f32 %v3418, 1.0
  %v3421 = vrcp.pop %v3419
  %v3422 = vmul.f32 1.0, %v3421
  %v3423 = vrcp.pop %v3420
  %v3424 = vmul.f32 1.0, %v3423
  %v3425 = vtanh.pop %v3361
  %v3426 = vtanh.pop %v3362
  %v3427 = vmul.f32 %v3422, %v3223
  %v3428 = vmul.f32 %v3424, %v3224
  %3431 = vrot.lane.b32.xlu0 %v3425, 64
  %v3432 = vpop.permute.xlu0 %3431
  %3433 = vrot.lane.b32.xlu0 %v3426, 64
  %v3434 = vpop.permute.xlu0 %3433
  %v3437 = vmul.f32 %v3422, %v3432
  %v3438 = vmul.f32 %v3424, %v3434
  %3441 = vrot.lane.b32.xlu0 %v3437, 32
  %v3442 = vpop.permute.xlu0 %3441
  %3443 = vrot.lane.b32.xlu0 %v3438, 32
  %v3444 = vpop.permute.xlu0 %3443
  %v3447 = vadd.f32 %v3427, %v3442
  %v3448 = vadd.f32 %v3428, %v3444
  %v3449 = vtanh.pop %v3447
  %v3450 = vtanh.pop %v3448
  %3453 = vrot.lane.b32.xlu0 %v3449, 64
  %v3454 = vpop.permute.xlu0 %3453
  %3455 = vrot.lane.b32.xlu0 %v3450, 64
  %v3456 = vpop.permute.xlu0 %3455
  %v3459 = vmul.f32 %v3422, %v3454
  %v3460 = vmul.f32 %v3424, %v3456
  %v3461 = vxor.u32 %v3411, 2147483648
  %v3462 = vxor.u32 %v3412, 2147483648
  %v3463 = vmul.f32 %v3461, 1.442695
  %v3464 = vpow.pop %v3463
  %v3465 = vmul.f32 %v3462, 1.442695
  %v3466 = vpow.pop %v3465
  %v3467 = vadd.f32 %v3464, 1.0
  %v3468 = vadd.f32 %v3466, 1.0
  %v3469 = vrcp.pop %v3467
  %v3470 = vmul.f32 1.0, %v3469
  %v3471 = vrcp.pop %v3468
  %v3472 = vmul.f32 1.0, %v3471
  %v3473 = vtanh.pop %v3411
  %v3474 = vtanh.pop %v3412
  %v3475 = vmul.f32 %v3470, %v3271
  %v3476 = vmul.f32 %v3472, %v3272
  %3479 = vrot.lane.b32.xlu0 %v3473, 64
  %v3480 = vpop.permute.xlu0 %3479
  %3481 = vrot.lane.b32.xlu0 %v3474, 64
  %v3482 = vpop.permute.xlu0 %3481
  %v3485 = vmul.f32 %v3470, %v3480
  %v3486 = vmul.f32 %v3472, %v3482
  %3489 = vrot.lane.b32.xlu0 %v3485, 32
  %v3490 = vpop.permute.xlu0 %3489
  %3491 = vrot.lane.b32.xlu0 %v3486, 32
  %v3492 = vpop.permute.xlu0 %3491
  %v3495 = vadd.f32 %v3475, %v3490
  %v3496 = vadd.f32 %v3476, %v3492
  %v3497 = vtanh.pop %v3495
  %v3498 = vtanh.pop %v3496
  %3501 = vrot.lane.b32.xlu0 %v3497, 64
  %v3502 = vpop.permute.xlu0 %3501
  %3503 = vrot.lane.b32.xlu0 %v3498, 64
  %v3504 = vpop.permute.xlu0 %3503
  %v3507 = vmul.f32 %v3470, %v3502
  %v3508 = vmul.f32 %v3472, %v3504
  %v3509 = vpack.c.bf16 %v3460, %v3459
  %v3511 = vunpack.c.l.b16 %v3509
  %v3512 = vunpack.c.h.b16 %v3509
  %v3513 = vpack.c.b16 %v3511, %v3511
  %v3514 = vpack.c.b16 %v3512, %v3512
  %3515 = vrot.lane.b32.xlu0 %v3513, 32
  %v3516 = vpop.permute.xlu0 %3515
  %3517 = vrot.lane.b32.xlu0 %v3514, 32
  %v3518 = vpop.permute.xlu0 %3517
  %3521 = vst.msk [vmem:[#allocation3 + $0x20] sm:$0xf] %vm523, %v3516
  %3522 = vst.msk [vmem:[#allocation3 + $0x24] sm:$0xf] %vm523, %v3518
  %v3523 = vpack.c.bf16 %v3508, %v3507
  %v3525 = vunpack.c.l.b16 %v3523
  %v3526 = vunpack.c.h.b16 %v3523
  %v3527 = vpack.c.b16 %v3525, %v3525
  %v3528 = vpack.c.b16 %v3526, %v3526
  %3529 = vrot.lane.b32.xlu0 %v3527, 64
  %v3530 = vpop.permute.xlu0 %3529
  %3531 = vrot.lane.b32.xlu0 %v3528, 64
  %v3532 = vpop.permute.xlu0 %3531
  %3535 = vst.msk [vmem:[#allocation3 + $0x18] sm:$0xf] %vm538, %v3530
  %3536 = vst.msk [vmem:[#allocation3 + $0x1c] sm:$0xf] %vm538, %v3532
  %v3537 = vld [vmem:[#allocation4 + $0xa0] sm:$0xff]
  %v3538 = vld [vmem:[#allocation4 + $0xb0] sm:$0xff]
  %3539 = vrot.lane.b32.xlu0 %v3509, 32
  %v3540 = vpop.permute.xlu0 %3539
  %v3542 = vsel %vm311, %v3540, 0
  %3544 = vmatprep.subr.bf16.mxu0 0
  %3545 = vmatpush1.bf16.msra.mxu0 0
  %3546 = vmatprep.subr.bf16.mxu0 0
  %3547 = vmatpush1.bf16.msra.mxu0 0
  %3548 = vmatprep.subr.bf16.mxu0 0
  %3549 = vmatpush1.bf16.msra.mxu0 0
  %3550 = vmatprep.subr.bf16.mxu0 0
  %3551 = vmatpush1.bf16.msra.mxu0 0
  %3552 = vmatprep.subr.bf16.mxu0 0
  %3553 = vmatpush1.bf16.msra.mxu0 0
  %3554 = vmatprep.subr.bf16.mxu0 0
  %3555 = vmatpush1.bf16.msra.mxu0 0
  %3556 = vmatprep.subr.bf16.mxu0 0
  %3557 = vmatpush1.bf16.msra.mxu0 %v2414
  %3558 = vmatprep.subr.bf16.mxu0 0
  %3559 = vmatpush1.bf16.msra.mxu0 %v2413
  %3560 = vmatprep.subr.bf16.mxu0 0
  %3561 = vmatpush2.bf16.msra.mxu0 0
  %3562 = vmatprep.subr.bf16.mxu0 0
  %3563 = vmatpush2.bf16.msra.mxu0 0
  %3564 = vmatprep.subr.bf16.mxu0 0
  %3565 = vmatpush2.bf16.msra.mxu0 0
  %3566 = vmatprep.subr.bf16.mxu0 0
  %3567 = vmatpush2.bf16.msra.mxu0 0
  %3568 = vmatprep.subr.bf16.mxu0 0
  %3569 = vmatpush2.bf16.msra.mxu0 0
  %3570 = vmatprep.subr.bf16.mxu0 0
  %3571 = vmatpush2.bf16.msra.mxu0 0
  %3572 = vmatprep.subr.bf16.mxu0 0
  %3573 = vmatpush2.bf16.msra.mxu0 0
  %3574 = vmatprep.subr.bf16.mxu0 0
  %3575 = vmatpush2.bf16.msra.mxu0 0
  %3576 = vmatprep.mubr.bf16.mxu0 0
  %3577 = vmatmul.mubr.bf16.gmra.mxu0 %v3542
  %v3578 = vpop.f32.mrf.mxu0
  %v3579 = vadd.f32 0.0, %v3578
  %v3580 = vpop.f32.mrf.mxu0
  %v3581 = vpop.f32.mrf.mxu0
  %v3582 = vadd.f32 0.0, %v3581
  %v3583 = vpop.f32.mrf.mxu0
  %3584 = vdwg.mxu0
  %v3585 = vadd.f32 %v3537, %v3579
  %v3586 = vadd.f32 %v3538, %v3582
  %v3587 = vld [vmem:[#allocation4 + $0x48] sm:$0xff]
  %v3588 = vld [vmem:[#allocation4 + $0x58] sm:$0xff]
  %3589 = vrot.lane.b32.xlu0 %v3523, 32
  %v3590 = vpop.permute.xlu0 %3589
  %v3592 = vsel %vm311, %v3590, 0
  %3594 = vmatprep.subr.bf16.mxu0 0
  %3595 = vmatpush1.bf16.msra.mxu0 0
  %3596 = vmatprep.subr.bf16.mxu0 0
  %3597 = vmatpush1.bf16.msra.mxu0 0
  %3598 = vmatprep.subr.bf16.mxu0 0
  %3599 = vmatpush1.bf16.msra.mxu0 0
  %3600 = vmatprep.subr.bf16.mxu0 0
  %3601 = vmatpush1.bf16.msra.mxu0 0
  %3602 = vmatprep.subr.bf16.mxu0 0
  %3603 = vmatpush1.bf16.msra.mxu0 0
  %3604 = vmatprep.subr.bf16.mxu0 0
  %3605 = vmatpush1.bf16.msra.mxu0 0
  %3606 = vmatprep.subr.bf16.mxu0 0
  %3607 = vmatpush1.bf16.msra.mxu0 %v2471
  %3608 = vmatprep.subr.bf16.mxu0 0
  %3609 = vmatpush1.bf16.msra.mxu0 %v2470
  %3610 = vmatprep.subr.bf16.mxu0 0
  %3611 = vmatpush2.bf16.msra.mxu0 0
  %3612 = vmatprep.subr.bf16.mxu0 0
  %3613 = vmatpush2.bf16.msra.mxu0 0
  %3614 = vmatprep.subr.bf16.mxu0 0
  %3615 = vmatpush2.bf16.msra.mxu0 0
  %3616 = vmatprep.subr.bf16.mxu0 0
  %3617 = vmatpush2.bf16.msra.mxu0 0
  %3618 = vmatprep.subr.bf16.mxu0 0
  %3619 = vmatpush2.bf16.msra.mxu0 0
  %3620 = vmatprep.subr.bf16.mxu0 0
  %3621 = vmatpush2.bf16.msra.mxu0 0
  %3622 = vmatprep.subr.bf16.mxu0 0
  %3623 = vmatpush2.bf16.msra.mxu0 0
  %3624 = vmatprep.subr.bf16.mxu0 0
  %3625 = vmatpush2.bf16.msra.mxu0 0
  %3626 = vmatprep.mubr.bf16.mxu0 0
  %3627 = vmatmul.mubr.bf16.gmra.mxu0 %v3592
  %v3628 = vpop.f32.mrf.mxu0
  %v3629 = vadd.f32 0.0, %v3628
  %v3630 = vpop.f32.mrf.mxu0
  %v3631 = vpop.f32.mrf.mxu0
  %v3632 = vadd.f32 0.0, %v3631
  %v3633 = vpop.f32.mrf.mxu0
  %3634 = vdwg.mxu0
  %v3635 = vadd.f32 %v3587, %v3629
  %v3636 = vadd.f32 %v3588, %v3632
  %v3637 = vxor.u32 %v3585, 2147483648
  %v3638 = vxor.u32 %v3586, 2147483648
  %v3639 = vmul.f32 %v3637, 1.442695
  %v3640 = vpow.pop %v3639
  %v3641 = vmul.f32 %v3638, 1.442695
  %v3642 = vpow.pop %v3641
  %v3643 = vadd.f32 %v3640, 1.0
  %v3644 = vadd.f32 %v3642, 1.0
  %v3645 = vrcp.pop %v3643
  %v3646 = vmul.f32 1.0, %v3645
  %v3647 = vrcp.pop %v3644
  %v3648 = vmul.f32 1.0, %v3647
  %v3649 = vtanh.pop %v3585
  %v3650 = vtanh.pop %v3586
  %v3651 = vmul.f32 %v3646, %v3447
  %v3652 = vmul.f32 %v3648, %v3448
  %3655 = vrot.lane.b32.xlu0 %v3649, 64
  %v3656 = vpop.permute.xlu0 %3655
  %3657 = vrot.lane.b32.xlu0 %v3650, 64
  %v3658 = vpop.permute.xlu0 %3657
  %v3661 = vmul.f32 %v3646, %v3656
  %v3662 = vmul.f32 %v3648, %v3658
  %3665 = vrot.lane.b32.xlu0 %v3661, 32
  %v3666 = vpop.permute.xlu0 %3665
  %3667 = vrot.lane.b32.xlu0 %v3662, 32
  %v3668 = vpop.permute.xlu0 %3667
  %v3671 = vadd.f32 %v3651, %v3666
  %v3672 = vadd.f32 %v3652, %v3668
  %v3673 = vtanh.pop %v3671
  %v3674 = vtanh.pop %v3672
  %3677 = vrot.lane.b32.xlu0 %v3673, 64
  %v3678 = vpop.permute.xlu0 %3677
  %3679 = vrot.lane.b32.xlu0 %v3674, 64
  %v3680 = vpop.permute.xlu0 %3679
  %v3683 = vmul.f32 %v3646, %v3678
  %v3684 = vmul.f32 %v3648, %v3680
  %v3685 = vxor.u32 %v3635, 2147483648
  %v3686 = vxor.u32 %v3636, 2147483648
  %v3687 = vmul.f32 %v3685, 1.442695
  %v3688 = vpow.pop %v3687
  %v3689 = vmul.f32 %v3686, 1.442695
  %v3690 = vpow.pop %v3689
  %v3691 = vadd.f32 %v3688, 1.0
  %v3692 = vadd.f32 %v3690, 1.0
  %v3693 = vrcp.pop %v3691
  %v3694 = vmul.f32 1.0, %v3693
  %v3695 = vrcp.pop %v3692
  %v3696 = vmul.f32 1.0, %v3695
  %v3697 = vtanh.pop %v3635
  %v3698 = vtanh.pop %v3636
  %v3699 = vmul.f32 %v3694, %v3495
  %v3700 = vmul.f32 %v3696, %v3496
  %3703 = vrot.lane.b32.xlu0 %v3697, 64
  %v3704 = vpop.permute.xlu0 %3703
  %3705 = vrot.lane.b32.xlu0 %v3698, 64
  %v3706 = vpop.permute.xlu0 %3705
  %v3709 = vmul.f32 %v3694, %v3704
  %v3710 = vmul.f32 %v3696, %v3706
  %3713 = vrot.lane.b32.xlu0 %v3709, 32
  %v3714 = vpop.permute.xlu0 %3713
  %3715 = vrot.lane.b32.xlu0 %v3710, 32
  %v3716 = vpop.permute.xlu0 %3715
  %v3719 = vadd.f32 %v3699, %v3714
  %v3720 = vadd.f32 %v3700, %v3716
  %v3721 = vtanh.pop %v3719
  %v3722 = vtanh.pop %v3720
  %3725 = vrot.lane.b32.xlu0 %v3721, 64
  %v3726 = vpop.permute.xlu0 %3725
  %3727 = vrot.lane.b32.xlu0 %v3722, 64
  %v3728 = vpop.permute.xlu0 %3727
  %v3731 = vmul.f32 %v3694, %v3726
  %v3732 = vmul.f32 %v3696, %v3728
  %v3733 = vpack.c.bf16 %v3684, %v3683
  %v3735 = vunpack.c.l.b16 %v3733
  %v3736 = vunpack.c.h.b16 %v3733
  %v3737 = vpack.c.b16 %v3735, %v3735
  %v3738 = vpack.c.b16 %v3736, %v3736
  %3739 = vrot.lane.b32.xlu0 %v3737, 32
  %v3740 = vpop.permute.xlu0 %3739
  %3741 = vrot.lane.b32.xlu0 %v3738, 32
  %v3742 = vpop.permute.xlu0 %3741
  %3745 = vst.msk [vmem:[#allocation3 + $0x28] sm:$0xf] %vm523, %v3740
  %3746 = vst.msk [vmem:[#allocation3 + $0x2c] sm:$0xf] %vm523, %v3742
  %v3747 = vpack.c.bf16 %v3732, %v3731
  %v3749 = vunpack.c.l.b16 %v3747
  %v3750 = vunpack.c.h.b16 %v3747
  %v3751 = vpack.c.b16 %v3749, %v3749
  %v3752 = vpack.c.b16 %v3750, %v3750
  %3753 = vrot.lane.b32.xlu0 %v3751, 64
  %v3754 = vpop.permute.xlu0 %3753
  %3755 = vrot.lane.b32.xlu0 %v3752, 64
  %v3756 = vpop.permute.xlu0 %3755
  %3759 = vst.msk [vmem:[#allocation3 + $0x10] sm:$0xf] %vm538, %v3754
  %3760 = vst.msk [vmem:[#allocation3 + $0x14] sm:$0xf] %vm538, %v3756
  %v3761 = vld [vmem:[#allocation4 + $0xc0] sm:$0xff]
  %v3762 = vld [vmem:[#allocation4 + $0xd0] sm:$0xff]
  %3763 = vrot.lane.b32.xlu0 %v3733, 32
  %v3764 = vpop.permute.xlu0 %3763
  %v3766 = vsel %vm311, %v3764, 0
  %3768 = vmatprep.subr.bf16.mxu0 0
  %3769 = vmatpush1.bf16.msra.mxu0 0
  %3770 = vmatprep.subr.bf16.mxu0 0
  %3771 = vmatpush1.bf16.msra.mxu0 0
  %3772 = vmatprep.subr.bf16.mxu0 0
  %3773 = vmatpush1.bf16.msra.mxu0 0
  %3774 = vmatprep.subr.bf16.mxu0 0
  %3775 = vmatpush1.bf16.msra.mxu0 0
  %3776 = vmatprep.subr.bf16.mxu0 0
  %3777 = vmatpush1.bf16.msra.mxu0 0
  %3778 = vmatprep.subr.bf16.mxu0 0
  %3779 = vmatpush1.bf16.msra.mxu0 0
  %3780 = vmatprep.subr.bf16.mxu0 0
  %3781 = vmatpush1.bf16.msra.mxu0 %v2414
  %3782 = vmatprep.subr.bf16.mxu0 0
  %3783 = vmatpush1.bf16.msra.mxu0 %v2413
  %3784 = vmatprep.subr.bf16.mxu0 0
  %3785 = vmatpush2.bf16.msra.mxu0 0
  %3786 = vmatprep.subr.bf16.mxu0 0
  %3787 = vmatpush2.bf16.msra.mxu0 0
  %3788 = vmatprep.subr.bf16.mxu0 0
  %3789 = vmatpush2.bf16.msra.mxu0 0
  %3790 = vmatprep.subr.bf16.mxu0 0
  %3791 = vmatpush2.bf16.msra.mxu0 0
  %3792 = vmatprep.subr.bf16.mxu0 0
  %3793 = vmatpush2.bf16.msra.mxu0 0
  %3794 = vmatprep.subr.bf16.mxu0 0
  %3795 = vmatpush2.bf16.msra.mxu0 0
  %3796 = vmatprep.subr.bf16.mxu0 0
  %3797 = vmatpush2.bf16.msra.mxu0 0
  %3798 = vmatprep.subr.bf16.mxu0 0
  %3799 = vmatpush2.bf16.msra.mxu0 0
  %3800 = vmatprep.mubr.bf16.mxu0 0
  %3801 = vmatmul.mubr.bf16.gmra.mxu0 %v3766
  %v3802 = vpop.f32.mrf.mxu0
  %v3803 = vadd.f32 0.0, %v3802
  %v3804 = vpop.f32.mrf.mxu0
  %v3805 = vpop.f32.mrf.mxu0
  %v3806 = vadd.f32 0.0, %v3805
  %v3807 = vpop.f32.mrf.mxu0
  %3808 = vdwg.mxu0
  %v3809 = vadd.f32 %v3761, %v3803
  %v3810 = vadd.f32 %v3762, %v3806
  %v3811 = vld [vmem:[#allocation4 + $0x28] sm:$0xff]
  %v3812 = vld [vmem:[#allocation4 + $0x38] sm:$0xff]
  %3813 = vrot.lane.b32.xlu0 %v3747, 32
  %v3814 = vpop.permute.xlu0 %3813
  %v3816 = vsel %vm311, %v3814, 0
  %3818 = vmatprep.subr.bf16.mxu0 0
  %3819 = vmatpush1.bf16.msra.mxu0 0
  %3820 = vmatprep.subr.bf16.mxu0 0
  %3821 = vmatpush1.bf16.msra.mxu0 0
  %3822 = vmatprep.subr.bf16.mxu0 0
  %3823 = vmatpush1.bf16.msra.mxu0 0
  %3824 = vmatprep.subr.bf16.mxu0 0
  %3825 = vmatpush1.bf16.msra.mxu0 0
  %3826 = vmatprep.subr.bf16.mxu0 0
  %3827 = vmatpush1.bf16.msra.mxu0 0
  %3828 = vmatprep.subr.bf16.mxu0 0
  %3829 = vmatpush1.bf16.msra.mxu0 0
  %3830 = vmatprep.subr.bf16.mxu0 0
  %3831 = vmatpush1.bf16.msra.mxu0 %v2471
  %3832 = vmatprep.subr.bf16.mxu0 0
  %3833 = vmatpush1.bf16.msra.mxu0 %v2470
  %3834 = vmatprep.subr.bf16.mxu0 0
  %3835 = vmatpush2.bf16.msra.mxu0 0
  %3836 = vmatprep.subr.bf16.mxu0 0
  %3837 = vmatpush2.bf16.msra.mxu0 0
  %3838 = vmatprep.subr.bf16.mxu0 0
  %3839 = vmatpush2.bf16.msra.mxu0 0
  %3840 = vmatprep.subr.bf16.mxu0 0
  %3841 = vmatpush2.bf16.msra.mxu0 0
  %3842 = vmatprep.subr.bf16.mxu0 0
  %3843 = vmatpush2.bf16.msra.mxu0 0
  %3844 = vmatprep.subr.bf16.mxu0 0
  %3845 = vmatpush2.bf16.msra.mxu0 0
  %3846 = vmatprep.subr.bf16.mxu0 0
  %3847 = vmatpush2.bf16.msra.mxu0 0
  %3848 = vmatprep.subr.bf16.mxu0 0
  %3849 = vmatpush2.bf16.msra.mxu0 0
  %3850 = vmatprep.mubr.bf16.mxu0 0
  %3851 = vmatmul.mubr.bf16.gmra.mxu0 %v3816
  %v3852 = vpop.f32.mrf.mxu0
  %v3853 = vadd.f32 0.0, %v3852
  %v3854 = vpop.f32.mrf.mxu0
  %v3855 = vpop.f32.mrf.mxu0
  %v3856 = vadd.f32 0.0, %v3855
  %v3857 = vpop.f32.mrf.mxu0
  %3858 = vdwg.mxu0
  %v3859 = vadd.f32 %v3811, %v3853
  %v3860 = vadd.f32 %v3812, %v3856
  %v3861 = vxor.u32 %v3809, 2147483648
  %v3862 = vxor.u32 %v3810, 2147483648
  %v3863 = vmul.f32 %v3861, 1.442695
  %v3864 = vpow.pop %v3863
  %v3865 = vmul.f32 %v3862, 1.442695
  %v3866 = vpow.pop %v3865
  %v3867 = vadd.f32 %v3864, 1.0
  %v3868 = vadd.f32 %v3866, 1.0
  %v3869 = vrcp.pop %v3867
  %v3870 = vmul.f32 1.0, %v3869
  %v3871 = vrcp.pop %v3868
  %v3872 = vmul.f32 1.0, %v3871
  %v3873 = vtanh.pop %v3809
  %v3874 = vtanh.pop %v3810
  %v3875 = vmul.f32 %v3870, %v3671
  %v3876 = vmul.f32 %v3872, %v3672
  %3879 = vrot.lane.b32.xlu0 %v3873, 64
  %v3880 = vpop.permute.xlu0 %3879
  %3881 = vrot.lane.b32.xlu0 %v3874, 64
  %v3882 = vpop.permute.xlu0 %3881
  %v3885 = vmul.f32 %v3870, %v3880
  %v3886 = vmul.f32 %v3872, %v3882
  %3889 = vrot.lane.b32.xlu0 %v3885, 32
  %v3890 = vpop.permute.xlu0 %3889
  %3891 = vrot.lane.b32.xlu0 %v3886, 32
  %v3892 = vpop.permute.xlu0 %3891
  %v3895 = vadd.f32 %v3875, %v3890
  %v3896 = vadd.f32 %v3876, %v3892
  %v3897 = vtanh.pop %v3895
  %v3898 = vtanh.pop %v3896
  %3901 = vrot.lane.b32.xlu0 %v3897, 64
  %v3902 = vpop.permute.xlu0 %3901
  %3903 = vrot.lane.b32.xlu0 %v3898, 64
  %v3904 = vpop.permute.xlu0 %3903
  %v3907 = vmul.f32 %v3870, %v3902
  %v3908 = vmul.f32 %v3872, %v3904
  %v3909 = vxor.u32 %v3859, 2147483648
  %v3910 = vxor.u32 %v3860, 2147483648
  %v3911 = vmul.f32 %v3909, 1.442695
  %v3912 = vpow.pop %v3911
  %v3913 = vmul.f32 %v3910, 1.442695
  %v3914 = vpow.pop %v3913
  %v3915 = vadd.f32 %v3912, 1.0
  %v3916 = vadd.f32 %v3914, 1.0
  %v3917 = vrcp.pop %v3915
  %v3918 = vmul.f32 1.0, %v3917
  %v3919 = vrcp.pop %v3916
  %v3920 = vmul.f32 1.0, %v3919
  %v3921 = vtanh.pop %v3859
  %v3922 = vtanh.pop %v3860
  %v3923 = vmul.f32 %v3918, %v3719
  %v3924 = vmul.f32 %v3920, %v3720
  %3927 = vrot.lane.b32.xlu0 %v3921, 64
  %v3928 = vpop.permute.xlu0 %3927
  %3929 = vrot.lane.b32.xlu0 %v3922, 64
  %v3930 = vpop.permute.xlu0 %3929
  %v3933 = vmul.f32 %v3918, %v3928
  %v3934 = vmul.f32 %v3920, %v3930
  %3937 = vrot.lane.b32.xlu0 %v3933, 32
  %v3938 = vpop.permute.xlu0 %3937
  %3939 = vrot.lane.b32.xlu0 %v3934, 32
  %v3940 = vpop.permute.xlu0 %3939
  %v3943 = vadd.f32 %v3923, %v3938
  %v3944 = vadd.f32 %v3924, %v3940
  %v3945 = vtanh.pop %v3943
  %v3946 = vtanh.pop %v3944
  %3949 = vrot.lane.b32.xlu0 %v3945, 64
  %v3950 = vpop.permute.xlu0 %3949
  %3951 = vrot.lane.b32.xlu0 %v3946, 64
  %v3952 = vpop.permute.xlu0 %3951
  %v3955 = vmul.f32 %v3918, %v3950
  %v3956 = vmul.f32 %v3920, %v3952
  %v3957 = vpack.c.bf16 %v3908, %v3907
  %v3959 = vunpack.c.l.b16 %v3957
  %v3960 = vunpack.c.h.b16 %v3957
  %v3961 = vpack.c.b16 %v3959, %v3959
  %v3962 = vpack.c.b16 %v3960, %v3960
  %3963 = vrot.lane.b32.xlu0 %v3961, 32
  %v3964 = vpop.permute.xlu0 %3963
  %3965 = vrot.lane.b32.xlu0 %v3962, 32
  %v3966 = vpop.permute.xlu0 %3965
  %3969 = vst.msk [vmem:[#allocation3 + $0x30] sm:$0xf] %vm523, %v3964
  %3970 = vst.msk [vmem:[#allocation3 + $0x34] sm:$0xf] %vm523, %v3966
  %v3971 = vpack.c.bf16 %v3956, %v3955
  %v3973 = vunpack.c.l.b16 %v3971
  %v3974 = vunpack.c.h.b16 %v3971
  %v3975 = vpack.c.b16 %v3973, %v3973
  %v3976 = vpack.c.b16 %v3974, %v3974
  %3977 = vrot.lane.b32.xlu0 %v3975, 64
  %v3978 = vpop.permute.xlu0 %3977
  %3979 = vrot.lane.b32.xlu0 %v3976, 64
  %v3980 = vpop.permute.xlu0 %3979
  %3983 = vst.msk [vmem:[#allocation3 + $0x8] sm:$0xf] %vm538, %v3978
  %3984 = vst.msk [vmem:[#allocation3 + $0xc] sm:$0xf] %vm538, %v3980
  %v3985 = vld [vmem:[#allocation4 + $0xe0] sm:$0xff]
  %v3986 = vld [vmem:[#allocation4 + $0xf0] sm:$0xff]
  %3987 = vrot.lane.b32.xlu0 %v3957, 32
  %v3988 = vpop.permute.xlu0 %3987
  %v3990 = vsel %vm311, %v3988, 0
  %3992 = vmatprep.subr.bf16.mxu0 0
  %3993 = vmatpush1.bf16.msra.mxu0 0
  %3994 = vmatprep.subr.bf16.mxu0 0
  %3995 = vmatpush1.bf16.msra.mxu0 0
  %3996 = vmatprep.subr.bf16.mxu0 0
  %3997 = vmatpush1.bf16.msra.mxu0 0
  %3998 = vmatprep.subr.bf16.mxu0 0
  %3999 = vmatpush1.bf16.msra.mxu0 0
  %4000 = vmatprep.subr.bf16.mxu0 0
  %4001 = vmatpush1.bf16.msra.mxu0 0
  %4002 = vmatprep.subr.bf16.mxu0 0
  %4003 = vmatpush1.bf16.msra.mxu0 0
  %4004 = vmatprep.subr.bf16.mxu0 0
  %4005 = vmatpush1.bf16.msra.mxu0 %v2414
  %4006 = vmatprep.subr.bf16.mxu0 0
  %4007 = vmatpush1.bf16.msra.mxu0 %v2413
  %4008 = vmatprep.subr.bf16.mxu0 0
  %4009 = vmatpush2.bf16.msra.mxu0 0
  %4010 = vmatprep.subr.bf16.mxu0 0
  %4011 = vmatpush2.bf16.msra.mxu0 0
  %4012 = vmatprep.subr.bf16.mxu0 0
  %4013 = vmatpush2.bf16.msra.mxu0 0
  %4014 = vmatprep.subr.bf16.mxu0 0
  %4015 = vmatpush2.bf16.msra.mxu0 0
  %4016 = vmatprep.subr.bf16.mxu0 0
  %4017 = vmatpush2.bf16.msra.mxu0 0
  %4018 = vmatprep.subr.bf16.mxu0 0
  %4019 = vmatpush2.bf16.msra.mxu0 0
  %4020 = vmatprep.subr.bf16.mxu0 0
  %4021 = vmatpush2.bf16.msra.mxu0 0
  %4022 = vmatprep.subr.bf16.mxu0 0
  %4023 = vmatpush2.bf16.msra.mxu0 0
  %4024 = vmatprep.mubr.bf16.mxu0 0
  %4025 = vmatmul.mubr.bf16.gmra.mxu0 %v3990
  %v4026 = vpop.f32.mrf.mxu0
  %v4027 = vadd.f32 0.0, %v4026
  %v4028 = vpop.f32.mrf.mxu0
  %v4029 = vpop.f32.mrf.mxu0
  %v4030 = vadd.f32 0.0, %v4029
  %v4031 = vpop.f32.mrf.mxu0
  %4032 = vdwg.mxu0
  %v4033 = vadd.f32 %v3985, %v4027
  %v4034 = vadd.f32 %v3986, %v4030
  %v4035 = vld [vmem:[#allocation4 + $0x8] sm:$0xff]
  %v4036 = vld [vmem:[#allocation4 + $0x18] sm:$0xff]
  %4037 = vrot.lane.b32.xlu0 %v3971, 32
  %v4038 = vpop.permute.xlu0 %4037
  %v4040 = vsel %vm311, %v4038, 0
  %4042 = vmatprep.subr.bf16.mxu0 0
  %4043 = vmatpush1.bf16.msra.mxu0 0
  %4044 = vmatprep.subr.bf16.mxu0 0
  %4045 = vmatpush1.bf16.msra.mxu0 0
  %4046 = vmatprep.subr.bf16.mxu0 0
  %4047 = vmatpush1.bf16.msra.mxu0 0
  %4048 = vmatprep.subr.bf16.mxu0 0
  %4049 = vmatpush1.bf16.msra.mxu0 0
  %4050 = vmatprep.subr.bf16.mxu0 0
  %4051 = vmatpush1.bf16.msra.mxu0 0
  %4052 = vmatprep.subr.bf16.mxu0 0
  %4053 = vmatpush1.bf16.msra.mxu0 0
  %4054 = vmatprep.subr.bf16.mxu0 0
  %4055 = vmatpush1.bf16.msra.mxu0 %v2471
  %4056 = vmatprep.subr.bf16.mxu0 0
  %4057 = vmatpush1.bf16.msra.mxu0 %v2470
  %4058 = vmatprep.subr.bf16.mxu0 0
  %4059 = vmatpush2.bf16.msra.mxu0 0
  %4060 = vmatprep.subr.bf16.mxu0 0
  %4061 = vmatpush2.bf16.msra.mxu0 0
  %4062 = vmatprep.subr.bf16.mxu0 0
  %4063 = vmatpush2.bf16.msra.mxu0 0
  %4064 = vmatprep.subr.bf16.mxu0 0
  %4065 = vmatpush2.bf16.msra.mxu0 0
  %4066 = vmatprep.subr.bf16.mxu0 0
  %4067 = vmatpush2.bf16.msra.mxu0 0
  %4068 = vmatprep.subr.bf16.mxu0 0
  %4069 = vmatpush2.bf16.msra.mxu0 0
  %4070 = vmatprep.subr.bf16.mxu0 0
  %4071 = vmatpush2.bf16.msra.mxu0 0
  %4072 = vmatprep.subr.bf16.mxu0 0
  %4073 = vmatpush2.bf16.msra.mxu0 0
  %4074 = vmatprep.mubr.bf16.mxu0 0
  %4075 = vmatmul.mubr.bf16.gmra.mxu0 %v4040
  %v4076 = vpop.f32.mrf.mxu0
  %v4077 = vadd.f32 0.0, %v4076
  %v4078 = vpop.f32.mrf.mxu0
  %v4079 = vpop.f32.mrf.mxu0
  %v4080 = vadd.f32 0.0, %v4079
  %v4081 = vpop.f32.mrf.mxu0
  %4082 = vdwg.mxu0
  %v4083 = vadd.f32 %v4035, %v4077
  %v4084 = vadd.f32 %v4036, %v4080
  %v4085 = vxor.u32 %v4033, 2147483648
  %v4086 = vxor.u32 %v4034, 2147483648
  %v4087 = vmul.f32 %v4085, 1.442695
  %v4088 = vpow.pop %v4087
  %v4089 = vmul.f32 %v4086, 1.442695
  %v4090 = vpow.pop %v4089
  %v4091 = vadd.f32 %v4088, 1.0
  %v4092 = vadd.f32 %v4090, 1.0
  %v4093 = vrcp.pop %v4091
  %v4094 = vmul.f32 1.0, %v4093
  %v4095 = vrcp.pop %v4092
  %v4096 = vmul.f32 1.0, %v4095
  %v4097 = vtanh.pop %v4033
  %v4098 = vtanh.pop %v4034
  %v4099 = vmul.f32 %v4094, %v3895
  %v4100 = vmul.f32 %v4096, %v3896
  %4103 = vrot.lane.b32.xlu0 %v4097, 64
  %v4104 = vpop.permute.xlu0 %4103
  %4105 = vrot.lane.b32.xlu0 %v4098, 64
  %v4106 = vpop.permute.xlu0 %4105
  %v4109 = vmul.f32 %v4094, %v4104
  %v4110 = vmul.f32 %v4096, %v4106
  %4113 = vrot.lane.b32.xlu0 %v4109, 32
  %v4114 = vpop.permute.xlu0 %4113
  %4115 = vrot.lane.b32.xlu0 %v4110, 32
  %v4116 = vpop.permute.xlu0 %4115
  %v4119 = vadd.f32 %v4099, %v4114
  %v4120 = vadd.f32 %v4100, %v4116
  %v4121 = vtanh.pop %v4119
  %v4122 = vtanh.pop %v4120
  %4125 = vrot.lane.b32.xlu0 %v4121, 64
  %v4126 = vpop.permute.xlu0 %4125
  %4127 = vrot.lane.b32.xlu0 %v4122, 64
  %v4128 = vpop.permute.xlu0 %4127
  %v4131 = vmul.f32 %v4094, %v4126
  %v4132 = vmul.f32 %v4096, %v4128
  %v4133 = vxor.u32 %v4083, 2147483648
  %v4134 = vxor.u32 %v4084, 2147483648
  %v4135 = vmul.f32 %v4133, 1.442695
  %v4136 = vpow.pop %v4135
  %v4137 = vmul.f32 %v4134, 1.442695
  %v4138 = vpow.pop %v4137
  %v4139 = vadd.f32 %v4136, 1.0
  %v4140 = vadd.f32 %v4138, 1.0
  %v4141 = vrcp.pop %v4139
  %v4142 = vmul.f32 1.0, %v4141
  %v4143 = vrcp.pop %v4140
  %v4144 = vmul.f32 1.0, %v4143
  %v4145 = vtanh.pop %v4083
  %v4146 = vtanh.pop %v4084
  %v4147 = vmul.f32 %v4142, %v3943
  %v4148 = vmul.f32 %v4144, %v3944
  %4151 = vrot.lane.b32.xlu0 %v4145, 64
  %v4152 = vpop.permute.xlu0 %4151
  %4153 = vrot.lane.b32.xlu0 %v4146, 64
  %v4154 = vpop.permute.xlu0 %4153
  %v4157 = vmul.f32 %v4142, %v4152
  %v4158 = vmul.f32 %v4144, %v4154
  %4161 = vrot.lane.b32.xlu0 %v4157, 32
  %v4162 = vpop.permute.xlu0 %4161
  %4163 = vrot.lane.b32.xlu0 %v4158, 32
  %v4164 = vpop.permute.xlu0 %4163
  %v4167 = vadd.f32 %v4147, %v4162
  %v4168 = vadd.f32 %v4148, %v4164
  %v4169 = vtanh.pop %v4167
  %v4170 = vtanh.pop %v4168
  %4173 = vrot.lane.b32.xlu0 %v4169, 64
  %v4174 = vpop.permute.xlu0 %4173
  %4175 = vrot.lane.b32.xlu0 %v4170, 64
  %v4176 = vpop.permute.xlu0 %4175
  %v4179 = vmul.f32 %v4142, %v4174
  %v4180 = vmul.f32 %v4144, %v4176
  %v4181 = vpack.c.bf16 %v4132, %v4131
  %v4183 = vunpack.c.l.b16 %v4181
  %v4184 = vunpack.c.h.b16 %v4181
  %v4185 = vpack.c.b16 %v4183, %v4183
  %v4186 = vpack.c.b16 %v4184, %v4184
  %4187 = vrot.lane.b32.xlu0 %v4185, 32
  %v4188 = vpop.permute.xlu0 %4187
  %4189 = vrot.lane.b32.xlu0 %v4186, 32
  %v4190 = vpop.permute.xlu0 %4189
  %4193 = vst.msk [vmem:[#allocation3 + $0x38] sm:$0xf] %vm523, %v4188
  %4194 = vst.msk [vmem:[#allocation3 + $0x3c] sm:$0xf] %vm523, %v4190
  %v4195 = vpack.c.bf16 %v4180, %v4179
  %v4197 = vunpack.c.l.b16 %v4195
  %v4198 = vunpack.c.h.b16 %v4195
  %v4199 = vpack.c.b16 %v4197, %v4197
  %v4200 = vpack.c.b16 %v4198, %v4198
  %4201 = vrot.lane.b32.xlu0 %v4199, 64
  %v4202 = vpop.permute.xlu0 %4201
  %4203 = vrot.lane.b32.xlu0 %v4200, 64
  %v4204 = vpop.permute.xlu0 %4203
  %4207 = vst.msk [vmem:[#allocation3] sm:$0xf] %vm538, %v4202
  %4208 = vst.msk [vmem:[#allocation3 + $0x4] sm:$0xf] %vm538, %v4204
  %v4209 = vld [vmem:[#allocation3 + $0x38] sm:$0xf]
  %v4210 = vld [vmem:[#allocation3 + $0x3c] sm:$0xf]
  %v4211 = vld [vmem:[%s9] sm:$0xf]
  %v4212 = vld [vmem:[%s9 + $0x4] sm:$0xf]
  %v4213 = vld [vmem:[%s9 + $0x8] sm:$0xf]
  %v4214 = vld [vmem:[%s9 + $0xc] sm:$0xf]
  %v4215 = vld [vmem:[%s9 + $0x10] sm:$0xf]
  %v4216 = vld [vmem:[%s9 + $0x14] sm:$0xf]
  %v4217 = vld [vmem:[%s9 + $0x18] sm:$0xf]
  %v4218 = vld [vmem:[%s9 + $0x1c] sm:$0xf]
  %v4219 = vld [vmem:[%s10] sm:$0x1]
  %v4221 = vlaneseq
  %v4222 = vshrl.u32 %v4221, 7
  %v4223 = vsub.s32 0, %v4222
  %v4224 = vrot.slane %v4219, %v4223
  %v4228 = vunpack.c.l.b16 %v4209
  %v4229 = vunpack.c.l.b16 %v4210
  %v4230 = vpack.c.b16 %v4229, %v4228
  %v4239 = vunpack.c.l.b16 %v4211
  %v4240 = vunpack.c.l.b16 %v4212
  %v4241 = vunpack.c.l.b16 %v4213
  %v4242 = vunpack.c.l.b16 %v4214
  %v4243 = vunpack.c.l.b16 %v4215
  %v4244 = vunpack.c.l.b16 %v4216
  %v4245 = vunpack.c.l.b16 %v4217
  %v4246 = vunpack.c.l.b16 %v4218
  %v4247 = vpack.c.b16 %v4240, %v4239
  %v4248 = vpack.c.b16 %v4242, %v4241
  %v4249 = vpack.c.b16 %v4244, %v4243
  %v4250 = vpack.c.b16 %v4246, %v4245
  %v4256 = vsel %vm2225, %v4230, 0
  %4258 = vmatprep.subr.bf16.mxu0 0
  %4259 = vmatpush1.bf16.msra.mxu0 0
  %4260 = vmatprep.subr.bf16.mxu0 0
  %4261 = vmatpush1.bf16.msra.mxu0 0
  %4262 = vmatprep.subr.bf16.mxu0 0
  %4263 = vmatpush1.bf16.msra.mxu0 0
  %4264 = vmatprep.subr.bf16.mxu0 0
  %4265 = vmatpush1.bf16.msra.mxu0 0
  %4266 = vmatprep.subr.bf16.mxu0 0
  %4267 = vmatpush1.bf16.msra.mxu0 %v4250
  %4268 = vmatprep.subr.bf16.mxu0 0
  %4269 = vmatpush1.bf16.msra.mxu0 %v4249
  %4270 = vmatprep.subr.bf16.mxu0 0
  %4271 = vmatpush1.bf16.msra.mxu0 %v4248
  %4272 = vmatprep.subr.bf16.mxu0 0
  %4273 = vmatpush1.bf16.msra.mxu0 %v4247
  %4274 = vmatprep.subr.bf16.mxu0 0
  %4275 = vmatpush2.bf16.msra.mxu0 0
  %4276 = vmatprep.subr.bf16.mxu0 0
  %4277 = vmatpush2.bf16.msra.mxu0 0
  %4278 = vmatprep.subr.bf16.mxu0 0
  %4279 = vmatpush2.bf16.msra.mxu0 0
  %4280 = vmatprep.subr.bf16.mxu0 0
  %4281 = vmatpush2.bf16.msra.mxu0 0
  %4282 = vmatprep.subr.bf16.mxu0 0
  %4283 = vmatpush2.bf16.msra.mxu0 0
  %4284 = vmatprep.subr.bf16.mxu0 0
  %4285 = vmatpush2.bf16.msra.mxu0 0
  %4286 = vmatprep.subr.bf16.mxu0 0
  %4287 = vmatpush2.bf16.msra.mxu0 0
  %4288 = vmatprep.subr.bf16.mxu0 0
  %4289 = vmatpush2.bf16.msra.mxu0 0
  %4290 = vmatprep.mubr.bf16.mxu0 0
  %4291 = vmatmul.mubr.bf16.gmra.mxu0 %v4256
  %v4292 = vpop.f32.mrf.mxu0
  %v4293 = vadd.f32 %v4224, %v4292
  %v4294 = vpop.f32.mrf.mxu0
  %v4295 = vpop.f32.mrf.mxu0
  %v4296 = vadd.f32 %v4224, %v4295
  %v4297 = vpop.f32.mrf.mxu0
  %4298 = vdwg.mxu0
  %4299 = vst [vmem:[%s11] sm:$0xff] %v4293
  %4300 = vst [vmem:[%s11 + $0x8] sm:$0xff] %v4296
  // Predicated region
  $region46: #{review_sentiment_lstm_forward.1} parent=0 // pred_check
    _
  $region47: #{review_sentiment_lstm_forward.1} parent=0 // pred_check_branch
    %4302 = sbr.rel (0) target = $region49
  $region48: #{review_sentiment_lstm_forward.1} parent=0 // pred_region
    _
  $region49: #{review_sentiment_lstm_forward.1} parent=0 // pred_fallthru
    _
  // Predicated region
  $region50: #{review_sentiment_lstm_forward.1} parent=0 // pred_check
    _
  $region51: #{review_sentiment_lstm_forward.1} parent=0 // pred_check_branch
    %4304 = sbr.rel (0) target = $region53
  $region52: #{review_sentiment_lstm_forward.1} parent=0 // pred_region
    _
  $region53: #{review_sentiment_lstm_forward.1} parent=0 // pred_fallthru
    _

</llo_original>
